<compile_context>
chip_gen: v7x
topology: tpu7x:2x2x1
jax: 0.10.0
libtpu: 0.0.40
codegen_flags: <defaults>
</compile_context>

<pallas_src>
import functools

import jax
import jax.numpy as jnp
from jax import lax
from jax.experimental import pallas as pl
from jax.experimental.pallas import tpu as pltpu

KH = KW = 3  # Feature_HSI uses kernel_size=3, stride=1, padding=1


def _fused_conv3_kernel(x_ref, w1_ref, w2_ref, w3_ref, o_ref, *, H, W):
    """Fused F_3(F_2(F_1(x))) for one image, (C, H*W) lane-dense layout."""
    L = H * W

    # Column-validity masks (depend only on lane position p = y*W + x).
    lane = lax.broadcasted_iota(jnp.int32, (1, L), dimension=1)
    xpos = lane % W
    col_valid = {
        -1: xpos >= 1,        # reading neighbour x-1 requires x >= 1
        0: None,              # centre column: always valid
        1: xpos <= W - 2,     # reading neighbour x+1 requires x <= W-2
    }

    def conv3x3(act, w_ref):
        # act: (Cin, L) bf16; w_ref: (9, Cout, Cin) bf16 (per-tap matrices).
        Cin, _ = act.shape
        Cout = w_ref.shape[1]
        # Pad once along lanes by W+1 zeros on each side; every 3x3 tap is
        # then a static lane slice of this buffer (row out-of-bounds reads
        # land in the zero halo automatically).
        zpad = jnp.zeros((Cin, W + 1), act.dtype)
        padded = jnp.concatenate([zpad, act, zpad], axis=1)   # (Cin, L+2W+2)

        acc = jnp.zeros((Cout, L), jnp.float32)
        for kh in range(KH):
            for kw in range(KW):
                off = (kh - 1) * W + (kw - 1)       # flat lane offset of tap
                start = (W + 1) + off
                sh = lax.slice_in_dim(padded, start, start + L, axis=1)
                cv = col_valid[kw - 1]
                if cv is not None:                  # zero x-wrapped columns
                    sh = jnp.where(cv, sh, jnp.zeros_like(sh))
                # Tiny per-tap MXU matmul, f32 accumulation.
                acc = acc + jnp.dot(w_ref[kh * KW + kw], sh,
                                    preferred_element_type=jnp.float32)
        return acc                                   # (Cout, L) f32

    act = x_ref[0]                                   # (Cin, L) bf16
    y = conv3x3(act, w1_ref)                         # (16, L)  f32
    y = conv3x3(y.astype(jnp.bfloat16), w2_ref)      # (32, L)  f32
    y = conv3x3(y.astype(jnp.bfloat16), w3_ref)      # (Cout, L) f32
    o_ref[0] = y.astype(o_ref.dtype)                 # lane-dense store


def _tap_weights(w_hwio):
    """(KH, KW, Cin, Cout) HWIO -> (KH*KW, Cout, Cin) bf16 per-tap matrices."""
    kh, kw, cin, cout = w_hwio.shape
    return jnp.transpose(w_hwio, (0, 1, 3, 2)).reshape(
        kh * kw, cout, cin).astype(jnp.bfloat16)


@jax.jit
def feature_hsi_forward(params, x_nchw):
    """Forward pass matching Feature_HSI.forward: F_3(F_2(F_1(x)))."""
    N, Cin, H, W = x_nchw.shape
    L = H * W
    # NCHW -> (N, C, H*W): a pure reshape, no transpose / HBM shuffle.
    x = x_nchw.reshape(N, Cin, L).astype(jnp.bfloat16)
    w1 = _tap_weights(params["F_1"])
    w2 = _tap_weights(params["F_2"])
    w3 = _tap_weights(params["F_3"])
    Cout = w3.shape[1]

    out_flat = pl.pallas_call(
        functools.partial(_fused_conv3_kernel, H=H, W=W),
        out_shape=jax.ShapeDtypeStruct((N, Cout, L), jnp.float32),
        grid_spec=pltpu.PrefetchScalarGridSpec(
            num_scalar_prefetch=0,
            grid=(N,),
            in_specs=[
                pl.BlockSpec((1, Cin, L), lambda n: (n, 0, 0)),
                pl.BlockSpec(w1.shape, lambda n: (0, 0, 0)),
                pl.BlockSpec(w2.shape, lambda n: (0, 0, 0)),
                pl.BlockSpec(w3.shape, lambda n: (0, 0, 0)),
            ],
            out_specs=pl.BlockSpec((1, Cout, L), lambda n: (n, 0, 0)),
        ),
        compiler_params=pltpu.CompilerParams(
            dimension_semantics=("parallel",),
            vmem_limit_bytes=16 * 1024 * 1024,
        ),
    )(x, w1, w2, w3)
    # (N, Cout, H*W) -> NCHW: again a free reshape.
    return out_flat.reshape(N, Cout, H, W)


def init_feature_hsi_params(key, in_channels, out_channels, kernel_size=3):
    """Deterministic weight init. Returns HWIO f32 weights for the 3 convs."""
    k1, k2, k3 = jax.random.split(key, 3)

    def mk(k, cin, cout):
        # PyTorch layout is OIHW; create there then transpose to HWIO.
        w_oihw = 0.1 * jax.random.normal(
            k, (cout, cin, kernel_size, kernel_size), jnp.float32)
        return jnp.transpose(w_oihw, (2, 3, 1, 0))  # -> (KH, KW, Cin, Cout)

    return {
        "F_1": mk(k1, in_channels, 16),
        "F_2": mk(k2, 16, 32),
        "F_3": mk(k3, 32, out_channels),
    }


def _reference_forward(params, x_nchw):
    """Pure-JAX reference (same bf16-in / f32-accumulate math) via lax.conv."""
    x = x_nchw
    for name in ("F_1", "F_2", "F_3"):
        w = params[name].astype(jnp.bfloat16)
        x = lax.conv_general_dilated(
            x.astype(jnp.bfloat16), w, window_strides=(1, 1),
            padding=((1, 1), (1, 1)),
            dimension_numbers=("NCHW", "HWIO", "NCHW"),
            preferred_element_type=jnp.float32)
    return x


if __name__ == "__main__":
    key = jax.random.PRNGKey(0)
    k_param, k_x = jax.random.split(key)

    in_channels, out_channels = 4, 64
    N, H, W = 2, 16, 16

    params = init_feature_hsi_params(k_param, in_channels, out_channels)
    x = jax.random.normal(k_x, (N, in_channels, H, W), jnp.float32)

    out = jax.block_until_ready(feature_hsi_forward(params, x))
    assert out.shape == (N, out_channels, H, W), out.shape

    ref = jax.block_until_ready(_reference_forward(params, x))
    max_err = float(jnp.max(jnp.abs(out - ref)))
    assert jnp.allclose(out, ref, atol=2e-2, rtol=2e-2), max_err

    print("KERNEL_OK")
</pallas_src>

<mosaic_0001>
module attributes {stable_mosaic.version = 11 : i64} {
  func.func @_fused_conv3_kernel(%arg0: i32, %arg1: memref<1x4x256xbf16, #tpu.memory_space<vmem>>, %arg2: memref<9x16x4xbf16, #tpu.memory_space<vmem>>, %arg3: memref<9x32x16xbf16, #tpu.memory_space<vmem>>, %arg4: memref<9x64x32xbf16, #tpu.memory_space<vmem>>, %arg5: memref<1x64x256xf32, #tpu.memory_space<vmem>>) attributes {dimension_semantics = [#tpu.dimension_semantics<parallel>], iteration_bounds = array<i64: 2>, scalar_prefetch = 0 : i64, scratch_operands = 0 : i64, tpu.core_type = #tpu.core_type<tc>, window_params = [{transform_indices = @transform_0, window_bounds = array<i64: 1, 4, 256>}, {pipeline_mode = #tpu.pipeline_mode<synchronous>, transform_indices = @transform_1, window_bounds = array<i64: 9, 16, 4>}, {pipeline_mode = #tpu.pipeline_mode<synchronous>, transform_indices = @transform_2, window_bounds = array<i64: 9, 32, 16>}, {pipeline_mode = #tpu.pipeline_mode<synchronous>, transform_indices = @transform_3, window_bounds = array<i64: 9, 64, 32>}, {transform_indices = @transform_4, window_bounds = array<i64: 1, 64, 256>}]} {
    %0 = tpu.iota {dimensions = array<i32: 1>} : vector<1x256xi32>
    %c16_i32 = arith.constant 16 : i32
    %c0_i32 = arith.constant 0 : i32
    %1 = arith.cmpi eq, %c16_i32, %c0_i32 : i32
    %c1_i32 = arith.constant 1 : i32
    %2 = arith.select %1, %c1_i32, %c16_i32 : i32
    %3 = vector.broadcast %2 : i32 to vector<1x256xi32>
    %4 = arith.remsi %0, %3 : vector<1x256xi32>
    %c0_i32_0 = arith.constant 0 : i32
    %5 = vector.broadcast %c0_i32_0 : i32 to vector<1x256xi32>
    %6 = arith.cmpi ne, %4, %5 : vector<1x256xi32>
    %c0_i32_1 = arith.constant 0 : i32
    %7 = vector.broadcast %c0_i32_1 : i32 to vector<1x256xi32>
    %8 = arith.cmpi slt, %4, %7 : vector<1x256xi32>
    %c0_i32_2 = arith.constant 0 : i32
    %9 = arith.cmpi slt, %2, %c0_i32_2 : i32
    %10 = vector.broadcast %9 : i1 to vector<1x256xi1>
    %11 = vector.broadcast %10 : vector<1x256xi1> to vector<1x256xi1>
    %12 = arith.xori %8, %11 : vector<1x256xi1>
    %13 = arith.andi %12, %6 : vector<1x256xi1>
    %14 = vector.broadcast %2 : i32 to vector<1x256xi32>
    %15 = arith.addi %4, %14 : vector<1x256xi32>
    %16 = arith.select %13, %15, %4 : vector<1x256xi1>, vector<1x256xi32>
    %c1_i32_3 = arith.constant 1 : i32
    %17 = vector.broadcast %c1_i32_3 : i32 to vector<1x256xi32>
    %18 = arith.cmpi sge, %16, %17 : vector<1x256xi32>
    %c14_i32 = arith.constant 14 : i32
    %19 = vector.broadcast %c14_i32 : i32 to vector<1x256xi32>
    %20 = arith.cmpi sle, %16, %19 : vector<1x256xi32>
    %c0 = arith.constant 0 : index
    %c0_4 = arith.constant 0 : index
    %c0_5 = arith.constant 0 : index
    %21 = vector.load %arg1[%c0, %c0_4, %c0_5] : memref<1x4x256xbf16, #tpu.memory_space<vmem>>, vector<1x4x256xbf16>
    %22 = vector.shape_cast %21 : vector<1x4x256xbf16> to vector<4x256xbf16>
    %cst = arith.constant 0.000000e+00 : bf16
    %23 = vector.broadcast %cst : bf16 to vector<4x17xbf16>
    %24 = tpu.concatenate %23, %22, %23 in 1 : vector<4x17xbf16>, vector<4x256xbf16>, vector<4x17xbf16> -> vector<4x290xbf16>
    %cst_6 = arith.constant 0.000000e+00 : f32
    %25 = vector.broadcast %cst_6 : f32 to vector<16x256xf32>
    %26 = vector.extract_strided_slice %24 {offsets = [0, 0], sizes = [4, 256], strides = [1, 1]} : vector<4x290xbf16> to vector<4x256xbf16>
    %cst_7 = arith.constant 0.000000e+00 : bf16
    %27 = vector.broadcast %cst_7 : bf16 to vector<4x256xbf16>
    %28 = vector.shape_cast %18 : vector<1x256xi1> to vector<1x256xi1>
    %29 = vector.broadcast %28 : vector<1x256xi1> to vector<4x256xi1>
    %30 = arith.select %29, %26, %27 : vector<4x256xi1>, vector<4x256xbf16>
    %c0_8 = arith.constant 0 : index
    %c0_9 = arith.constant 0 : index
    %c0_10 = arith.constant 0 : index
    %31 = vector.load %arg2[%c0_8, %c0_9, %c0_10] : memref<9x16x4xbf16, #tpu.memory_space<vmem>>, vector<1x16x4xbf16>
    %32 = vector.shape_cast %31 : vector<1x16x4xbf16> to vector<16x4xbf16>
    %cst_11 = arith.constant dense<0.000000e+00> : vector<16x256xf32>
    %33 = tpu.matmul %32, %30, %cst_11 {dimension_numbers = #tpu.dot_dimension_numbers<[1], [0], [0], [1], [0, 0, 1, 1], [], []>} : vector<16x4xbf16>, vector<4x256xbf16>, vector<16x256xf32> -> vector<16x256xf32>
    %34 = arith.addf %25, %33 : vector<16x256xf32>
    %35 = vector.extract_strided_slice %24 {offsets = [0, 1], sizes = [4, 256], strides = [1, 1]} : vector<4x290xbf16> to vector<4x256xbf16>
    %c1 = arith.constant 1 : index
    %c0_12 = arith.constant 0 : index
    %c0_13 = arith.constant 0 : index
    %36 = vector.load %arg2[%c1, %c0_12, %c0_13] : memref<9x16x4xbf16, #tpu.memory_space<vmem>>, vector<1x16x4xbf16>
    %37 = vector.shape_cast %36 : vector<1x16x4xbf16> to vector<16x4xbf16>
    %cst_14 = arith.constant dense<0.000000e+00> : vector<16x256xf32>
    %38 = tpu.matmul %37, %35, %cst_14 {dimension_numbers = #tpu.dot_dimension_numbers<[1], [0], [0], [1], [0, 0, 1, 1], [], []>} : vector<16x4xbf16>, vector<4x256xbf16>, vector<16x256xf32> -> vector<16x256xf32>
    %39 = arith.addf %34, %38 : vector<16x256xf32>
    %40 = vector.extract_strided_slice %24 {offsets = [0, 2], sizes = [4, 256], strides = [1, 1]} : vector<4x290xbf16> to vector<4x256xbf16>
    %cst_15 = arith.constant 0.000000e+00 : bf16
    %41 = vector.broadcast %cst_15 : bf16 to vector<4x256xbf16>
    %42 = vector.shape_cast %20 : vector<1x256xi1> to vector<1x256xi1>
    %43 = vector.broadcast %42 : vector<1x256xi1> to vector<4x256xi1>
    %44 = arith.select %43, %40, %41 : vector<4x256xi1>, vector<4x256xbf16>
    %c2 = arith.constant 2 : index
    %c0_16 = arith.constant 0 : index
    %c0_17 = arith.constant 0 : index
    %45 = vector.load %arg2[%c2, %c0_16, %c0_17] : memref<9x16x4xbf16, #tpu.memory_space<vmem>>, vector<1x16x4xbf16>
    %46 = vector.shape_cast %45 : vector<1x16x4xbf16> to vector<16x4xbf16>
    %cst_18 = arith.constant dense<0.000000e+00> : vector<16x256xf32>
    %47 = tpu.matmul %46, %44, %cst_18 {dimension_numbers = #tpu.dot_dimension_numbers<[1], [0], [0], [1], [0, 0, 1, 1], [], []>} : vector<16x4xbf16>, vector<4x256xbf16>, vector<16x256xf32> -> vector<16x256xf32>
    %48 = arith.addf %39, %47 : vector<16x256xf32>
    %49 = vector.extract_strided_slice %24 {offsets = [0, 16], sizes = [4, 256], strides = [1, 1]} : vector<4x290xbf16> to vector<4x256xbf16>
    %cst_19 = arith.constant 0.000000e+00 : bf16
    %50 = vector.broadcast %cst_19 : bf16 to vector<4x256xbf16>
    %51 = vector.shape_cast %18 : vector<1x256xi1> to vector<1x256xi1>
    %52 = vector.broadcast %51 : vector<1x256xi1> to vector<4x256xi1>
    %53 = arith.select %52, %49, %50 : vector<4x256xi1>, vector<4x256xbf16>
    %c3 = arith.constant 3 : index
    %c0_20 = arith.constant 0 : index
    %c0_21 = arith.constant 0 : index
    %54 = vector.load %arg2[%c3, %c0_20, %c0_21] : memref<9x16x4xbf16, #tpu.memory_space<vmem>>, vector<1x16x4xbf16>
    %55 = vector.shape_cast %54 : vector<1x16x4xbf16> to vector<16x4xbf16>
    %cst_22 = arith.constant dense<0.000000e+00> : vector<16x256xf32>
    %56 = tpu.matmul %55, %53, %cst_22 {dimension_numbers = #tpu.dot_dimension_numbers<[1], [0], [0], [1], [0, 0, 1, 1], [], []>} : vector<16x4xbf16>, vector<4x256xbf16>, vector<16x256xf32> -> vector<16x256xf32>
    %57 = arith.addf %48, %56 : vector<16x256xf32>
    %58 = vector.extract_strided_slice %24 {offsets = [0, 17], sizes = [4, 256], strides = [1, 1]} : vector<4x290xbf16> to vector<4x256xbf16>
    %c4 = arith.constant 4 : index
    %c0_23 = arith.constant 0 : index
    %c0_24 = arith.constant 0 : index
    %59 = vector.load %arg2[%c4, %c0_23, %c0_24] : memref<9x16x4xbf16, #tpu.memory_space<vmem>>, vector<1x16x4xbf16>
    %60 = vector.shape_cast %59 : vector<1x16x4xbf16> to vector<16x4xbf16>
    %cst_25 = arith.constant dense<0.000000e+00> : vector<16x256xf32>
    %61 = tpu.matmul %60, %58, %cst_25 {dimension_numbers = #tpu.dot_dimension_numbers<[1], [0], [0], [1], [0, 0, 1, 1], [], []>} : vector<16x4xbf16>, vector<4x256xbf16>, vector<16x256xf32> -> vector<16x256xf32>
    %62 = arith.addf %57, %61 : vector<16x256xf32>
    %63 = vector.extract_strided_slice %24 {offsets = [0, 18], sizes = [4, 256], strides = [1, 1]} : vector<4x290xbf16> to vector<4x256xbf16>
    %cst_26 = arith.constant 0.000000e+00 : bf16
    %64 = vector.broadcast %cst_26 : bf16 to vector<4x256xbf16>
    %65 = vector.shape_cast %20 : vector<1x256xi1> to vector<1x256xi1>
    %66 = vector.broadcast %65 : vector<1x256xi1> to vector<4x256xi1>
    %67 = arith.select %66, %63, %64 : vector<4x256xi1>, vector<4x256xbf16>
    %c5 = arith.constant 5 : index
    %c0_27 = arith.constant 0 : index
    %c0_28 = arith.constant 0 : index
    %68 = vector.load %arg2[%c5, %c0_27, %c0_28] : memref<9x16x4xbf16, #tpu.memory_space<vmem>>, vector<1x16x4xbf16>
    %69 = vector.shape_cast %68 : vector<1x16x4xbf16> to vector<16x4xbf16>
    %cst_29 = arith.constant dense<0.000000e+00> : vector<16x256xf32>
    %70 = tpu.matmul %69, %67, %cst_29 {dimension_numbers = #tpu.dot_dimension_numbers<[1], [0], [0], [1], [0, 0, 1, 1], [], []>} : vector<16x4xbf16>, vector<4x256xbf16>, vector<16x256xf32> -> vector<16x256xf32>
    %71 = arith.addf %62, %70 : vector<16x256xf32>
    %72 = vector.extract_strided_slice %24 {offsets = [0, 32], sizes = [4, 256], strides = [1, 1]} : vector<4x290xbf16> to vector<4x256xbf16>
    %cst_30 = arith.constant 0.000000e+00 : bf16
    %73 = vector.broadcast %cst_30 : bf16 to vector<4x256xbf16>
    %74 = vector.shape_cast %18 : vector<1x256xi1> to vector<1x256xi1>
    %75 = vector.broadcast %74 : vector<1x256xi1> to vector<4x256xi1>
    %76 = arith.select %75, %72, %73 : vector<4x256xi1>, vector<4x256xbf16>
    %c6 = arith.constant 6 : index
    %c0_31 = arith.constant 0 : index
    %c0_32 = arith.constant 0 : index
    %77 = vector.load %arg2[%c6, %c0_31, %c0_32] : memref<9x16x4xbf16, #tpu.memory_space<vmem>>, vector<1x16x4xbf16>
    %78 = vector.shape_cast %77 : vector<1x16x4xbf16> to vector<16x4xbf16>
    %cst_33 = arith.constant dense<0.000000e+00> : vector<16x256xf32>
    %79 = tpu.matmul %78, %76, %cst_33 {dimension_numbers = #tpu.dot_dimension_numbers<[1], [0], [0], [1], [0, 0, 1, 1], [], []>} : vector<16x4xbf16>, vector<4x256xbf16>, vector<16x256xf32> -> vector<16x256xf32>
    %80 = arith.addf %71, %79 : vector<16x256xf32>
    %81 = vector.extract_strided_slice %24 {offsets = [0, 33], sizes = [4, 256], strides = [1, 1]} : vector<4x290xbf16> to vector<4x256xbf16>
    %c7 = arith.constant 7 : index
    %c0_34 = arith.constant 0 : index
    %c0_35 = arith.constant 0 : index
    %82 = vector.load %arg2[%c7, %c0_34, %c0_35] : memref<9x16x4xbf16, #tpu.memory_space<vmem>>, vector<1x16x4xbf16>
    %83 = vector.shape_cast %82 : vector<1x16x4xbf16> to vector<16x4xbf16>
    %cst_36 = arith.constant dense<0.000000e+00> : vector<16x256xf32>
    %84 = tpu.matmul %83, %81, %cst_36 {dimension_numbers = #tpu.dot_dimension_numbers<[1], [0], [0], [1], [0, 0, 1, 1], [], []>} : vector<16x4xbf16>, vector<4x256xbf16>, vector<16x256xf32> -> vector<16x256xf32>
    %85 = arith.addf %80, %84 : vector<16x256xf32>
    %86 = vector.extract_strided_slice %24 {offsets = [0, 34], sizes = [4, 256], strides = [1, 1]} : vector<4x290xbf16> to vector<4x256xbf16>
    %cst_37 = arith.constant 0.000000e+00 : bf16
    %87 = vector.broadcast %cst_37 : bf16 to vector<4x256xbf16>
    %88 = vector.shape_cast %20 : vector<1x256xi1> to vector<1x256xi1>
    %89 = vector.broadcast %88 : vector<1x256xi1> to vector<4x256xi1>
    %90 = arith.select %89, %86, %87 : vector<4x256xi1>, vector<4x256xbf16>
    %c8 = arith.constant 8 : index
    %c0_38 = arith.constant 0 : index
    %c0_39 = arith.constant 0 : index
    %91 = vector.load %arg2[%c8, %c0_38, %c0_39] : memref<9x16x4xbf16, #tpu.memory_space<vmem>>, vector<1x16x4xbf16>
    %92 = vector.shape_cast %91 : vector<1x16x4xbf16> to vector<16x4xbf16>
    %cst_40 = arith.constant dense<0.000000e+00> : vector<16x256xf32>
    %93 = tpu.matmul %92, %90, %cst_40 {dimension_numbers = #tpu.dot_dimension_numbers<[1], [0], [0], [1], [0, 0, 1, 1], [], []>} : vector<16x4xbf16>, vector<4x256xbf16>, vector<16x256xf32> -> vector<16x256xf32>
    %94 = arith.addf %85, %93 : vector<16x256xf32>
    %95 = arith.truncf %94 : vector<16x256xf32> to vector<16x256xbf16>
    %cst_41 = arith.constant 0.000000e+00 : bf16
    %96 = vector.broadcast %cst_41 : bf16 to vector<16x17xbf16>
    %97 = tpu.concatenate %96, %95, %96 in 1 : vector<16x17xbf16>, vector<16x256xbf16>, vector<16x17xbf16> -> vector<16x290xbf16>
    %cst_42 = arith.constant 0.000000e+00 : f32
    %98 = vector.broadcast %cst_42 : f32 to vector<32x256xf32>
    %99 = vector.extract_strided_slice %97 {offsets = [0, 0], sizes = [16, 256], strides = [1, 1]} : vector<16x290xbf16> to vector<16x256xbf16>
    %cst_43 = arith.constant 0.000000e+00 : bf16
    %100 = vector.broadcast %cst_43 : bf16 to vector<16x256xbf16>
    %101 = vector.shape_cast %18 : vector<1x256xi1> to vector<1x256xi1>
    %102 = vector.broadcast %101 : vector<1x256xi1> to vector<16x256xi1>
    %103 = arith.select %102, %99, %100 : vector<16x256xi1>, vector<16x256xbf16>
    %c0_44 = arith.constant 0 : index
    %c0_45 = arith.constant 0 : index
    %c0_46 = arith.constant 0 : index
    %104 = vector.load %arg3[%c0_44, %c0_45, %c0_46] : memref<9x32x16xbf16, #tpu.memory_space<vmem>>, vector<1x32x16xbf16>
    %105 = vector.shape_cast %104 : vector<1x32x16xbf16> to vector<32x16xbf16>
    %cst_47 = arith.constant dense<0.000000e+00> : vector<32x256xf32>
    %106 = tpu.matmul %105, %103, %cst_47 {dimension_numbers = #tpu.dot_dimension_numbers<[1], [0], [0], [1], [0, 0, 1, 1], [], []>} : vector<32x16xbf16>, vector<16x256xbf16>, vector<32x256xf32> -> vector<32x256xf32>
    %107 = arith.addf %98, %106 : vector<32x256xf32>
    %108 = vector.extract_strided_slice %97 {offsets = [0, 1], sizes = [16, 256], strides = [1, 1]} : vector<16x290xbf16> to vector<16x256xbf16>
    %c1_48 = arith.constant 1 : index
    %c0_49 = arith.constant 0 : index
    %c0_50 = arith.constant 0 : index
    %109 = vector.load %arg3[%c1_48, %c0_49, %c0_50] : memref<9x32x16xbf16, #tpu.memory_space<vmem>>, vector<1x32x16xbf16>
    %110 = vector.shape_cast %109 : vector<1x32x16xbf16> to vector<32x16xbf16>
    %cst_51 = arith.constant dense<0.000000e+00> : vector<32x256xf32>
    %111 = tpu.matmul %110, %108, %cst_51 {dimension_numbers = #tpu.dot_dimension_numbers<[1], [0], [0], [1], [0, 0, 1, 1], [], []>} : vector<32x16xbf16>, vector<16x256xbf16>, vector<32x256xf32> -> vector<32x256xf32>
    %112 = arith.addf %107, %111 : vector<32x256xf32>
    %113 = vector.extract_strided_slice %97 {offsets = [0, 2], sizes = [16, 256], strides = [1, 1]} : vector<16x290xbf16> to vector<16x256xbf16>
    %cst_52 = arith.constant 0.000000e+00 : bf16
    %114 = vector.broadcast %cst_52 : bf16 to vector<16x256xbf16>
    %115 = vector.shape_cast %20 : vector<1x256xi1> to vector<1x256xi1>
    %116 = vector.broadcast %115 : vector<1x256xi1> to vector<16x256xi1>
    %117 = arith.select %116, %113, %114 : vector<16x256xi1>, vector<16x256xbf16>
    %c2_53 = arith.constant 2 : index
    %c0_54 = arith.constant 0 : index
    %c0_55 = arith.constant 0 : index
    %118 = vector.load %arg3[%c2_53, %c0_54, %c0_55] : memref<9x32x16xbf16, #tpu.memory_space<vmem>>, vector<1x32x16xbf16>
    %119 = vector.shape_cast %118 : vector<1x32x16xbf16> to vector<32x16xbf16>
    %cst_56 = arith.constant dense<0.000000e+00> : vector<32x256xf32>
    %120 = tpu.matmul %119, %117, %cst_56 {dimension_numbers = #tpu.dot_dimension_numbers<[1], [0], [0], [1], [0, 0, 1, 1], [], []>} : vector<32x16xbf16>, vector<16x256xbf16>, vector<32x256xf32> -> vector<32x256xf32>
    %121 = arith.addf %112, %120 : vector<32x256xf32>
    %122 = vector.extract_strided_slice %97 {offsets = [0, 16], sizes = [16, 256], strides = [1, 1]} : vector<16x290xbf16> to vector<16x256xbf16>
    %cst_57 = arith.constant 0.000000e+00 : bf16
    %123 = vector.broadcast %cst_57 : bf16 to vector<16x256xbf16>
    %124 = vector.shape_cast %18 : vector<1x256xi1> to vector<1x256xi1>
    %125 = vector.broadcast %124 : vector<1x256xi1> to vector<16x256xi1>
    %126 = arith.select %125, %122, %123 : vector<16x256xi1>, vector<16x256xbf16>
    %c3_58 = arith.constant 3 : index
    %c0_59 = arith.constant 0 : index
    %c0_60 = arith.constant 0 : index
    %127 = vector.load %arg3[%c3_58, %c0_59, %c0_60] : memref<9x32x16xbf16, #tpu.memory_space<vmem>>, vector<1x32x16xbf16>
    %128 = vector.shape_cast %127 : vector<1x32x16xbf16> to vector<32x16xbf16>
    %cst_61 = arith.constant dense<0.000000e+00> : vector<32x256xf32>
    %129 = tpu.matmul %128, %126, %cst_61 {dimension_numbers = #tpu.dot_dimension_numbers<[1], [0], [0], [1], [0, 0, 1, 1], [], []>} : vector<32x16xbf16>, vector<16x256xbf16>, vector<32x256xf32> -> vector<32x256xf32>
    %130 = arith.addf %121, %129 : vector<32x256xf32>
    %131 = vector.extract_strided_slice %97 {offsets = [0, 17], sizes = [16, 256], strides = [1, 1]} : vector<16x290xbf16> to vector<16x256xbf16>
    %c4_62 = arith.constant 4 : index
    %c0_63 = arith.constant 0 : index
    %c0_64 = arith.constant 0 : index
    %132 = vector.load %arg3[%c4_62, %c0_63, %c0_64] : memref<9x32x16xbf16, #tpu.memory_space<vmem>>, vector<1x32x16xbf16>
    %133 = vector.shape_cast %132 : vector<1x32x16xbf16> to vector<32x16xbf16>
    %cst_65 = arith.constant dense<0.000000e+00> : vector<32x256xf32>
    %134 = tpu.matmul %133, %131, %cst_65 {dimension_numbers = #tpu.dot_dimension_numbers<[1], [0], [0], [1], [0, 0, 1, 1], [], []>} : vector<32x16xbf16>, vector<16x256xbf16>, vector<32x256xf32> -> vector<32x256xf32>
    %135 = arith.addf %130, %134 : vector<32x256xf32>
    %136 = vector.extract_strided_slice %97 {offsets = [0, 18], sizes = [16, 256], strides = [1, 1]} : vector<16x290xbf16> to vector<16x256xbf16>
    %cst_66 = arith.constant 0.000000e+00 : bf16
    %137 = vector.broadcast %cst_66 : bf16 to vector<16x256xbf16>
    %138 = vector.shape_cast %20 : vector<1x256xi1> to vector<1x256xi1>
    %139 = vector.broadcast %138 : vector<1x256xi1> to vector<16x256xi1>
    %140 = arith.select %139, %136, %137 : vector<16x256xi1>, vector<16x256xbf16>
    %c5_67 = arith.constant 5 : index
    %c0_68 = arith.constant 0 : index
    %c0_69 = arith.constant 0 : index
    %141 = vector.load %arg3[%c5_67, %c0_68, %c0_69] : memref<9x32x16xbf16, #tpu.memory_space<vmem>>, vector<1x32x16xbf16>
    %142 = vector.shape_cast %141 : vector<1x32x16xbf16> to vector<32x16xbf16>
    %cst_70 = arith.constant dense<0.000000e+00> : vector<32x256xf32>
    %143 = tpu.matmul %142, %140, %cst_70 {dimension_numbers = #tpu.dot_dimension_numbers<[1], [0], [0], [1], [0, 0, 1, 1], [], []>} : vector<32x16xbf16>, vector<16x256xbf16>, vector<32x256xf32> -> vector<32x256xf32>
    %144 = arith.addf %135, %143 : vector<32x256xf32>
    %145 = vector.extract_strided_slice %97 {offsets = [0, 32], sizes = [16, 256], strides = [1, 1]} : vector<16x290xbf16> to vector<16x256xbf16>
    %cst_71 = arith.constant 0.000000e+00 : bf16
    %146 = vector.broadcast %cst_71 : bf16 to vector<16x256xbf16>
    %147 = vector.shape_cast %18 : vector<1x256xi1> to vector<1x256xi1>
    %148 = vector.broadcast %147 : vector<1x256xi1> to vector<16x256xi1>
    %149 = arith.select %148, %145, %146 : vector<16x256xi1>, vector<16x256xbf16>
    %c6_72 = arith.constant 6 : index
    %c0_73 = arith.constant 0 : index
    %c0_74 = arith.constant 0 : index
    %150 = vector.load %arg3[%c6_72, %c0_73, %c0_74] : memref<9x32x16xbf16, #tpu.memory_space<vmem>>, vector<1x32x16xbf16>
    %151 = vector.shape_cast %150 : vector<1x32x16xbf16> to vector<32x16xbf16>
    %cst_75 = arith.constant dense<0.000000e+00> : vector<32x256xf32>
    %152 = tpu.matmul %151, %149, %cst_75 {dimension_numbers = #tpu.dot_dimension_numbers<[1], [0], [0], [1], [0, 0, 1, 1], [], []>} : vector<32x16xbf16>, vector<16x256xbf16>, vector<32x256xf32> -> vector<32x256xf32>
    %153 = arith.addf %144, %152 : vector<32x256xf32>
    %154 = vector.extract_strided_slice %97 {offsets = [0, 33], sizes = [16, 256], strides = [1, 1]} : vector<16x290xbf16> to vector<16x256xbf16>
    %c7_76 = arith.constant 7 : index
    %c0_77 = arith.constant 0 : index
    %c0_78 = arith.constant 0 : index
    %155 = vector.load %arg3[%c7_76, %c0_77, %c0_78] : memref<9x32x16xbf16, #tpu.memory_space<vmem>>, vector<1x32x16xbf16>
    %156 = vector.shape_cast %155 : vector<1x32x16xbf16> to vector<32x16xbf16>
    %cst_79 = arith.constant dense<0.000000e+00> : vector<32x256xf32>
    %157 = tpu.matmul %156, %154, %cst_79 {dimension_numbers = #tpu.dot_dimension_numbers<[1], [0], [0], [1], [0, 0, 1, 1], [], []>} : vector<32x16xbf16>, vector<16x256xbf16>, vector<32x256xf32> -> vector<32x256xf32>
    %158 = arith.addf %153, %157 : vector<32x256xf32>
    %159 = vector.extract_strided_slice %97 {offsets = [0, 34], sizes = [16, 256], strides = [1, 1]} : vector<16x290xbf16> to vector<16x256xbf16>
    %cst_80 = arith.constant 0.000000e+00 : bf16
    %160 = vector.broadcast %cst_80 : bf16 to vector<16x256xbf16>
    %161 = vector.shape_cast %20 : vector<1x256xi1> to vector<1x256xi1>
    %162 = vector.broadcast %161 : vector<1x256xi1> to vector<16x256xi1>
    %163 = arith.select %162, %159, %160 : vector<16x256xi1>, vector<16x256xbf16>
    %c8_81 = arith.constant 8 : index
    %c0_82 = arith.constant 0 : index
    %c0_83 = arith.constant 0 : index
    %164 = vector.load %arg3[%c8_81, %c0_82, %c0_83] : memref<9x32x16xbf16, #tpu.memory_space<vmem>>, vector<1x32x16xbf16>
    %165 = vector.shape_cast %164 : vector<1x32x16xbf16> to vector<32x16xbf16>
    %cst_84 = arith.constant dense<0.000000e+00> : vector<32x256xf32>
    %166 = tpu.matmul %165, %163, %cst_84 {dimension_numbers = #tpu.dot_dimension_numbers<[1], [0], [0], [1], [0, 0, 1, 1], [], []>} : vector<32x16xbf16>, vector<16x256xbf16>, vector<32x256xf32> -> vector<32x256xf32>
    %167 = arith.addf %158, %166 : vector<32x256xf32>
    %168 = arith.truncf %167 : vector<32x256xf32> to vector<32x256xbf16>
    %cst_85 = arith.constant 0.000000e+00 : bf16
    %169 = vector.broadcast %cst_85 : bf16 to vector<32x17xbf16>
    %170 = tpu.concatenate %169, %168, %169 in 1 : vector<32x17xbf16>, vector<32x256xbf16>, vector<32x17xbf16> -> vector<32x290xbf16>
    %cst_86 = arith.constant 0.000000e+00 : f32
    %171 = vector.broadcast %cst_86 : f32 to vector<64x256xf32>
    %172 = vector.extract_strided_slice %170 {offsets = [0, 0], sizes = [32, 256], strides = [1, 1]} : vector<32x290xbf16> to vector<32x256xbf16>
    %cst_87 = arith.constant 0.000000e+00 : bf16
    %173 = vector.broadcast %cst_87 : bf16 to vector<32x256xbf16>
    %174 = vector.shape_cast %18 : vector<1x256xi1> to vector<1x256xi1>
    %175 = vector.broadcast %174 : vector<1x256xi1> to vector<32x256xi1>
    %176 = arith.select %175, %172, %173 : vector<32x256xi1>, vector<32x256xbf16>
    %c0_88 = arith.constant 0 : index
    %c0_89 = arith.constant 0 : index
    %c0_90 = arith.constant 0 : index
    %177 = vector.load %arg4[%c0_88, %c0_89, %c0_90] : memref<9x64x32xbf16, #tpu.memory_space<vmem>>, vector<1x64x32xbf16>
    %178 = vector.shape_cast %177 : vector<1x64x32xbf16> to vector<64x32xbf16>
    %cst_91 = arith.constant dense<0.000000e+00> : vector<64x256xf32>
    %179 = tpu.matmul %178, %176, %cst_91 {dimension_numbers = #tpu.dot_dimension_numbers<[1], [0], [0], [1], [0, 0, 1, 1], [], []>} : vector<64x32xbf16>, vector<32x256xbf16>, vector<64x256xf32> -> vector<64x256xf32>
    %180 = arith.addf %171, %179 : vector<64x256xf32>
    %181 = vector.extract_strided_slice %170 {offsets = [0, 1], sizes = [32, 256], strides = [1, 1]} : vector<32x290xbf16> to vector<32x256xbf16>
    %c1_92 = arith.constant 1 : index
    %c0_93 = arith.constant 0 : index
    %c0_94 = arith.constant 0 : index
    %182 = vector.load %arg4[%c1_92, %c0_93, %c0_94] : memref<9x64x32xbf16, #tpu.memory_space<vmem>>, vector<1x64x32xbf16>
    %183 = vector.shape_cast %182 : vector<1x64x32xbf16> to vector<64x32xbf16>
    %cst_95 = arith.constant dense<0.000000e+00> : vector<64x256xf32>
    %184 = tpu.matmul %183, %181, %cst_95 {dimension_numbers = #tpu.dot_dimension_numbers<[1], [0], [0], [1], [0, 0, 1, 1], [], []>} : vector<64x32xbf16>, vector<32x256xbf16>, vector<64x256xf32> -> vector<64x256xf32>
    %185 = arith.addf %180, %184 : vector<64x256xf32>
    %186 = vector.extract_strided_slice %170 {offsets = [0, 2], sizes = [32, 256], strides = [1, 1]} : vector<32x290xbf16> to vector<32x256xbf16>
    %cst_96 = arith.constant 0.000000e+00 : bf16
    %187 = vector.broadcast %cst_96 : bf16 to vector<32x256xbf16>
    %188 = vector.shape_cast %20 : vector<1x256xi1> to vector<1x256xi1>
    %189 = vector.broadcast %188 : vector<1x256xi1> to vector<32x256xi1>
    %190 = arith.select %189, %186, %187 : vector<32x256xi1>, vector<32x256xbf16>
    %c2_97 = arith.constant 2 : index
    %c0_98 = arith.constant 0 : index
    %c0_99 = arith.constant 0 : index
    %191 = vector.load %arg4[%c2_97, %c0_98, %c0_99] : memref<9x64x32xbf16, #tpu.memory_space<vmem>>, vector<1x64x32xbf16>
    %192 = vector.shape_cast %191 : vector<1x64x32xbf16> to vector<64x32xbf16>
    %cst_100 = arith.constant dense<0.000000e+00> : vector<64x256xf32>
    %193 = tpu.matmul %192, %190, %cst_100 {dimension_numbers = #tpu.dot_dimension_numbers<[1], [0], [0], [1], [0, 0, 1, 1], [], []>} : vector<64x32xbf16>, vector<32x256xbf16>, vector<64x256xf32> -> vector<64x256xf32>
    %194 = arith.addf %185, %193 : vector<64x256xf32>
    %195 = vector.extract_strided_slice %170 {offsets = [0, 16], sizes = [32, 256], strides = [1, 1]} : vector<32x290xbf16> to vector<32x256xbf16>
    %cst_101 = arith.constant 0.000000e+00 : bf16
    %196 = vector.broadcast %cst_101 : bf16 to vector<32x256xbf16>
    %197 = vector.shape_cast %18 : vector<1x256xi1> to vector<1x256xi1>
    %198 = vector.broadcast %197 : vector<1x256xi1> to vector<32x256xi1>
    %199 = arith.select %198, %195, %196 : vector<32x256xi1>, vector<32x256xbf16>
    %c3_102 = arith.constant 3 : index
    %c0_103 = arith.constant 0 : index
    %c0_104 = arith.constant 0 : index
    %200 = vector.load %arg4[%c3_102, %c0_103, %c0_104] : memref<9x64x32xbf16, #tpu.memory_space<vmem>>, vector<1x64x32xbf16>
    %201 = vector.shape_cast %200 : vector<1x64x32xbf16> to vector<64x32xbf16>
    %cst_105 = arith.constant dense<0.000000e+00> : vector<64x256xf32>
    %202 = tpu.matmul %201, %199, %cst_105 {dimension_numbers = #tpu.dot_dimension_numbers<[1], [0], [0], [1], [0, 0, 1, 1], [], []>} : vector<64x32xbf16>, vector<32x256xbf16>, vector<64x256xf32> -> vector<64x256xf32>
    %203 = arith.addf %194, %202 : vector<64x256xf32>
    %204 = vector.extract_strided_slice %170 {offsets = [0, 17], sizes = [32, 256], strides = [1, 1]} : vector<32x290xbf16> to vector<32x256xbf16>
    %c4_106 = arith.constant 4 : index
    %c0_107 = arith.constant 0 : index
    %c0_108 = arith.constant 0 : index
    %205 = vector.load %arg4[%c4_106, %c0_107, %c0_108] : memref<9x64x32xbf16, #tpu.memory_space<vmem>>, vector<1x64x32xbf16>
    %206 = vector.shape_cast %205 : vector<1x64x32xbf16> to vector<64x32xbf16>
    %cst_109 = arith.constant dense<0.000000e+00> : vector<64x256xf32>
    %207 = tpu.matmul %206, %204, %cst_109 {dimension_numbers = #tpu.dot_dimension_numbers<[1], [0], [0], [1], [0, 0, 1, 1], [], []>} : vector<64x32xbf16>, vector<32x256xbf16>, vector<64x256xf32> -> vector<64x256xf32>
    %208 = arith.addf %203, %207 : vector<64x256xf32>
    %209 = vector.extract_strided_slice %170 {offsets = [0, 18], sizes = [32, 256], strides = [1, 1]} : vector<32x290xbf16> to vector<32x256xbf16>
    %cst_110 = arith.constant 0.000000e+00 : bf16
    %210 = vector.broadcast %cst_110 : bf16 to vector<32x256xbf16>
    %211 = vector.shape_cast %20 : vector<1x256xi1> to vector<1x256xi1>
    %212 = vector.broadcast %211 : vector<1x256xi1> to vector<32x256xi1>
    %213 = arith.select %212, %209, %210 : vector<32x256xi1>, vector<32x256xbf16>
    %c5_111 = arith.constant 5 : index
    %c0_112 = arith.constant 0 : index
    %c0_113 = arith.constant 0 : index
    %214 = vector.load %arg4[%c5_111, %c0_112, %c0_113] : memref<9x64x32xbf16, #tpu.memory_space<vmem>>, vector<1x64x32xbf16>
    %215 = vector.shape_cast %214 : vector<1x64x32xbf16> to vector<64x32xbf16>
    %cst_114 = arith.constant dense<0.000000e+00> : vector<64x256xf32>
    %216 = tpu.matmul %215, %213, %cst_114 {dimension_numbers = #tpu.dot_dimension_numbers<[1], [0], [0], [1], [0, 0, 1, 1], [], []>} : vector<64x32xbf16>, vector<32x256xbf16>, vector<64x256xf32> -> vector<64x256xf32>
    %217 = arith.addf %208, %216 : vector<64x256xf32>
    %218 = vector.extract_strided_slice %170 {offsets = [0, 32], sizes = [32, 256], strides = [1, 1]} : vector<32x290xbf16> to vector<32x256xbf16>
    %cst_115 = arith.constant 0.000000e+00 : bf16
    %219 = vector.broadcast %cst_115 : bf16 to vector<32x256xbf16>
    %220 = vector.shape_cast %18 : vector<1x256xi1> to vector<1x256xi1>
    %221 = vector.broadcast %220 : vector<1x256xi1> to vector<32x256xi1>
    %222 = arith.select %221, %218, %219 : vector<32x256xi1>, vector<32x256xbf16>
    %c6_116 = arith.constant 6 : index
    %c0_117 = arith.constant 0 : index
    %c0_118 = arith.constant 0 : index
    %223 = vector.load %arg4[%c6_116, %c0_117, %c0_118] : memref<9x64x32xbf16, #tpu.memory_space<vmem>>, vector<1x64x32xbf16>
    %224 = vector.shape_cast %223 : vector<1x64x32xbf16> to vector<64x32xbf16>
    %cst_119 = arith.constant dense<0.000000e+00> : vector<64x256xf32>
    %225 = tpu.matmul %224, %222, %cst_119 {dimension_numbers = #tpu.dot_dimension_numbers<[1], [0], [0], [1], [0, 0, 1, 1], [], []>} : vector<64x32xbf16>, vector<32x256xbf16>, vector<64x256xf32> -> vector<64x256xf32>
    %226 = arith.addf %217, %225 : vector<64x256xf32>
    %227 = vector.extract_strided_slice %170 {offsets = [0, 33], sizes = [32, 256], strides = [1, 1]} : vector<32x290xbf16> to vector<32x256xbf16>
    %c7_120 = arith.constant 7 : index
    %c0_121 = arith.constant 0 : index
    %c0_122 = arith.constant 0 : index
    %228 = vector.load %arg4[%c7_120, %c0_121, %c0_122] : memref<9x64x32xbf16, #tpu.memory_space<vmem>>, vector<1x64x32xbf16>
    %229 = vector.shape_cast %228 : vector<1x64x32xbf16> to vector<64x32xbf16>
    %cst_123 = arith.constant dense<0.000000e+00> : vector<64x256xf32>
    %230 = tpu.matmul %229, %227, %cst_123 {dimension_numbers = #tpu.dot_dimension_numbers<[1], [0], [0], [1], [0, 0, 1, 1], [], []>} : vector<64x32xbf16>, vector<32x256xbf16>, vector<64x256xf32> -> vector<64x256xf32>
    %231 = arith.addf %226, %230 : vector<64x256xf32>
    %232 = vector.extract_strided_slice %170 {offsets = [0, 34], sizes = [32, 256], strides = [1, 1]} : vector<32x290xbf16> to vector<32x256xbf16>
    %cst_124 = arith.constant 0.000000e+00 : bf16
    %233 = vector.broadcast %cst_124 : bf16 to vector<32x256xbf16>
    %234 = vector.shape_cast %20 : vector<1x256xi1> to vector<1x256xi1>
    %235 = vector.broadcast %234 : vector<1x256xi1> to vector<32x256xi1>
    %236 = arith.select %235, %232, %233 : vector<32x256xi1>, vector<32x256xbf16>
    %c8_125 = arith.constant 8 : index
    %c0_126 = arith.constant 0 : index
    %c0_127 = arith.constant 0 : index
    %237 = vector.load %arg4[%c8_125, %c0_126, %c0_127] : memref<9x64x32xbf16, #tpu.memory_space<vmem>>, vector<1x64x32xbf16>
    %238 = vector.shape_cast %237 : vector<1x64x32xbf16> to vector<64x32xbf16>
    %cst_128 = arith.constant dense<0.000000e+00> : vector<64x256xf32>
    %239 = tpu.matmul %238, %236, %cst_128 {dimension_numbers = #tpu.dot_dimension_numbers<[1], [0], [0], [1], [0, 0, 1, 1], [], []>} : vector<64x32xbf16>, vector<32x256xbf16>, vector<64x256xf32> -> vector<64x256xf32>
    %240 = arith.addf %231, %239 : vector<64x256xf32>
    %c0_129 = arith.constant 0 : index
    %c0_130 = arith.constant 0 : index
    %c0_131 = arith.constant 0 : index
    %241 = vector.load %arg5[%c0_129, %c0_130, %c0_131] : memref<1x64x256xf32, #tpu.memory_space<vmem>>, vector<1x64x256xf32>
    %242 = vector.shape_cast %241 : vector<1x64x256xf32> to vector<64x256xf32>
    %243 = vector.shape_cast %240 : vector<64x256xf32> to vector<1x64x256xf32>
    tpu.vector_store %arg5[%c0_129, %c0_130, %c0_131], %243 {strides = array<i32>} : memref<1x64x256xf32, #tpu.memory_space<vmem>>, vector<1x64x256xf32>,
    return
  }
  func.func @transform_0(%arg0: i32) -> (i32, i32, i32) {
    %c0_i32 = arith.constant 0 : i32
    %c0_i32_0 = arith.constant 0 : i32
    %c0_i32_1 = arith.constant 0 : i32
    return %arg0, %c0_i32, %c0_i32_0 : i32, i32, i32
  }
  func.func @transform_1(%arg0: i32) -> (i32, i32, i32) {
    %c0_i32 = arith.constant 0 : i32
    %c0_i32_0 = arith.constant 0 : i32
    %c0_i32_1 = arith.constant 0 : i32
    %c0_i32_2 = arith.constant 0 : i32
    return %c0_i32, %c0_i32_0, %c0_i32_1 : i32, i32, i32
  }
  func.func @transform_2(%arg0: i32) -> (i32, i32, i32) {
    %c0_i32 = arith.constant 0 : i32
    %c0_i32_0 = arith.constant 0 : i32
    %c0_i32_1 = arith.constant 0 : i32
    %c0_i32_2 = arith.constant 0 : i32
    return %c0_i32, %c0_i32_0, %c0_i32_1 : i32, i32, i32
  }
  func.func @transform_3(%arg0: i32) -> (i32, i32, i32) {
    %c0_i32 = arith.constant 0 : i32
    %c0_i32_0 = arith.constant 0 : i32
    %c0_i32_1 = arith.constant 0 : i32
    %c0_i32_2 = arith.constant 0 : i32
    return %c0_i32, %c0_i32_0, %c0_i32_1 : i32, i32, i32
  }
  func.func @transform_4(%arg0: i32) -> (i32, i32, i32) {
    %c0_i32 = arith.constant 0 : i32
    %c0_i32_0 = arith.constant 0 : i32
    %c0_i32_1 = arith.constant 0 : i32
    return %arg0, %c0_i32, %c0_i32_0 : i32, i32, i32
  }
}

</mosaic_0001>

<llo_original>
// kernel: feature_hsi_forward.1
$region0: #{feature_hsi_forward.1}
  #allocation0 [shape = 'u32[]', space=smem, size = 0x4, offset = 0x4, fixed_abs, tag = 'smem constant byte address 0x4 - core index']
  #allocation1 [shape = 'u32[144,128]{1,0:T(1,128)}', space=vmem, size = 0x12000, scoped, tag = 'internal scratch']
  %s0 = inlined_call_operand.vmem [shape: bf16[2,4,256], index: 0, kind: input, shape index: {}]
  %s1 = inlined_call_operand.vmem [shape: bf16[9,16,4], index: 1, kind: input, shape index: {}]
  %s2 = inlined_call_operand.vmem [shape: bf16[9,32,16], index: 2, kind: input, shape index: {}]
  %s3 = inlined_call_operand.vmem [shape: bf16[9,64,32], index: 3, kind: input, shape index: {}]
  %s4 = inlined_call_operand.vmem [shape: f32[2,64,256], index: 4, kind: output, shape index: {}]
  %s5 = sld [smem:[#allocation0]]
  $region49: #{feature_hsi_forward.1} parent=0
    _
  %s7 = ssub.s32 1, %s5
  %s8 = scalar_select 0, %s7, %s5
  loop: start=0, step=1, limit=4
  $region2: #{feature_hsi_forward.1} parent=0 // loop_pre_header
    _
  $region3: #{feature_hsi_forward.1} parent=0 // loop_header
    %s10 = sphi 0, %s14
    %p11 = scmp.ge.s32.totalorder %s10, 4
    %s20 = sphi 0, %s22
    %s23 = sphi 0, %s20
    %s24 = sphi 0, %s23
    %s40 = sphi 0, %s24
    %s44 = sphi 0, %s44
    %s46 = sphi 0, %s44
    %s47 = sphi 0, %s46
    %s61 = sphi 0, %s47
    %s65 = sphi 0, %s65
    %s67 = sphi 0, %s65
    %s68 = sphi 0, %s67
    %s82 = sphi 0, %s68
    %s86 = sphi 0, %s86
    %s88 = sphi 0, %s86
    %s89 = sphi 0, %s88
    %s103 = sphi 0, %s89
    %s109 = sphi 0, %s111
    %s112 = sphi 0, %s109
    %s113 = sphi 0, %s112
    %s129 = sphi 0, %s113
  $region4: #{feature_hsi_forward.1} parent=0 // loop_header_branch
    %13 = sbr.rel (%p11) target = $region8
  $region5: #{feature_hsi_forward.1} parent=0 // loop_body
    %s15 = ssub.s32 %s10, 1
    %s16 = ssub.s32 %s10, 2
    %s17 = sadd.s32 %s10, 1
    %s18 = ssub.s32 %s10, %s17
    %p19 = scmp.eq.s32.totalorder %s18, 0
    %s21 = sadd.s32 %s20, 1
    %s22 = scalar_select %p19, %s20, %s21
    %p25 = pneg %p19
    %p26 = scmp.eq.s32.totalorder %s10, 1
    %p27 = por %p25, %p26
    %p28 = scmp.ne.s32.totalorder %s20, %s23
    %p29 = scmp.eq.s32.totalorder %s10, 0
    %p30 = por %p28, %p29
    %p31 = scmp.ne.s32.totalorder %s20, %s23
    %p32 = scmp.eq.s32.totalorder %s15, 1
    %p33 = por %p31, %p32
    %p34 = scmp.ne.s32.totalorder %s23, %s24
    %p35 = scmp.eq.s32.totalorder %s15, 0
    %p36 = por %p34, %p35
    %p37 = scmp.ne.s32.totalorder %s23, %s24
    %p38 = scmp.eq.s32.totalorder %s16, 1
    %p39 = por %p37, %p38
    %p41 = scmp.ne.s32.totalorder %s24, %s40
    %p42 = scmp.eq.s32.totalorder %s16, 0
    %p43 = por %p41, %p42
    %s45 = sadd.s32 %s44, 1
    %p48 = scmp.eq.s32.totalorder %s10, 1
    %p49 = scmp.ne.s32.totalorder %s44, %s46
    %p50 = scmp.eq.s32.totalorder %s10, 0
    %p51 = por %p49, %p50
    %p52 = scmp.ne.s32.totalorder %s44, %s46
    %p53 = scmp.eq.s32.totalorder %s15, 1
    %p54 = por %p52, %p53
    %p55 = scmp.ne.s32.totalorder %s46, %s47
    %p56 = scmp.eq.s32.totalorder %s15, 0
    %p57 = por %p55, %p56
    %p58 = scmp.ne.s32.totalorder %s46, %s47
    %p59 = scmp.eq.s32.totalorder %s16, 1
    %p60 = por %p58, %p59
    %p62 = scmp.ne.s32.totalorder %s47, %s61
    %p63 = scmp.eq.s32.totalorder %s16, 0
    %p64 = por %p62, %p63
    %s66 = sadd.s32 %s65, 1
    %p69 = scmp.eq.s32.totalorder %s10, 1
    %p70 = scmp.ne.s32.totalorder %s65, %s67
    %p71 = scmp.eq.s32.totalorder %s10, 0
    %p72 = por %p70, %p71
    %p73 = scmp.ne.s32.totalorder %s65, %s67
    %p74 = scmp.eq.s32.totalorder %s15, 1
    %p75 = por %p73, %p74
    %p76 = scmp.ne.s32.totalorder %s67, %s68
    %p77 = scmp.eq.s32.totalorder %s15, 0
    %p78 = por %p76, %p77
    %p79 = scmp.ne.s32.totalorder %s67, %s68
    %p80 = scmp.eq.s32.totalorder %s16, 1
    %p81 = por %p79, %p80
    %p83 = scmp.ne.s32.totalorder %s68, %s82
    %p84 = scmp.eq.s32.totalorder %s16, 0
    %p85 = por %p83, %p84
    %s87 = sadd.s32 %s86, 1
    %p90 = scmp.eq.s32.totalorder %s10, 1
    %p91 = scmp.ne.s32.totalorder %s86, %s88
    %p92 = scmp.eq.s32.totalorder %s10, 0
    %p93 = por %p91, %p92
    %p94 = scmp.ne.s32.totalorder %s86, %s88
    %p95 = scmp.eq.s32.totalorder %s15, 1
    %p96 = por %p94, %p95
    %p97 = scmp.ne.s32.totalorder %s88, %s89
    %p98 = scmp.eq.s32.totalorder %s15, 0
    %p99 = por %p97, %p98
    %p100 = scmp.ne.s32.totalorder %s88, %s89
    %p101 = scmp.eq.s32.totalorder %s16, 1
    %p102 = por %p100, %p101
    %p104 = scmp.ne.s32.totalorder %s89, %s103
    %p105 = scmp.eq.s32.totalorder %s16, 0
    %p106 = por %p104, %p105
    %s107 = ssub.s32 %s10, %s17
    %p108 = scmp.eq.s32.totalorder %s107, 0
    %s110 = sadd.s32 %s109, 1
    %s111 = scalar_select %p108, %s109, %s110
    %p114 = pneg %p108
    %p115 = scmp.eq.s32.totalorder %s10, 1
    %p116 = por %p114, %p115
    %p117 = scmp.ne.s32.totalorder %s109, %s112
    %p118 = scmp.eq.s32.totalorder %s10, 0
    %p119 = por %p117, %p118
    %p120 = scmp.ne.s32.totalorder %s109, %s112
    %p121 = scmp.eq.s32.totalorder %s15, 1
    %p122 = por %p120, %p121
    %p123 = scmp.ne.s32.totalorder %s112, %s113
    %p124 = scmp.eq.s32.totalorder %s15, 0
    %p125 = por %p123, %p124
    %p126 = scmp.ne.s32.totalorder %s112, %s113
    %p127 = scmp.eq.s32.totalorder %s16, 1
    %p128 = por %p126, %p127
    %p130 = scmp.ne.s32.totalorder %s113, %s129
    %p131 = scmp.eq.s32.totalorder %s16, 0
    %p132 = por %p130, %p131
    %p133 = scmp.le.s32.totalorder 1, %s10
    %p134 = scmp.lt.s32.totalorder %s10, 3
    %p135 = pnand %p133, %p134
    %p136 = pneg %p135
    // Predicated region
    $region9: #{feature_hsi_forward.1} parent=5 // pred_check
      _
    $region10: #{feature_hsi_forward.1} parent=5 // pred_check_branch
      %138 = sbr.rel (%p135) target = $region12
    $region11: #{feature_hsi_forward.1} parent=5 // pred_region
      %s139 = ssub.s32 %s10, 1
      // Predicated region
      $region13: #{feature_hsi_forward.1} parent=11 // pred_check
        %p140 = pneg %p57
      $region14: #{feature_hsi_forward.1} parent=11 // pred_check_branch
        %142 = sbr.rel (%p140) target = $region16
      $region15: #{feature_hsi_forward.1} parent=11 // pred_region
        _
      $region16: #{feature_hsi_forward.1} parent=11 // pred_fallthru
        _
      // Predicated region
      $region17: #{feature_hsi_forward.1} parent=11 // pred_check
        %p143 = pneg %p78
      $region18: #{feature_hsi_forward.1} parent=11 // pred_check_branch
        %145 = sbr.rel (%p143) target = $region20
      $region19: #{feature_hsi_forward.1} parent=11 // pred_region
        _
      $region20: #{feature_hsi_forward.1} parent=11 // pred_fallthru
        _
      // Predicated region
      $region21: #{feature_hsi_forward.1} parent=11 // pred_check
        %p146 = pneg %p99
      $region22: #{feature_hsi_forward.1} parent=11 // pred_check_branch
        %148 = sbr.rel (%p146) target = $region24
      $region23: #{feature_hsi_forward.1} parent=11 // pred_region
        _
      $region24: #{feature_hsi_forward.1} parent=11 // pred_fallthru
        _
    $region12: #{feature_hsi_forward.1} parent=5 // pred_fallthru
      _
    %p149 = scmp.lt.s32.totalorder %s10, 2
    // Predicated region
    $region25: #{feature_hsi_forward.1} parent=5 // pred_check
      %p150 = pneg %p149
    $region26: #{feature_hsi_forward.1} parent=5 // pred_check_branch
      %152 = sbr.rel (%p150) target = $region28
    $region27: #{feature_hsi_forward.1} parent=5 // pred_region
      // Predicated region
      $region29: #{feature_hsi_forward.1} parent=27 // pred_check
        %p153 = pneg %p30
      $region30: #{feature_hsi_forward.1} parent=27 // pred_check_branch
        %155 = sbr.rel (%p153) target = $region32
      $region31: #{feature_hsi_forward.1} parent=27 // pred_region
        %p156 = scmp.lt.s32.totalorder %s10, 1
        %s157 = scalar_select %p156, %s10, 1
        %s158 = smul.addr %s157, 2
        %s159 = smul.addr %s158, 2
        %s160 = scalar_lea.vmem %s0, %s159
      $region32: #{feature_hsi_forward.1} parent=27 // pred_fallthru
        _
    $region28: #{feature_hsi_forward.1} parent=5 // pred_fallthru
      _
    %p161 = scmp.le.s32.totalorder 1, %s10
    %p162 = scmp.lt.s32.totalorder %s10, 3
    %p163 = pnand %p161, %p162
    %p164 = pneg %p163
    // Predicated region
    $region33: #{feature_hsi_forward.1} parent=5 // pred_check
      _
    $region34: #{feature_hsi_forward.1} parent=5 // pred_check_branch
      %166 = sbr.rel (%p163) target = $region36
    $region35: #{feature_hsi_forward.1} parent=5 // pred_region
      %s167 = ssub.s32 %s10, 1
      %p168 = scmp.lt.s32.totalorder %s15, 1
      %s169 = scalar_select %p168, %s15, 1
      %s170 = smul.addr %s169, 2
      %s171 = smul.addr %s170, 2
      %s172 = scalar_lea.vmem %s0, %s171
      %p173 = pneg %p36
      %p174 = pneg %p33
      %p175 = pneg %p57
      %p176 = pneg %p54
      %p177 = pneg %p78
      %p178 = pneg %p75
      %p179 = pneg %p99
      %p180 = pneg %p96
      %p181 = pneg %p125
      %p182 = pneg %p122
      %p183 = scmp.lt.s32.totalorder %s15, 1
      %s184 = scalar_select %p183, %s15, 1
      %s185 = smul.addr %s184, 16
      %s186 = smul.addr %s185, 8
      %s187 = scalar_lea.vmem %s4, %s186
      %p188 = scmp.lt.s32.totalorder %s15, 1
      %s189 = scalar_select %p188, %s15, 1
      %s190 = smul.addr %s189, 2
      %s191 = smul.addr %s190, 2
      %s192 = scalar_lea.vmem %s0, %s191
      %p193 = scmp.lt.s32.totalorder %s15, 1
      %s194 = scalar_select %p193, %s15, 1
      %s195 = smul.addr %s194, 16
      %s196 = smul.addr %s195, 8
      %s197 = scalar_lea.vmem %s4, %s196
      %v201 = vlaneseq
      %v202 = vand.u32 %v201, 127
      %v203 = vadd.s32 %v202, 128
      %vm204 = vcmp.lt.s32.totalorder %v202, 0
      %v205 = vsub.s32 0, %v202
      %v206 = vsel %vm204, %v205, %v202
      %v207 = vshrl.u32 %v206, 4
      %v208 = vand.u32 %v206, 15
      %v209 = vsub.s32 0, %v208
      %v210 = vsel %vm204, %v209, %v208
      %vm211 = vcmp.lt.s32.totalorder %v203, 0
      %v212 = vsub.s32 0, %v203
      %v213 = vsel %vm211, %v212, %v203
      %v214 = vshrl.u32 %v213, 4
      %v215 = vand.u32 %v213, 15
      %v216 = vsub.s32 0, %v215
      %v217 = vsel %vm211, %v216, %v215
      %vm218 = vcmp.ne.s32.totalorder %v210, 0
      %vm219 = vcmp.ne.s32.totalorder %v217, 0
      %vm220 = vcmp.lt.s32.totalorder %v210, 0
      %vm221 = vcmp.lt.s32.totalorder %v217, 0
      %vm222 = vmand %vm220, %vm218
      %vm223 = vmand %vm221, %vm219
      %v224 = vadd.s32 %v210, 16
      %v225 = vadd.s32 %v217, 16
      %v226 = vsel %vm222, %v224, %v210
      %v227 = vsel %vm223, %v225, %v217
      %vm228 = vcmp.ge.s32.totalorder %v226, 1
      %vm229 = vcmp.ge.s32.totalorder %v227, 1
      %vm230 = vcmp.le.s32.totalorder %v226, 14
      %vm231 = vcmp.le.s32.totalorder %v227, 14
      %v232 = vld [vmem:[%s192] sm:$0xf]
      %v235 = vunpack.c.l.s4 1983009808
      %v236 = vunpack.c.0.s8 %v235
      %v237 = vlaneseq
      %v238 = vshrl.u32 %v237, 7
      %v239 = vsub.s32 %v236, %v238
      %v240 = vrot.slane %v232, %v239
      %v241 = vcombine.high %v240, %v240
      %242 = vrot.lane.b32.xlu0 %v240, 17
      %v243 = vpop.permute.xlu0 %242
      %244 = vrot.lane.b32.xlu0 %v241, 17
      %v245 = vpop.permute.xlu0 %244
      %vm246 = vcmask 138240
      %v247 = vsel %vm246, %v243, %v245
      %vm249 = vcmask 138240
      %v252 = vsel %vm249, 0, %v243
      %v255 = vsel %vm249, %v245, 0
      %v257 = vsel %vm228, 1, 0
      %v258 = vsel %vm229, 1, 0
      %vm259 = vcmp.eq.s32.totalorder %v257, 1
      %vm260 = vcmp.eq.s32.totalorder %v258, 1
      %vm261 = vmpackc.low %vm260, %vm259
      %v262 = vsel %vm261, 65537, 0
      %v263 = vlaneseq
      %v264 = vshrl.u32 %v263, 7
      %v265 = vsub.s32 0, %v264
      %v266 = vrot.slane %v262, %v265
      %v267 = vlaneseq
      %v268 = vshrl.u32 %v267, 7
      %v269 = vsub.s32 4, %v268
      %v270 = vrot.slane %v262, %v269
      %vm271 = vcmp.ne.s16.totalorder %v266, 0
      %vm272 = vcmp.ne.s16.totalorder %v270, 0
      %v273 = vsel %vm271, %v252, 0
      %v274 = vsel %vm272, %v247, 0
      %v275 = vld [vmem:[%s1] sm:$0xf]
      %v276 = vld [vmem:[%s1 + $0x4] sm:$0xf]
      %s277 = scalar_lea.vmem %s1, 8
      %v278 = vld [vmem:[%s277] sm:$0xf]
      %v279 = vld [vmem:[%s277 + $0x4] sm:$0xf]
      %v282 = vunpack.c.l.b16 %v278
      %v283 = vunpack.c.l.b16 %v279
      %v284 = vpack.c.b16 %v283, %v282
      %287 = vrot.lane.b32.xlu0 %v252, 127
      %v288 = vpop.permute.xlu0 %287
      %289 = vrot.lane.b32.xlu0 %v247, 127
      %v290 = vpop.permute.xlu0 %289
      %291 = vrot.lane.b32.xlu0 %v255, 127
      %v292 = vpop.permute.xlu0 %291
      %vm293 = vcmask 1039360
      %v294 = vsel %vm293, %v288, %v290
      %v295 = vsel %vm293, %v290, %v292
      %vm296 = vcmask 31744
      %v298 = vsel %vm296, %v284, 0
      %vm300 = vcmask 1041408
      %v302 = vsel %vm300, %v294, 0
      %v305 = vsel %vm300, %v295, 0
      %307 = vmatprep.subr.bf16.mxu0 %v305
      %308 = vmatpush1.bf16.msra.mxu0 %v302
      %309 = vmatprep.subr.bf16.mxu0 0
      %310 = vmatpush1.bf16.msra.mxu0 0
      %311 = vmatprep.subr.bf16.mxu0 0
      %312 = vmatpush1.bf16.msra.mxu0 0
      %313 = vmatprep.subr.bf16.mxu0 0
      %314 = vmatpush1.bf16.msra.mxu0 0
      %315 = vmatprep.subr.bf16.mxu0 0
      %316 = vmatpush1.bf16.msra.mxu0 0
      %317 = vmatprep.subr.bf16.mxu0 0
      %318 = vmatpush1.bf16.msra.mxu0 0
      %319 = vmatprep.subr.bf16.mxu0 0
      %320 = vmatpush1.bf16.msra.mxu0 0
      %321 = vmatprep.subr.bf16.mxu0 0
      %322 = vmatpush1.bf16.msra.mxu0 0
      %323 = vmatprep.subr.bf16.mxu0 0
      %324 = vmatpush1.bf16.msra.mxu0 0
      %325 = vmatprep.subr.bf16.mxu0 0
      %326 = vmatpush1.bf16.msra.mxu0 0
      %327 = vmatprep.subr.bf16.mxu0 0
      %328 = vmatpush1.bf16.msra.mxu0 0
      %329 = vmatprep.subr.bf16.mxu0 0
      %330 = vmatpush1.bf16.msra.mxu0 0
      %331 = vmatprep.subr.bf16.mxu0 0
      %332 = vmatpush1.bf16.msra.mxu0 0
      %333 = vmatprep.subr.bf16.mxu0 0
      %334 = vmatpush1.bf16.msra.mxu0 0
      %335 = vmatprep.subr.bf16.mxu0 0
      %336 = vmatpush1.bf16.msra.mxu0 0
      %337 = vmatprep.subr.bf16.mxu0 0
      %338 = vmatpush1.bf16.msra.mxu0 0
      %339 = vmatprep.mubr.bf16.mxu0 0
      %340 = vmatmul.mubr.bf16.gmra.mrb[0].mxu0 %v298
      %v341 = vpop.f32.mrb[0].mxu0
      %v342 = vadd.f32 0.0, %v341
      %v343 = vpop.f32.mrb[0].mxu0
      %v344 = vadd.f32 0.0, %v343
      %v345 = vpop.f32.mrb[0].mxu0
      %v346 = vadd.f32 0.0, %v345
      %v347 = vpop.f32.mrb[0].mxu0
      %v348 = vadd.f32 0.0, %v347
      %349 = vdwg.mxu0
      %v352 = vunpack.c.l.b16 %v275
      %v353 = vunpack.c.l.b16 %v276
      %v354 = vpack.c.b16 %v353, %v352
      %v356 = vsel %vm296, %v354, 0
      %v359 = vsel %vm300, %v273, 0
      %v362 = vsel %vm300, %v274, 0
      %364 = vmatprep.subr.bf16.mxu0 %v362
      %365 = vmatpush1.bf16.msra.mxu0 %v359
      %366 = vmatprep.subr.bf16.mxu0 0
      %367 = vmatpush1.bf16.msra.mxu0 0
      %368 = vmatprep.subr.bf16.mxu0 0
      %369 = vmatpush1.bf16.msra.mxu0 0
      %370 = vmatprep.subr.bf16.mxu0 0
      %371 = vmatpush1.bf16.msra.mxu0 0
      %372 = vmatprep.subr.bf16.mxu0 0
      %373 = vmatpush1.bf16.msra.mxu0 0
      %374 = vmatprep.subr.bf16.mxu0 0
      %375 = vmatpush1.bf16.msra.mxu0 0
      %376 = vmatprep.subr.bf16.mxu0 0
      %377 = vmatpush1.bf16.msra.mxu0 0
      %378 = vmatprep.subr.bf16.mxu0 0
      %379 = vmatpush1.bf16.msra.mxu0 0
      %380 = vmatprep.subr.bf16.mxu0 0
      %381 = vmatpush1.bf16.msra.mxu0 0
      %382 = vmatprep.subr.bf16.mxu0 0
      %383 = vmatpush1.bf16.msra.mxu0 0
      %384 = vmatprep.subr.bf16.mxu0 0
      %385 = vmatpush1.bf16.msra.mxu0 0
      %386 = vmatprep.subr.bf16.mxu0 0
      %387 = vmatpush1.bf16.msra.mxu0 0
      %388 = vmatprep.subr.bf16.mxu0 0
      %389 = vmatpush1.bf16.msra.mxu0 0
      %390 = vmatprep.subr.bf16.mxu0 0
      %391 = vmatpush1.bf16.msra.mxu0 0
      %392 = vmatprep.subr.bf16.mxu0 0
      %393 = vmatpush1.bf16.msra.mxu0 0
      %394 = vmatprep.subr.bf16.mxu0 0
      %395 = vmatpush1.bf16.msra.mxu0 0
      %396 = vmatprep.mubr.bf16.mxu0 0
      %397 = vmatmul.mubr.bf16.gmra.mrb[0].mxu0 %v356
      %v398 = vpop.f32.mrb[0].mxu0
      %v399 = vadd.f32 %v342, %v398
      %v400 = vpop.f32.mrb[0].mxu0
      %v401 = vadd.f32 %v344, %v400
      %v402 = vpop.f32.mrb[0].mxu0
      %v403 = vadd.f32 %v346, %v402
      %v404 = vpop.f32.mrb[0].mxu0
      %v405 = vadd.f32 %v348, %v404
      %406 = vdwg.mxu0
      %v407 = vsel %vm230, 1, 0
      %v408 = vsel %vm231, 1, 0
      %vm409 = vcmp.eq.s32.totalorder %v407, 1
      %vm410 = vcmp.eq.s32.totalorder %v408, 1
      %vm411 = vmpackc.low %vm410, %vm409
      %v412 = vsel %vm411, 65537, 0
      %v413 = vlaneseq
      %v414 = vshrl.u32 %v413, 7
      %v415 = vsub.s32 0, %v414
      %v416 = vrot.slane %v412, %v415
      %v417 = vlaneseq
      %v418 = vshrl.u32 %v417, 7
      %v419 = vsub.s32 4, %v418
      %v420 = vrot.slane %v412, %v419
      %421 = vrot.lane.b32.xlu0 %v416, 2
      %v422 = vpop.permute.xlu0 %421
      %423 = vrot.lane.b32.xlu0 %v420, 2
      %v424 = vpop.permute.xlu0 %423
      %vm425 = vcmask 15360
      %v426 = vsel %vm425, %v422, %v424
      %vm427 = vcmp.ne.s16.totalorder %v422, 0
      %vm428 = vcmp.ne.s16.totalorder %v426, 0
      %vm429 = vcmp.ne.s16.totalorder %v424, 0
      %v430 = vsel %vm427, %v252, 0
      %v431 = vsel %vm428, %v247, 0
      %v432 = vsel %vm429, %v255, 0
      %s433 = scalar_lea.vmem %s1, 16
      %v434 = vld [vmem:[%s433] sm:$0xf]
      %v435 = vld [vmem:[%s433 + $0x4] sm:$0xf]
      %v438 = vunpack.c.l.b16 %v434
      %v439 = vunpack.c.l.b16 %v435
      %v440 = vpack.c.b16 %v439, %v438
      %444 = vrot.lane.b32.xlu0 %v430, 126
      %v445 = vpop.permute.xlu0 %444
      %446 = vrot.lane.b32.xlu0 %v431, 126
      %v447 = vpop.permute.xlu0 %446
      %448 = vrot.lane.b32.xlu0 %v432, 126
      %v449 = vpop.permute.xlu0 %448
      %vm450 = vcmask 1031168
      %v451 = vsel %vm450, %v445, %v447
      %v452 = vsel %vm450, %v447, %v449
      %v454 = vsel %vm296, %v440, 0
      %v457 = vsel %vm300, %v451, 0
      %v460 = vsel %vm300, %v452, 0
      %462 = vmatprep.subr.bf16.mxu0 %v460
      %463 = vmatpush1.bf16.msra.mxu0 %v457
      %464 = vmatprep.subr.bf16.mxu0 0
      %465 = vmatpush1.bf16.msra.mxu0 0
      %466 = vmatprep.subr.bf16.mxu0 0
      %467 = vmatpush1.bf16.msra.mxu0 0
      %468 = vmatprep.subr.bf16.mxu0 0
      %469 = vmatpush1.bf16.msra.mxu0 0
      %470 = vmatprep.subr.bf16.mxu0 0
      %471 = vmatpush1.bf16.msra.mxu0 0
      %472 = vmatprep.subr.bf16.mxu0 0
      %473 = vmatpush1.bf16.msra.mxu0 0
      %474 = vmatprep.subr.bf16.mxu0 0
      %475 = vmatpush1.bf16.msra.mxu0 0
      %476 = vmatprep.subr.bf16.mxu0 0
      %477 = vmatpush1.bf16.msra.mxu0 0
      %478 = vmatprep.subr.bf16.mxu0 0
      %479 = vmatpush1.bf16.msra.mxu0 0
      %480 = vmatprep.subr.bf16.mxu0 0
      %481 = vmatpush1.bf16.msra.mxu0 0
      %482 = vmatprep.subr.bf16.mxu0 0
      %483 = vmatpush1.bf16.msra.mxu0 0
      %484 = vmatprep.subr.bf16.mxu0 0
      %485 = vmatpush1.bf16.msra.mxu0 0
      %486 = vmatprep.subr.bf16.mxu0 0
      %487 = vmatpush1.bf16.msra.mxu0 0
      %488 = vmatprep.subr.bf16.mxu0 0
      %489 = vmatpush1.bf16.msra.mxu0 0
      %490 = vmatprep.subr.bf16.mxu0 0
      %491 = vmatpush1.bf16.msra.mxu0 0
      %492 = vmatprep.subr.bf16.mxu0 0
      %493 = vmatpush1.bf16.msra.mxu0 0
      %494 = vmatprep.mubr.bf16.mxu0 0
      %495 = vmatmul.mubr.bf16.gmra.mrb[0].mxu0 %v454
      %v496 = vpop.f32.mrb[0].mxu0
      %v497 = vadd.f32 0.0, %v496
      %v498 = vpop.f32.mrb[0].mxu0
      %v499 = vadd.f32 0.0, %v498
      %v500 = vpop.f32.mrb[0].mxu0
      %v501 = vadd.f32 0.0, %v500
      %v502 = vpop.f32.mrb[0].mxu0
      %v503 = vadd.f32 0.0, %v502
      %504 = vdwg.mxu0
      %v505 = vadd.f32 %v399, %v497
      %v506 = vadd.f32 %v401, %v499
      %v507 = vadd.f32 %v403, %v501
      %v508 = vadd.f32 %v405, %v503
      %509 = vrot.lane.b32.xlu0 %v266, 16
      %v510 = vpop.permute.xlu0 %509
      %511 = vrot.lane.b32.xlu0 %v270, 16
      %v512 = vpop.permute.xlu0 %511
      %vm513 = vcmask 130048
      %v514 = vsel %vm513, %v510, %v512
      %vm515 = vcmp.ne.s16.totalorder %v510, 0
      %vm516 = vcmp.ne.s16.totalorder %v514, 0
      %vm517 = vcmp.ne.s16.totalorder %v512, 0
      %v518 = vsel %vm515, %v252, 0
      %v519 = vsel %vm516, %v247, 0
      %v520 = vsel %vm517, %v255, 0
      %s521 = scalar_lea.vmem %s1, 24
      %v522 = vld [vmem:[%s521] sm:$0xf]
      %v523 = vld [vmem:[%s521 + $0x4] sm:$0xf]
      %v526 = vunpack.c.l.b16 %v522
      %v527 = vunpack.c.l.b16 %v523
      %v528 = vpack.c.b16 %v527, %v526
      %532 = vrot.lane.b32.xlu0 %v518, 112
      %v533 = vpop.permute.xlu0 %532
      %534 = vrot.lane.b32.xlu0 %v519, 112
      %v535 = vpop.permute.xlu0 %534
      %536 = vrot.lane.b32.xlu0 %v520, 112
      %v537 = vpop.permute.xlu0 %536
      %vm538 = vcmask 916480
      %v539 = vsel %vm538, %v533, %v535
      %v540 = vsel %vm538, %v535, %v537
      %v542 = vsel %vm296, %v528, 0
      %v545 = vsel %vm300, %v539, 0
      %v548 = vsel %vm300, %v540, 0
      %550 = vmatprep.subr.bf16.mxu0 %v548
      %551 = vmatpush1.bf16.msra.mxu0 %v545
      %552 = vmatprep.subr.bf16.mxu0 0
      %553 = vmatpush1.bf16.msra.mxu0 0
      %554 = vmatprep.subr.bf16.mxu0 0
      %555 = vmatpush1.bf16.msra.mxu0 0
      %556 = vmatprep.subr.bf16.mxu0 0
      %557 = vmatpush1.bf16.msra.mxu0 0
      %558 = vmatprep.subr.bf16.mxu0 0
      %559 = vmatpush1.bf16.msra.mxu0 0
      %560 = vmatprep.subr.bf16.mxu0 0
      %561 = vmatpush1.bf16.msra.mxu0 0
      %562 = vmatprep.subr.bf16.mxu0 0
      %563 = vmatpush1.bf16.msra.mxu0 0
      %564 = vmatprep.subr.bf16.mxu0 0
      %565 = vmatpush1.bf16.msra.mxu0 0
      %566 = vmatprep.subr.bf16.mxu0 0
      %567 = vmatpush1.bf16.msra.mxu0 0
      %568 = vmatprep.subr.bf16.mxu0 0
      %569 = vmatpush1.bf16.msra.mxu0 0
      %570 = vmatprep.subr.bf16.mxu0 0
      %571 = vmatpush1.bf16.msra.mxu0 0
      %572 = vmatprep.subr.bf16.mxu0 0
      %573 = vmatpush1.bf16.msra.mxu0 0
      %574 = vmatprep.subr.bf16.mxu0 0
      %575 = vmatpush1.bf16.msra.mxu0 0
      %576 = vmatprep.subr.bf16.mxu0 0
      %577 = vmatpush1.bf16.msra.mxu0 0
      %578 = vmatprep.subr.bf16.mxu0 0
      %579 = vmatpush1.bf16.msra.mxu0 0
      %580 = vmatprep.subr.bf16.mxu0 0
      %581 = vmatpush1.bf16.msra.mxu0 0
      %582 = vmatprep.mubr.bf16.mxu0 0
      %583 = vmatmul.mubr.bf16.gmra.mrb[0].mxu0 %v542
      %v584 = vpop.f32.mrb[0].mxu0
      %v585 = vadd.f32 0.0, %v584
      %v586 = vpop.f32.mrb[0].mxu0
      %v587 = vadd.f32 0.0, %v586
      %v588 = vpop.f32.mrb[0].mxu0
      %v589 = vadd.f32 0.0, %v588
      %v590 = vpop.f32.mrb[0].mxu0
      %v591 = vadd.f32 0.0, %v590
      %592 = vdwg.mxu0
      %v593 = vadd.f32 %v505, %v585
      %v594 = vadd.f32 %v506, %v587
      %v595 = vadd.f32 %v507, %v589
      %v596 = vadd.f32 %v508, %v591
      %s597 = scalar_lea.vmem %s1, 32
      %v598 = vld [vmem:[%s597] sm:$0xf]
      %v599 = vld [vmem:[%s597 + $0x4] sm:$0xf]
      %v602 = vunpack.c.l.b16 %v598
      %v603 = vunpack.c.l.b16 %v599
      %v604 = vpack.c.b16 %v603, %v602
      %605 = vrot.lane.b32.xlu0 %v252, 111
      %v606 = vpop.permute.xlu0 %605
      %607 = vrot.lane.b32.xlu0 %v247, 111
      %v608 = vpop.permute.xlu0 %607
      %609 = vrot.lane.b32.xlu0 %v255, 111
      %v610 = vpop.permute.xlu0 %609
      %vm611 = vcmask 908288
      %v612 = vsel %vm611, %v606, %v608
      %v613 = vsel %vm611, %v608, %v610
      %v615 = vsel %vm296, %v604, 0
      %v618 = vsel %vm300, %v612, 0
      %v621 = vsel %vm300, %v613, 0
      %623 = vmatprep.subr.bf16.mxu0 %v621
      %624 = vmatpush1.bf16.msra.mxu0 %v618
      %625 = vmatprep.subr.bf16.mxu0 0
      %626 = vmatpush1.bf16.msra.mxu0 0
      %627 = vmatprep.subr.bf16.mxu0 0
      %628 = vmatpush1.bf16.msra.mxu0 0
      %629 = vmatprep.subr.bf16.mxu0 0
      %630 = vmatpush1.bf16.msra.mxu0 0
      %631 = vmatprep.subr.bf16.mxu0 0
      %632 = vmatpush1.bf16.msra.mxu0 0
      %633 = vmatprep.subr.bf16.mxu0 0
      %634 = vmatpush1.bf16.msra.mxu0 0
      %635 = vmatprep.subr.bf16.mxu0 0
      %636 = vmatpush1.bf16.msra.mxu0 0
      %637 = vmatprep.subr.bf16.mxu0 0
      %638 = vmatpush1.bf16.msra.mxu0 0
      %639 = vmatprep.subr.bf16.mxu0 0
      %640 = vmatpush1.bf16.msra.mxu0 0
      %641 = vmatprep.subr.bf16.mxu0 0
      %642 = vmatpush1.bf16.msra.mxu0 0
      %643 = vmatprep.subr.bf16.mxu0 0
      %644 = vmatpush1.bf16.msra.mxu0 0
      %645 = vmatprep.subr.bf16.mxu0 0
      %646 = vmatpush1.bf16.msra.mxu0 0
      %647 = vmatprep.subr.bf16.mxu0 0
      %648 = vmatpush1.bf16.msra.mxu0 0
      %649 = vmatprep.subr.bf16.mxu0 0
      %650 = vmatpush1.bf16.msra.mxu0 0
      %651 = vmatprep.subr.bf16.mxu0 0
      %652 = vmatpush1.bf16.msra.mxu0 0
      %653 = vmatprep.subr.bf16.mxu0 0
      %654 = vmatpush1.bf16.msra.mxu0 0
      %655 = vmatprep.mubr.bf16.mxu0 0
      %656 = vmatmul.mubr.bf16.gmra.mrb[0].mxu0 %v615
      %v657 = vpop.f32.mrb[0].mxu0
      %v658 = vadd.f32 0.0, %v657
      %v659 = vpop.f32.mrb[0].mxu0
      %v660 = vadd.f32 0.0, %v659
      %v661 = vpop.f32.mrb[0].mxu0
      %v662 = vadd.f32 0.0, %v661
      %v663 = vpop.f32.mrb[0].mxu0
      %v664 = vadd.f32 0.0, %v663
      %665 = vdwg.mxu0
      %v666 = vadd.f32 %v593, %v658
      %v667 = vadd.f32 %v594, %v660
      %v668 = vadd.f32 %v595, %v662
      %v669 = vadd.f32 %v596, %v664
      %670 = vrot.lane.b32.xlu0 %v416, 18
      %v671 = vpop.permute.xlu0 %670
      %672 = vrot.lane.b32.xlu0 %v420, 18
      %v673 = vpop.permute.xlu0 %672
      %vm674 = vcmask 146432
      %v675 = vsel %vm674, %v671, %v673
      %vm676 = vcmp.ne.s16.totalorder %v671, 0
      %vm677 = vcmp.ne.s16.totalorder %v675, 0
      %vm678 = vcmp.ne.s16.totalorder %v673, 0
      %v679 = vsel %vm676, %v252, 0
      %v680 = vsel %vm677, %v247, 0
      %v681 = vsel %vm678, %v255, 0
      %s682 = scalar_lea.vmem %s1, 40
      %v683 = vld [vmem:[%s682] sm:$0xf]
      %v684 = vld [vmem:[%s682 + $0x4] sm:$0xf]
      %v687 = vunpack.c.l.b16 %v683
      %v688 = vunpack.c.l.b16 %v684
      %v689 = vpack.c.b16 %v688, %v687
      %693 = vrot.lane.b32.xlu0 %v679, 110
      %v694 = vpop.permute.xlu0 %693
      %695 = vrot.lane.b32.xlu0 %v680, 110
      %v696 = vpop.permute.xlu0 %695
      %697 = vrot.lane.b32.xlu0 %v681, 110
      %v698 = vpop.permute.xlu0 %697
      %vm699 = vcmask 900096
      %v700 = vsel %vm699, %v694, %v696
      %v701 = vsel %vm699, %v696, %v698
      %v703 = vsel %vm296, %v689, 0
      %v706 = vsel %vm300, %v700, 0
      %v709 = vsel %vm300, %v701, 0
      %711 = vmatprep.subr.bf16.mxu0 %v709
      %712 = vmatpush1.bf16.msra.mxu0 %v706
      %713 = vmatprep.subr.bf16.mxu0 0
      %714 = vmatpush1.bf16.msra.mxu0 0
      %715 = vmatprep.subr.bf16.mxu0 0
      %716 = vmatpush1.bf16.msra.mxu0 0
      %717 = vmatprep.subr.bf16.mxu0 0
      %718 = vmatpush1.bf16.msra.mxu0 0
      %719 = vmatprep.subr.bf16.mxu0 0
      %720 = vmatpush1.bf16.msra.mxu0 0
      %721 = vmatprep.subr.bf16.mxu0 0
      %722 = vmatpush1.bf16.msra.mxu0 0
      %723 = vmatprep.subr.bf16.mxu0 0
      %724 = vmatpush1.bf16.msra.mxu0 0
      %725 = vmatprep.subr.bf16.mxu0 0
      %726 = vmatpush1.bf16.msra.mxu0 0
      %727 = vmatprep.subr.bf16.mxu0 0
      %728 = vmatpush1.bf16.msra.mxu0 0
      %729 = vmatprep.subr.bf16.mxu0 0
      %730 = vmatpush1.bf16.msra.mxu0 0
      %731 = vmatprep.subr.bf16.mxu0 0
      %732 = vmatpush1.bf16.msra.mxu0 0
      %733 = vmatprep.subr.bf16.mxu0 0
      %734 = vmatpush1.bf16.msra.mxu0 0
      %735 = vmatprep.subr.bf16.mxu0 0
      %736 = vmatpush1.bf16.msra.mxu0 0
      %737 = vmatprep.subr.bf16.mxu0 0
      %738 = vmatpush1.bf16.msra.mxu0 0
      %739 = vmatprep.subr.bf16.mxu0 0
      %740 = vmatpush1.bf16.msra.mxu0 0
      %741 = vmatprep.subr.bf16.mxu0 0
      %742 = vmatpush1.bf16.msra.mxu0 0
      %743 = vmatprep.mubr.bf16.mxu0 0
      %744 = vmatmul.mubr.bf16.gmra.mrb[0].mxu0 %v703
      %v745 = vpop.f32.mrb[0].mxu0
      %v746 = vadd.f32 0.0, %v745
      %v747 = vpop.f32.mrb[0].mxu0
      %v748 = vadd.f32 0.0, %v747
      %v749 = vpop.f32.mrb[0].mxu0
      %v750 = vadd.f32 0.0, %v749
      %v751 = vpop.f32.mrb[0].mxu0
      %v752 = vadd.f32 0.0, %v751
      %753 = vdwg.mxu0
      %v754 = vadd.f32 %v666, %v746
      %v755 = vadd.f32 %v667, %v748
      %v756 = vadd.f32 %v668, %v750
      %v757 = vadd.f32 %v669, %v752
      %758 = vrot.lane.b32.xlu0 %v266, 32
      %v759 = vpop.permute.xlu0 %758
      %760 = vrot.lane.b32.xlu0 %v270, 32
      %v761 = vpop.permute.xlu0 %760
      %vm762 = vcmask 261120
      %v763 = vsel %vm762, %v759, %v761
      %vm764 = vcmp.ne.s16.totalorder %v759, 0
      %vm765 = vcmp.ne.s16.totalorder %v763, 0
      %vm766 = vcmp.ne.s16.totalorder %v761, 0
      %v767 = vsel %vm764, %v252, 0
      %v768 = vsel %vm765, %v247, 0
      %v769 = vsel %vm766, %v255, 0
      %s770 = scalar_lea.vmem %s1, 48
      %v771 = vld [vmem:[%s770] sm:$0xf]
      %v772 = vld [vmem:[%s770 + $0x4] sm:$0xf]
      %v775 = vunpack.c.l.b16 %v771
      %v776 = vunpack.c.l.b16 %v772
      %v777 = vpack.c.b16 %v776, %v775
      %781 = vrot.lane.b32.xlu0 %v767, 96
      %v782 = vpop.permute.xlu0 %781
      %783 = vrot.lane.b32.xlu0 %v768, 96
      %v784 = vpop.permute.xlu0 %783
      %785 = vrot.lane.b32.xlu0 %v769, 96
      %v786 = vpop.permute.xlu0 %785
      %vm787 = vcmask 785408
      %v788 = vsel %vm787, %v782, %v784
      %v789 = vsel %vm787, %v784, %v786
      %v791 = vsel %vm296, %v777, 0
      %v794 = vsel %vm300, %v788, 0
      %v797 = vsel %vm300, %v789, 0
      %799 = vmatprep.subr.bf16.mxu0 %v797
      %800 = vmatpush1.bf16.msra.mxu0 %v794
      %801 = vmatprep.subr.bf16.mxu0 0
      %802 = vmatpush1.bf16.msra.mxu0 0
      %803 = vmatprep.subr.bf16.mxu0 0
      %804 = vmatpush1.bf16.msra.mxu0 0
      %805 = vmatprep.subr.bf16.mxu0 0
      %806 = vmatpush1.bf16.msra.mxu0 0
      %807 = vmatprep.subr.bf16.mxu0 0
      %808 = vmatpush1.bf16.msra.mxu0 0
      %809 = vmatprep.subr.bf16.mxu0 0
      %810 = vmatpush1.bf16.msra.mxu0 0
      %811 = vmatprep.subr.bf16.mxu0 0
      %812 = vmatpush1.bf16.msra.mxu0 0
      %813 = vmatprep.subr.bf16.mxu0 0
      %814 = vmatpush1.bf16.msra.mxu0 0
      %815 = vmatprep.subr.bf16.mxu0 0
      %816 = vmatpush1.bf16.msra.mxu0 0
      %817 = vmatprep.subr.bf16.mxu0 0
      %818 = vmatpush1.bf16.msra.mxu0 0
      %819 = vmatprep.subr.bf16.mxu0 0
      %820 = vmatpush1.bf16.msra.mxu0 0
      %821 = vmatprep.subr.bf16.mxu0 0
      %822 = vmatpush1.bf16.msra.mxu0 0
      %823 = vmatprep.subr.bf16.mxu0 0
      %824 = vmatpush1.bf16.msra.mxu0 0
      %825 = vmatprep.subr.bf16.mxu0 0
      %826 = vmatpush1.bf16.msra.mxu0 0
      %827 = vmatprep.subr.bf16.mxu0 0
      %828 = vmatpush1.bf16.msra.mxu0 0
      %829 = vmatprep.subr.bf16.mxu0 0
      %830 = vmatpush1.bf16.msra.mxu0 0
      %831 = vmatprep.mubr.bf16.mxu0 0
      %832 = vmatmul.mubr.bf16.gmra.mrb[0].mxu0 %v791
      %v833 = vpop.f32.mrb[0].mxu0
      %v834 = vadd.f32 0.0, %v833
      %v835 = vpop.f32.mrb[0].mxu0
      %v836 = vadd.f32 0.0, %v835
      %v837 = vpop.f32.mrb[0].mxu0
      %v838 = vadd.f32 0.0, %v837
      %v839 = vpop.f32.mrb[0].mxu0
      %v840 = vadd.f32 0.0, %v839
      %841 = vdwg.mxu0
      %v842 = vadd.f32 %v754, %v834
      %v843 = vadd.f32 %v755, %v836
      %v844 = vadd.f32 %v756, %v838
      %v845 = vadd.f32 %v757, %v840
      %s846 = scalar_lea.vmem %s1, 56
      %v847 = vld [vmem:[%s846] sm:$0xf]
      %v848 = vld [vmem:[%s846 + $0x4] sm:$0xf]
      %v851 = vunpack.c.l.b16 %v847
      %v852 = vunpack.c.l.b16 %v848
      %v853 = vpack.c.b16 %v852, %v851
      %854 = vrot.lane.b32.xlu0 %v252, 95
      %v855 = vpop.permute.xlu0 %854
      %856 = vrot.lane.b32.xlu0 %v247, 95
      %v857 = vpop.permute.xlu0 %856
      %858 = vrot.lane.b32.xlu0 %v255, 95
      %v859 = vpop.permute.xlu0 %858
      %vm860 = vcmask 777216
      %v861 = vsel %vm860, %v855, %v857
      %v862 = vsel %vm860, %v857, %v859
      %v864 = vsel %vm296, %v853, 0
      %v867 = vsel %vm300, %v861, 0
      %v870 = vsel %vm300, %v862, 0
      %872 = vmatprep.subr.bf16.mxu0 %v870
      %873 = vmatpush1.bf16.msra.mxu0 %v867
      %874 = vmatprep.subr.bf16.mxu0 0
      %875 = vmatpush1.bf16.msra.mxu0 0
      %876 = vmatprep.subr.bf16.mxu0 0
      %877 = vmatpush1.bf16.msra.mxu0 0
      %878 = vmatprep.subr.bf16.mxu0 0
      %879 = vmatpush1.bf16.msra.mxu0 0
      %880 = vmatprep.subr.bf16.mxu0 0
      %881 = vmatpush1.bf16.msra.mxu0 0
      %882 = vmatprep.subr.bf16.mxu0 0
      %883 = vmatpush1.bf16.msra.mxu0 0
      %884 = vmatprep.subr.bf16.mxu0 0
      %885 = vmatpush1.bf16.msra.mxu0 0
      %886 = vmatprep.subr.bf16.mxu0 0
      %887 = vmatpush1.bf16.msra.mxu0 0
      %888 = vmatprep.subr.bf16.mxu0 0
      %889 = vmatpush1.bf16.msra.mxu0 0
      %890 = vmatprep.subr.bf16.mxu0 0
      %891 = vmatpush1.bf16.msra.mxu0 0
      %892 = vmatprep.subr.bf16.mxu0 0
      %893 = vmatpush1.bf16.msra.mxu0 0
      %894 = vmatprep.subr.bf16.mxu0 0
      %895 = vmatpush1.bf16.msra.mxu0 0
      %896 = vmatprep.subr.bf16.mxu0 0
      %897 = vmatpush1.bf16.msra.mxu0 0
      %898 = vmatprep.subr.bf16.mxu0 0
      %899 = vmatpush1.bf16.msra.mxu0 0
      %900 = vmatprep.subr.bf16.mxu0 0
      %901 = vmatpush1.bf16.msra.mxu0 0
      %902 = vmatprep.subr.bf16.mxu0 0
      %903 = vmatpush1.bf16.msra.mxu0 0
      %904 = vmatprep.mubr.bf16.mxu0 0
      %905 = vmatmul.mubr.bf16.gmra.mrb[0].mxu0 %v864
      %v906 = vpop.f32.mrb[0].mxu0
      %v907 = vadd.f32 0.0, %v906
      %v908 = vpop.f32.mrb[0].mxu0
      %v909 = vadd.f32 0.0, %v908
      %v910 = vpop.f32.mrb[0].mxu0
      %v911 = vadd.f32 0.0, %v910
      %v912 = vpop.f32.mrb[0].mxu0
      %v913 = vadd.f32 0.0, %v912
      %914 = vdwg.mxu0
      %v915 = vadd.f32 %v842, %v907
      %v916 = vadd.f32 %v843, %v909
      %v917 = vadd.f32 %v844, %v911
      %v918 = vadd.f32 %v845, %v913
      %919 = vrot.lane.b32.xlu0 %v416, 34
      %v920 = vpop.permute.xlu0 %919
      %921 = vrot.lane.b32.xlu0 %v420, 34
      %v922 = vpop.permute.xlu0 %921
      %vm923 = vcmask 277504
      %v924 = vsel %vm923, %v920, %v922
      %vm925 = vcmp.ne.s16.totalorder %v920, 0
      %vm926 = vcmp.ne.s16.totalorder %v924, 0
      %vm927 = vcmp.ne.s16.totalorder %v922, 0
      %v928 = vsel %vm925, %v252, 0
      %v929 = vsel %vm926, %v247, 0
      %v930 = vsel %vm927, %v255, 0
      %s931 = scalar_lea.vmem %s1, 64
      %v932 = vld [vmem:[%s931] sm:$0xf]
      %v933 = vld [vmem:[%s931 + $0x4] sm:$0xf]
      %v936 = vunpack.c.l.b16 %v932
      %v937 = vunpack.c.l.b16 %v933
      %v938 = vpack.c.b16 %v937, %v936
      %942 = vrot.lane.b32.xlu0 %v928, 94
      %v943 = vpop.permute.xlu0 %942
      %944 = vrot.lane.b32.xlu0 %v929, 94
      %v945 = vpop.permute.xlu0 %944
      %946 = vrot.lane.b32.xlu0 %v930, 94
      %v947 = vpop.permute.xlu0 %946
      %vm948 = vcmask 769024
      %v949 = vsel %vm948, %v943, %v945
      %v950 = vsel %vm948, %v945, %v947
      %v952 = vsel %vm296, %v938, 0
      %v955 = vsel %vm300, %v949, 0
      %v958 = vsel %vm300, %v950, 0
      %960 = vmatprep.subr.bf16.mxu0 %v958
      %961 = vmatpush1.bf16.msra.mxu0 %v955
      %962 = vmatprep.subr.bf16.mxu0 0
      %963 = vmatpush1.bf16.msra.mxu0 0
      %964 = vmatprep.subr.bf16.mxu0 0
      %965 = vmatpush1.bf16.msra.mxu0 0
      %966 = vmatprep.subr.bf16.mxu0 0
      %967 = vmatpush1.bf16.msra.mxu0 0
      %968 = vmatprep.subr.bf16.mxu0 0
      %969 = vmatpush1.bf16.msra.mxu0 0
      %970 = vmatprep.subr.bf16.mxu0 0
      %971 = vmatpush1.bf16.msra.mxu0 0
      %972 = vmatprep.subr.bf16.mxu0 0
      %973 = vmatpush1.bf16.msra.mxu0 0
      %974 = vmatprep.subr.bf16.mxu0 0
      %975 = vmatpush1.bf16.msra.mxu0 0
      %976 = vmatprep.subr.bf16.mxu0 0
      %977 = vmatpush1.bf16.msra.mxu0 0
      %978 = vmatprep.subr.bf16.mxu0 0
      %979 = vmatpush1.bf16.msra.mxu0 0
      %980 = vmatprep.subr.bf16.mxu0 0
      %981 = vmatpush1.bf16.msra.mxu0 0
      %982 = vmatprep.subr.bf16.mxu0 0
      %983 = vmatpush1.bf16.msra.mxu0 0
      %984 = vmatprep.subr.bf16.mxu0 0
      %985 = vmatpush1.bf16.msra.mxu0 0
      %986 = vmatprep.subr.bf16.mxu0 0
      %987 = vmatpush1.bf16.msra.mxu0 0
      %988 = vmatprep.subr.bf16.mxu0 0
      %989 = vmatpush1.bf16.msra.mxu0 0
      %990 = vmatprep.subr.bf16.mxu0 0
      %991 = vmatpush1.bf16.msra.mxu0 0
      %992 = vmatprep.mubr.bf16.mxu0 0
      %993 = vmatmul.mubr.bf16.gmra.mrb[0].mxu0 %v952
      %v994 = vpop.f32.mrb[0].mxu0
      %v995 = vadd.f32 0.0, %v994
      %v996 = vpop.f32.mrb[0].mxu0
      %v997 = vadd.f32 0.0, %v996
      %v998 = vpop.f32.mrb[0].mxu0
      %v999 = vadd.f32 0.0, %v998
      %v1000 = vpop.f32.mrb[0].mxu0
      %v1001 = vadd.f32 0.0, %v1000
      %1002 = vdwg.mxu0
      %v1003 = vadd.f32 %v915, %v995
      %v1004 = vadd.f32 %v916, %v997
      %v1005 = vadd.f32 %v917, %v999
      %v1006 = vadd.f32 %v918, %v1001
      %v1007 = vpack.c.bf16 %v1005, %v1003
      %v1008 = vpack.c.bf16 %v1006, %v1004
      %1011 = vrot.lane.b32.xlu0 %v1007, 17
      %v1012 = vpop.permute.xlu0 %1011
      %1013 = vrot.lane.b32.xlu0 %v1008, 17
      %v1014 = vpop.permute.xlu0 %1013
      %v1015 = vsel %vm246, %v1012, %v1014
      %v1018 = vsel %vm249, 0, %v1012
      %v1021 = vsel %vm249, %v1014, 0
      %v1023 = vsel %vm271, %v1018, 0
      %v1024 = vsel %vm272, %v1015, 0
      %v1025 = vld [vmem:[%s2] sm:$0xf]
      %v1026 = vld [vmem:[%s2 + $0x4] sm:$0xf]
      %v1027 = vld [vmem:[%s2 + $0x8] sm:$0xf]
      %v1028 = vld [vmem:[%s2 + $0xc] sm:$0xf]
      %s1029 = scalar_lea.vmem %s2, 16
      %v1030 = vld [vmem:[%s1029] sm:$0xf]
      %v1031 = vld [vmem:[%s1029 + $0x4] sm:$0xf]
      %v1032 = vld [vmem:[%s1029 + $0x8] sm:$0xf]
      %v1033 = vld [vmem:[%s1029 + $0xc] sm:$0xf]
      %v1038 = vunpack.c.l.b16 %v1030
      %v1039 = vunpack.c.l.b16 %v1031
      %v1040 = vunpack.c.l.b16 %v1032
      %v1041 = vunpack.c.l.b16 %v1033
      %v1042 = vpack.c.b16 %v1039, %v1038
      %v1043 = vpack.c.b16 %v1041, %v1040
      %1046 = vrot.lane.b32.xlu0 %v1018, 127
      %v1047 = vpop.permute.xlu0 %1046
      %1048 = vrot.lane.b32.xlu0 %v1015, 127
      %v1049 = vpop.permute.xlu0 %1048
      %1050 = vrot.lane.b32.xlu0 %v1021, 127
      %v1051 = vpop.permute.xlu0 %1050
      %v1052 = vsel %vm293, %v1047, %v1049
      %v1053 = vsel %vm293, %v1049, %v1051
      %vm1056 = vcmask 130048
      %v1058 = vsel %vm1056, %v1042, 0
      %v1061 = vsel %vm1056, %v1043, 0
      %1063 = vmatprep.subr.bf16.mxu0 %v1053
      %1064 = vmatpush1.bf16.msra.mxu0 %v1052
      %1065 = vmatprep.subr.bf16.mxu0 0
      %1066 = vmatpush1.bf16.msra.mxu0 0
      %1067 = vmatprep.subr.bf16.mxu0 0
      %1068 = vmatpush1.bf16.msra.mxu0 0
      %1069 = vmatprep.subr.bf16.mxu0 0
      %1070 = vmatpush1.bf16.msra.mxu0 0
      %1071 = vmatprep.subr.bf16.mxu0 0
      %1072 = vmatpush1.bf16.msra.mxu0 0
      %1073 = vmatprep.subr.bf16.mxu0 0
      %1074 = vmatpush1.bf16.msra.mxu0 0
      %1075 = vmatprep.subr.bf16.mxu0 0
      %1076 = vmatpush1.bf16.msra.mxu0 0
      %1077 = vmatprep.subr.bf16.mxu0 0
      %1078 = vmatpush1.bf16.msra.mxu0 0
      %1079 = vmatprep.subr.bf16.mxu0 0
      %1080 = vmatpush1.bf16.msra.mxu0 0
      %1081 = vmatprep.subr.bf16.mxu0 0
      %1082 = vmatpush1.bf16.msra.mxu0 0
      %1083 = vmatprep.subr.bf16.mxu0 0
      %1084 = vmatpush1.bf16.msra.mxu0 0
      %1085 = vmatprep.subr.bf16.mxu0 0
      %1086 = vmatpush1.bf16.msra.mxu0 0
      %1087 = vmatprep.subr.bf16.mxu0 0
      %1088 = vmatpush1.bf16.msra.mxu0 0
      %1089 = vmatprep.subr.bf16.mxu0 0
      %1090 = vmatpush1.bf16.msra.mxu0 0
      %1091 = vmatprep.subr.bf16.mxu0 0
      %1092 = vmatpush1.bf16.msra.mxu0 0
      %1093 = vmatprep.subr.bf16.mxu0 0
      %1094 = vmatpush1.bf16.msra.mxu0 0
      %1095 = vmatprep.mubr.bf16.mxu0 0
      %1096 = vmatmul.mubr.bf16.gmra.mrb[0].mxu0 %v1058
      %v1097 = vpop.f32.mrb[0].mxu0
      %v1098 = vadd.f32 0.0, %v1097
      %v1099 = vpop.f32.mrb[0].mxu0
      %v1100 = vadd.f32 0.0, %v1099
      %v1101 = vpop.f32.mrb[0].mxu0
      %v1102 = vadd.f32 0.0, %v1101
      %v1103 = vpop.f32.mrb[0].mxu0
      %v1104 = vadd.f32 0.0, %v1103
      %1105 = vmatprep.mubr.bf16.mxu0 0
      %1106 = vmatmul.mubr.bf16.gmra.mrb[0].mxu0 %v1061
      %v1107 = vpop.f32.mrb[0].mxu0
      %v1108 = vadd.f32 0.0, %v1107
      %v1109 = vpop.f32.mrb[0].mxu0
      %v1110 = vadd.f32 0.0, %v1109
      %v1111 = vpop.f32.mrb[0].mxu0
      %v1112 = vadd.f32 0.0, %v1111
      %v1113 = vpop.f32.mrb[0].mxu0
      %v1114 = vadd.f32 0.0, %v1113
      %1115 = vdwg.mxu0
      %v1120 = vunpack.c.l.b16 %v1025
      %v1121 = vunpack.c.l.b16 %v1026
      %v1122 = vunpack.c.l.b16 %v1027
      %v1123 = vunpack.c.l.b16 %v1028
      %v1124 = vpack.c.b16 %v1121, %v1120
      %v1125 = vpack.c.b16 %v1123, %v1122
      %v1127 = vsel %vm1056, %v1124, 0
      %v1130 = vsel %vm1056, %v1125, 0
      %1132 = vmatprep.subr.bf16.mxu0 %v1024
      %1133 = vmatpush1.bf16.msra.mxu0 %v1023
      %1134 = vmatprep.subr.bf16.mxu0 0
      %1135 = vmatpush1.bf16.msra.mxu0 0
      %1136 = vmatprep.subr.bf16.mxu0 0
      %1137 = vmatpush1.bf16.msra.mxu0 0
      %1138 = vmatprep.subr.bf16.mxu0 0
      %1139 = vmatpush1.bf16.msra.mxu0 0
      %1140 = vmatprep.subr.bf16.mxu0 0
      %1141 = vmatpush1.bf16.msra.mxu0 0
      %1142 = vmatprep.subr.bf16.mxu0 0
      %1143 = vmatpush1.bf16.msra.mxu0 0
      %1144 = vmatprep.subr.bf16.mxu0 0
      %1145 = vmatpush1.bf16.msra.mxu0 0
      %1146 = vmatprep.subr.bf16.mxu0 0
      %1147 = vmatpush1.bf16.msra.mxu0 0
      %1148 = vmatprep.subr.bf16.mxu0 0
      %1149 = vmatpush1.bf16.msra.mxu0 0
      %1150 = vmatprep.subr.bf16.mxu0 0
      %1151 = vmatpush1.bf16.msra.mxu0 0
      %1152 = vmatprep.subr.bf16.mxu0 0
      %1153 = vmatpush1.bf16.msra.mxu0 0
      %1154 = vmatprep.subr.bf16.mxu0 0
      %1155 = vmatpush1.bf16.msra.mxu0 0
      %1156 = vmatprep.subr.bf16.mxu0 0
      %1157 = vmatpush1.bf16.msra.mxu0 0
      %1158 = vmatprep.subr.bf16.mxu0 0
      %1159 = vmatpush1.bf16.msra.mxu0 0
      %1160 = vmatprep.subr.bf16.mxu0 0
      %1161 = vmatpush1.bf16.msra.mxu0 0
      %1162 = vmatprep.subr.bf16.mxu0 0
      %1163 = vmatpush1.bf16.msra.mxu0 0
      %1164 = vmatprep.mubr.bf16.mxu0 0
      %1165 = vmatmul.mubr.bf16.gmra.mrb[0].mxu0 %v1127
      %v1166 = vpop.f32.mrb[0].mxu0
      %v1167 = vadd.f32 %v1098, %v1166
      %v1168 = vpop.f32.mrb[0].mxu0
      %v1169 = vadd.f32 %v1100, %v1168
      %v1170 = vpop.f32.mrb[0].mxu0
      %v1171 = vadd.f32 %v1102, %v1170
      %v1172 = vpop.f32.mrb[0].mxu0
      %v1173 = vadd.f32 %v1104, %v1172
      %1174 = vmatprep.mubr.bf16.mxu0 0
      %1175 = vmatmul.mubr.bf16.gmra.mrb[0].mxu0 %v1130
      %v1176 = vpop.f32.mrb[0].mxu0
      %v1177 = vadd.f32 %v1108, %v1176
      %v1178 = vpop.f32.mrb[0].mxu0
      %v1179 = vadd.f32 %v1110, %v1178
      %v1180 = vpop.f32.mrb[0].mxu0
      %v1181 = vadd.f32 %v1112, %v1180
      %v1182 = vpop.f32.mrb[0].mxu0
      %v1183 = vadd.f32 %v1114, %v1182
      %1184 = vdwg.mxu0
      %v1185 = vsel %vm427, %v1018, 0
      %v1186 = vsel %vm428, %v1015, 0
      %v1187 = vsel %vm429, %v1021, 0
      %s1188 = scalar_lea.vmem %s2, 32
      %v1189 = vld [vmem:[%s1188] sm:$0xf]
      %v1190 = vld [vmem:[%s1188 + $0x4] sm:$0xf]
      %v1191 = vld [vmem:[%s1188 + $0x8] sm:$0xf]
      %v1192 = vld [vmem:[%s1188 + $0xc] sm:$0xf]
      %v1197 = vunpack.c.l.b16 %v1189
      %v1198 = vunpack.c.l.b16 %v1190
      %v1199 = vunpack.c.l.b16 %v1191
      %v1200 = vunpack.c.l.b16 %v1192
      %v1201 = vpack.c.b16 %v1198, %v1197
      %v1202 = vpack.c.b16 %v1200, %v1199
      %1206 = vrot.lane.b32.xlu0 %v1185, 126
      %v1207 = vpop.permute.xlu0 %1206
      %1208 = vrot.lane.b32.xlu0 %v1186, 126
      %v1209 = vpop.permute.xlu0 %1208
      %1210 = vrot.lane.b32.xlu0 %v1187, 126
      %v1211 = vpop.permute.xlu0 %1210
      %v1212 = vsel %vm450, %v1207, %v1209
      %v1213 = vsel %vm450, %v1209, %v1211
      %v1217 = vsel %vm1056, %v1201, 0
      %v1220 = vsel %vm1056, %v1202, 0
      %1222 = vmatprep.subr.bf16.mxu0 %v1213
      %1223 = vmatpush1.bf16.msra.mxu0 %v1212
      %1224 = vmatprep.subr.bf16.mxu0 0
      %1225 = vmatpush1.bf16.msra.mxu0 0
      %1226 = vmatprep.subr.bf16.mxu0 0
      %1227 = vmatpush1.bf16.msra.mxu0 0
      %1228 = vmatprep.subr.bf16.mxu0 0
      %1229 = vmatpush1.bf16.msra.mxu0 0
      %1230 = vmatprep.subr.bf16.mxu0 0
      %1231 = vmatpush1.bf16.msra.mxu0 0
      %1232 = vmatprep.subr.bf16.mxu0 0
      %1233 = vmatpush1.bf16.msra.mxu0 0
      %1234 = vmatprep.subr.bf16.mxu0 0
      %1235 = vmatpush1.bf16.msra.mxu0 0
      %1236 = vmatprep.subr.bf16.mxu0 0
      %1237 = vmatpush1.bf16.msra.mxu0 0
      %1238 = vmatprep.subr.bf16.mxu0 0
      %1239 = vmatpush1.bf16.msra.mxu0 0
      %1240 = vmatprep.subr.bf16.mxu0 0
      %1241 = vmatpush1.bf16.msra.mxu0 0
      %1242 = vmatprep.subr.bf16.mxu0 0
      %1243 = vmatpush1.bf16.msra.mxu0 0
      %1244 = vmatprep.subr.bf16.mxu0 0
      %1245 = vmatpush1.bf16.msra.mxu0 0
      %1246 = vmatprep.subr.bf16.mxu0 0
      %1247 = vmatpush1.bf16.msra.mxu0 0
      %1248 = vmatprep.subr.bf16.mxu0 0
      %1249 = vmatpush1.bf16.msra.mxu0 0
      %1250 = vmatprep.subr.bf16.mxu0 0
      %1251 = vmatpush1.bf16.msra.mxu0 0
      %1252 = vmatprep.subr.bf16.mxu0 0
      %1253 = vmatpush1.bf16.msra.mxu0 0
      %1254 = vmatprep.mubr.bf16.mxu0 0
      %1255 = vmatmul.mubr.bf16.gmra.mrb[0].mxu0 %v1217
      %v1256 = vpop.f32.mrb[0].mxu0
      %v1257 = vadd.f32 0.0, %v1256
      %v1258 = vpop.f32.mrb[0].mxu0
      %v1259 = vadd.f32 0.0, %v1258
      %v1260 = vpop.f32.mrb[0].mxu0
      %v1261 = vadd.f32 0.0, %v1260
      %v1262 = vpop.f32.mrb[0].mxu0
      %v1263 = vadd.f32 0.0, %v1262
      %1264 = vmatprep.mubr.bf16.mxu0 0
      %1265 = vmatmul.mubr.bf16.gmra.mrb[0].mxu0 %v1220
      %v1266 = vpop.f32.mrb[0].mxu0
      %v1267 = vadd.f32 0.0, %v1266
      %v1268 = vpop.f32.mrb[0].mxu0
      %v1269 = vadd.f32 0.0, %v1268
      %v1270 = vpop.f32.mrb[0].mxu0
      %v1271 = vadd.f32 0.0, %v1270
      %v1272 = vpop.f32.mrb[0].mxu0
      %v1273 = vadd.f32 0.0, %v1272
      %1274 = vdwg.mxu0
      %v1275 = vadd.f32 %v1167, %v1257
      %v1276 = vadd.f32 %v1169, %v1259
      %v1277 = vadd.f32 %v1171, %v1261
      %v1278 = vadd.f32 %v1173, %v1263
      %v1279 = vadd.f32 %v1177, %v1267
      %v1280 = vadd.f32 %v1179, %v1269
      %v1281 = vadd.f32 %v1181, %v1271
      %v1282 = vadd.f32 %v1183, %v1273
      %v1283 = vsel %vm515, %v1018, 0
      %v1284 = vsel %vm516, %v1015, 0
      %v1285 = vsel %vm517, %v1021, 0
      %s1286 = scalar_lea.vmem %s2, 48
      %v1287 = vld [vmem:[%s1286] sm:$0xf]
      %v1288 = vld [vmem:[%s1286 + $0x4] sm:$0xf]
      %v1289 = vld [vmem:[%s1286 + $0x8] sm:$0xf]
      %v1290 = vld [vmem:[%s1286 + $0xc] sm:$0xf]
      %v1295 = vunpack.c.l.b16 %v1287
      %v1296 = vunpack.c.l.b16 %v1288
      %v1297 = vunpack.c.l.b16 %v1289
      %v1298 = vunpack.c.l.b16 %v1290
      %v1299 = vpack.c.b16 %v1296, %v1295
      %v1300 = vpack.c.b16 %v1298, %v1297
      %1304 = vrot.lane.b32.xlu0 %v1283, 112
      %v1305 = vpop.permute.xlu0 %1304
      %1306 = vrot.lane.b32.xlu0 %v1284, 112
      %v1307 = vpop.permute.xlu0 %1306
      %1308 = vrot.lane.b32.xlu0 %v1285, 112
      %v1309 = vpop.permute.xlu0 %1308
      %v1310 = vsel %vm538, %v1305, %v1307
      %v1311 = vsel %vm538, %v1307, %v1309
      %v1315 = vsel %vm1056, %v1299, 0
      %v1318 = vsel %vm1056, %v1300, 0
      %1320 = vmatprep.subr.bf16.mxu0 %v1311
      %1321 = vmatpush1.bf16.msra.mxu0 %v1310
      %1322 = vmatprep.subr.bf16.mxu0 0
      %1323 = vmatpush1.bf16.msra.mxu0 0
      %1324 = vmatprep.subr.bf16.mxu0 0
      %1325 = vmatpush1.bf16.msra.mxu0 0
      %1326 = vmatprep.subr.bf16.mxu0 0
      %1327 = vmatpush1.bf16.msra.mxu0 0
      %1328 = vmatprep.subr.bf16.mxu0 0
      %1329 = vmatpush1.bf16.msra.mxu0 0
      %1330 = vmatprep.subr.bf16.mxu0 0
      %1331 = vmatpush1.bf16.msra.mxu0 0
      %1332 = vmatprep.subr.bf16.mxu0 0
      %1333 = vmatpush1.bf16.msra.mxu0 0
      %1334 = vmatprep.subr.bf16.mxu0 0
      %1335 = vmatpush1.bf16.msra.mxu0 0
      %1336 = vmatprep.subr.bf16.mxu0 0
      %1337 = vmatpush1.bf16.msra.mxu0 0
      %1338 = vmatprep.subr.bf16.mxu0 0
      %1339 = vmatpush1.bf16.msra.mxu0 0
      %1340 = vmatprep.subr.bf16.mxu0 0
      %1341 = vmatpush1.bf16.msra.mxu0 0
      %1342 = vmatprep.subr.bf16.mxu0 0
      %1343 = vmatpush1.bf16.msra.mxu0 0
      %1344 = vmatprep.subr.bf16.mxu0 0
      %1345 = vmatpush1.bf16.msra.mxu0 0
      %1346 = vmatprep.subr.bf16.mxu0 0
      %1347 = vmatpush1.bf16.msra.mxu0 0
      %1348 = vmatprep.subr.bf16.mxu0 0
      %1349 = vmatpush1.bf16.msra.mxu0 0
      %1350 = vmatprep.subr.bf16.mxu0 0
      %1351 = vmatpush1.bf16.msra.mxu0 0
      %1352 = vmatprep.mubr.bf16.mxu0 0
      %1353 = vmatmul.mubr.bf16.gmra.mrb[0].mxu0 %v1315
      %v1354 = vpop.f32.mrb[0].mxu0
      %v1355 = vadd.f32 0.0, %v1354
      %v1356 = vpop.f32.mrb[0].mxu0
      %v1357 = vadd.f32 0.0, %v1356
      %v1358 = vpop.f32.mrb[0].mxu0
      %v1359 = vadd.f32 0.0, %v1358
      %v1360 = vpop.f32.mrb[0].mxu0
      %v1361 = vadd.f32 0.0, %v1360
      %1362 = vmatprep.mubr.bf16.mxu0 0
      %1363 = vmatmul.mubr.bf16.gmra.mrb[0].mxu0 %v1318
      %v1364 = vpop.f32.mrb[0].mxu0
      %v1365 = vadd.f32 0.0, %v1364
      %v1366 = vpop.f32.mrb[0].mxu0
      %v1367 = vadd.f32 0.0, %v1366
      %v1368 = vpop.f32.mrb[0].mxu0
      %v1369 = vadd.f32 0.0, %v1368
      %v1370 = vpop.f32.mrb[0].mxu0
      %v1371 = vadd.f32 0.0, %v1370
      %1372 = vdwg.mxu0
      %v1373 = vadd.f32 %v1275, %v1355
      %v1374 = vadd.f32 %v1276, %v1357
      %v1375 = vadd.f32 %v1277, %v1359
      %v1376 = vadd.f32 %v1278, %v1361
      %v1377 = vadd.f32 %v1279, %v1365
      %v1378 = vadd.f32 %v1280, %v1367
      %v1379 = vadd.f32 %v1281, %v1369
      %v1380 = vadd.f32 %v1282, %v1371
      %s1381 = scalar_lea.vmem %s2, 64
      %v1382 = vld [vmem:[%s1381] sm:$0xf]
      %v1383 = vld [vmem:[%s1381 + $0x4] sm:$0xf]
      %v1384 = vld [vmem:[%s1381 + $0x8] sm:$0xf]
      %v1385 = vld [vmem:[%s1381 + $0xc] sm:$0xf]
      %v1390 = vunpack.c.l.b16 %v1382
      %v1391 = vunpack.c.l.b16 %v1383
      %v1392 = vunpack.c.l.b16 %v1384
      %v1393 = vunpack.c.l.b16 %v1385
      %v1394 = vpack.c.b16 %v1391, %v1390
      %v1395 = vpack.c.b16 %v1393, %v1392
      %1396 = vrot.lane.b32.xlu0 %v1018, 111
      %v1397 = vpop.permute.xlu0 %1396
      %1398 = vrot.lane.b32.xlu0 %v1015, 111
      %v1399 = vpop.permute.xlu0 %1398
      %1400 = vrot.lane.b32.xlu0 %v1021, 111
      %v1401 = vpop.permute.xlu0 %1400
      %v1402 = vsel %vm611, %v1397, %v1399
      %v1403 = vsel %vm611, %v1399, %v1401
      %v1407 = vsel %vm1056, %v1394, 0
      %v1410 = vsel %vm1056, %v1395, 0
      %1412 = vmatprep.subr.bf16.mxu0 %v1403
      %1413 = vmatpush1.bf16.msra.mxu0 %v1402
      %1414 = vmatprep.subr.bf16.mxu0 0
      %1415 = vmatpush1.bf16.msra.mxu0 0
      %1416 = vmatprep.subr.bf16.mxu0 0
      %1417 = vmatpush1.bf16.msra.mxu0 0
      %1418 = vmatprep.subr.bf16.mxu0 0
      %1419 = vmatpush1.bf16.msra.mxu0 0
      %1420 = vmatprep.subr.bf16.mxu0 0
      %1421 = vmatpush1.bf16.msra.mxu0 0
      %1422 = vmatprep.subr.bf16.mxu0 0
      %1423 = vmatpush1.bf16.msra.mxu0 0
      %1424 = vmatprep.subr.bf16.mxu0 0
      %1425 = vmatpush1.bf16.msra.mxu0 0
      %1426 = vmatprep.subr.bf16.mxu0 0
      %1427 = vmatpush1.bf16.msra.mxu0 0
      %1428 = vmatprep.subr.bf16.mxu0 0
      %1429 = vmatpush1.bf16.msra.mxu0 0
      %1430 = vmatprep.subr.bf16.mxu0 0
      %1431 = vmatpush1.bf16.msra.mxu0 0
      %1432 = vmatprep.subr.bf16.mxu0 0
      %1433 = vmatpush1.bf16.msra.mxu0 0
      %1434 = vmatprep.subr.bf16.mxu0 0
      %1435 = vmatpush1.bf16.msra.mxu0 0
      %1436 = vmatprep.subr.bf16.mxu0 0
      %1437 = vmatpush1.bf16.msra.mxu0 0
      %1438 = vmatprep.subr.bf16.mxu0 0
      %1439 = vmatpush1.bf16.msra.mxu0 0
      %1440 = vmatprep.subr.bf16.mxu0 0
      %1441 = vmatpush1.bf16.msra.mxu0 0
      %1442 = vmatprep.subr.bf16.mxu0 0
      %1443 = vmatpush1.bf16.msra.mxu0 0
      %1444 = vmatprep.mubr.bf16.mxu0 0
      %1445 = vmatmul.mubr.bf16.gmra.mrb[0].mxu0 %v1407
      %v1446 = vpop.f32.mrb[0].mxu0
      %v1447 = vadd.f32 0.0, %v1446
      %v1448 = vpop.f32.mrb[0].mxu0
      %v1449 = vadd.f32 0.0, %v1448
      %v1450 = vpop.f32.mrb[0].mxu0
      %v1451 = vadd.f32 0.0, %v1450
      %v1452 = vpop.f32.mrb[0].mxu0
      %v1453 = vadd.f32 0.0, %v1452
      %1454 = vmatprep.mubr.bf16.mxu0 0
      %1455 = vmatmul.mubr.bf16.gmra.mrb[0].mxu0 %v1410
      %v1456 = vpop.f32.mrb[0].mxu0
      %v1457 = vadd.f32 0.0, %v1456
      %v1458 = vpop.f32.mrb[0].mxu0
      %v1459 = vadd.f32 0.0, %v1458
      %v1460 = vpop.f32.mrb[0].mxu0
      %v1461 = vadd.f32 0.0, %v1460
      %v1462 = vpop.f32.mrb[0].mxu0
      %v1463 = vadd.f32 0.0, %v1462
      %1464 = vdwg.mxu0
      %v1465 = vadd.f32 %v1373, %v1447
      %v1466 = vadd.f32 %v1374, %v1449
      %v1467 = vadd.f32 %v1375, %v1451
      %v1468 = vadd.f32 %v1376, %v1453
      %v1469 = vadd.f32 %v1377, %v1457
      %v1470 = vadd.f32 %v1378, %v1459
      %v1471 = vadd.f32 %v1379, %v1461
      %v1472 = vadd.f32 %v1380, %v1463
      %v1473 = vsel %vm676, %v1018, 0
      %v1474 = vsel %vm677, %v1015, 0
      %v1475 = vsel %vm678, %v1021, 0
      %s1476 = scalar_lea.vmem %s2, 80
      %v1477 = vld [vmem:[%s1476] sm:$0xf]
      %v1478 = vld [vmem:[%s1476 + $0x4] sm:$0xf]
      %v1479 = vld [vmem:[%s1476 + $0x8] sm:$0xf]
      %v1480 = vld [vmem:[%s1476 + $0xc] sm:$0xf]
      %v1485 = vunpack.c.l.b16 %v1477
      %v1486 = vunpack.c.l.b16 %v1478
      %v1487 = vunpack.c.l.b16 %v1479
      %v1488 = vunpack.c.l.b16 %v1480
      %v1489 = vpack.c.b16 %v1486, %v1485
      %v1490 = vpack.c.b16 %v1488, %v1487
      %1494 = vrot.lane.b32.xlu0 %v1473, 110
      %v1495 = vpop.permute.xlu0 %1494
      %1496 = vrot.lane.b32.xlu0 %v1474, 110
      %v1497 = vpop.permute.xlu0 %1496
      %1498 = vrot.lane.b32.xlu0 %v1475, 110
      %v1499 = vpop.permute.xlu0 %1498
      %v1500 = vsel %vm699, %v1495, %v1497
      %v1501 = vsel %vm699, %v1497, %v1499
      %v1505 = vsel %vm1056, %v1489, 0
      %v1508 = vsel %vm1056, %v1490, 0
      %1510 = vmatprep.subr.bf16.mxu0 %v1501
      %1511 = vmatpush1.bf16.msra.mxu0 %v1500
      %1512 = vmatprep.subr.bf16.mxu0 0
      %1513 = vmatpush1.bf16.msra.mxu0 0
      %1514 = vmatprep.subr.bf16.mxu0 0
      %1515 = vmatpush1.bf16.msra.mxu0 0
      %1516 = vmatprep.subr.bf16.mxu0 0
      %1517 = vmatpush1.bf16.msra.mxu0 0
      %1518 = vmatprep.subr.bf16.mxu0 0
      %1519 = vmatpush1.bf16.msra.mxu0 0
      %1520 = vmatprep.subr.bf16.mxu0 0
      %1521 = vmatpush1.bf16.msra.mxu0 0
      %1522 = vmatprep.subr.bf16.mxu0 0
      %1523 = vmatpush1.bf16.msra.mxu0 0
      %1524 = vmatprep.subr.bf16.mxu0 0
      %1525 = vmatpush1.bf16.msra.mxu0 0
      %1526 = vmatprep.subr.bf16.mxu0 0
      %1527 = vmatpush1.bf16.msra.mxu0 0
      %1528 = vmatprep.subr.bf16.mxu0 0
      %1529 = vmatpush1.bf16.msra.mxu0 0
      %1530 = vmatprep.subr.bf16.mxu0 0
      %1531 = vmatpush1.bf16.msra.mxu0 0
      %1532 = vmatprep.subr.bf16.mxu0 0
      %1533 = vmatpush1.bf16.msra.mxu0 0
      %1534 = vmatprep.subr.bf16.mxu0 0
      %1535 = vmatpush1.bf16.msra.mxu0 0
      %1536 = vmatprep.subr.bf16.mxu0 0
      %1537 = vmatpush1.bf16.msra.mxu0 0
      %1538 = vmatprep.subr.bf16.mxu0 0
      %1539 = vmatpush1.bf16.msra.mxu0 0
      %1540 = vmatprep.subr.bf16.mxu0 0
      %1541 = vmatpush1.bf16.msra.mxu0 0
      %1542 = vmatprep.mubr.bf16.mxu0 0
      %1543 = vmatmul.mubr.bf16.gmra.mrb[0].mxu0 %v1505
      %v1544 = vpop.f32.mrb[0].mxu0
      %v1545 = vadd.f32 0.0, %v1544
      %v1546 = vpop.f32.mrb[0].mxu0
      %v1547 = vadd.f32 0.0, %v1546
      %v1548 = vpop.f32.mrb[0].mxu0
      %v1549 = vadd.f32 0.0, %v1548
      %v1550 = vpop.f32.mrb[0].mxu0
      %v1551 = vadd.f32 0.0, %v1550
      %1552 = vmatprep.mubr.bf16.mxu0 0
      %1553 = vmatmul.mubr.bf16.gmra.mrb[0].mxu0 %v1508
      %v1554 = vpop.f32.mrb[0].mxu0
      %v1555 = vadd.f32 0.0, %v1554
      %v1556 = vpop.f32.mrb[0].mxu0
      %v1557 = vadd.f32 0.0, %v1556
      %v1558 = vpop.f32.mrb[0].mxu0
      %v1559 = vadd.f32 0.0, %v1558
      %v1560 = vpop.f32.mrb[0].mxu0
      %v1561 = vadd.f32 0.0, %v1560
      %1562 = vdwg.mxu0
      %v1563 = vadd.f32 %v1465, %v1545
      %v1564 = vadd.f32 %v1466, %v1547
      %v1565 = vadd.f32 %v1467, %v1549
      %v1566 = vadd.f32 %v1468, %v1551
      %v1567 = vadd.f32 %v1469, %v1555
      %v1568 = vadd.f32 %v1470, %v1557
      %v1569 = vadd.f32 %v1471, %v1559
      %v1570 = vadd.f32 %v1472, %v1561
      %v1571 = vsel %vm764, %v1018, 0
      %v1572 = vsel %vm765, %v1015, 0
      %v1573 = vsel %vm766, %v1021, 0
      %s1574 = scalar_lea.vmem %s2, 96
      %v1575 = vld [vmem:[%s1574] sm:$0xf]
      %v1576 = vld [vmem:[%s1574 + $0x4] sm:$0xf]
      %v1577 = vld [vmem:[%s1574 + $0x8] sm:$0xf]
      %v1578 = vld [vmem:[%s1574 + $0xc] sm:$0xf]
      %v1583 = vunpack.c.l.b16 %v1575
      %v1584 = vunpack.c.l.b16 %v1576
      %v1585 = vunpack.c.l.b16 %v1577
      %v1586 = vunpack.c.l.b16 %v1578
      %v1587 = vpack.c.b16 %v1584, %v1583
      %v1588 = vpack.c.b16 %v1586, %v1585
      %1592 = vrot.lane.b32.xlu0 %v1571, 96
      %v1593 = vpop.permute.xlu0 %1592
      %1594 = vrot.lane.b32.xlu0 %v1572, 96
      %v1595 = vpop.permute.xlu0 %1594
      %1596 = vrot.lane.b32.xlu0 %v1573, 96
      %v1597 = vpop.permute.xlu0 %1596
      %v1598 = vsel %vm787, %v1593, %v1595
      %v1599 = vsel %vm787, %v1595, %v1597
      %v1603 = vsel %vm1056, %v1587, 0
      %v1606 = vsel %vm1056, %v1588, 0
      %1608 = vmatprep.subr.bf16.mxu0 %v1599
      %1609 = vmatpush1.bf16.msra.mxu0 %v1598
      %1610 = vmatprep.subr.bf16.mxu0 0
      %1611 = vmatpush1.bf16.msra.mxu0 0
      %1612 = vmatprep.subr.bf16.mxu0 0
      %1613 = vmatpush1.bf16.msra.mxu0 0
      %1614 = vmatprep.subr.bf16.mxu0 0
      %1615 = vmatpush1.bf16.msra.mxu0 0
      %1616 = vmatprep.subr.bf16.mxu0 0
      %1617 = vmatpush1.bf16.msra.mxu0 0
      %1618 = vmatprep.subr.bf16.mxu0 0
      %1619 = vmatpush1.bf16.msra.mxu0 0
      %1620 = vmatprep.subr.bf16.mxu0 0
      %1621 = vmatpush1.bf16.msra.mxu0 0
      %1622 = vmatprep.subr.bf16.mxu0 0
      %1623 = vmatpush1.bf16.msra.mxu0 0
      %1624 = vmatprep.subr.bf16.mxu0 0
      %1625 = vmatpush1.bf16.msra.mxu0 0
      %1626 = vmatprep.subr.bf16.mxu0 0
      %1627 = vmatpush1.bf16.msra.mxu0 0
      %1628 = vmatprep.subr.bf16.mxu0 0
      %1629 = vmatpush1.bf16.msra.mxu0 0
      %1630 = vmatprep.subr.bf16.mxu0 0
      %1631 = vmatpush1.bf16.msra.mxu0 0
      %1632 = vmatprep.subr.bf16.mxu0 0
      %1633 = vmatpush1.bf16.msra.mxu0 0
      %1634 = vmatprep.subr.bf16.mxu0 0
      %1635 = vmatpush1.bf16.msra.mxu0 0
      %1636 = vmatprep.subr.bf16.mxu0 0
      %1637 = vmatpush1.bf16.msra.mxu0 0
      %1638 = vmatprep.subr.bf16.mxu0 0
      %1639 = vmatpush1.bf16.msra.mxu0 0
      %1640 = vmatprep.mubr.bf16.mxu0 0
      %1641 = vmatmul.mubr.bf16.gmra.mrb[0].mxu0 %v1603
      %v1642 = vpop.f32.mrb[0].mxu0
      %v1643 = vadd.f32 0.0, %v1642
      %v1644 = vpop.f32.mrb[0].mxu0
      %v1645 = vadd.f32 0.0, %v1644
      %v1646 = vpop.f32.mrb[0].mxu0
      %v1647 = vadd.f32 0.0, %v1646
      %v1648 = vpop.f32.mrb[0].mxu0
      %v1649 = vadd.f32 0.0, %v1648
      %1650 = vmatprep.mubr.bf16.mxu0 0
      %1651 = vmatmul.mubr.bf16.gmra.mrb[0].mxu0 %v1606
      %v1652 = vpop.f32.mrb[0].mxu0
      %v1653 = vadd.f32 0.0, %v1652
      %v1654 = vpop.f32.mrb[0].mxu0
      %v1655 = vadd.f32 0.0, %v1654
      %v1656 = vpop.f32.mrb[0].mxu0
      %v1657 = vadd.f32 0.0, %v1656
      %v1658 = vpop.f32.mrb[0].mxu0
      %v1659 = vadd.f32 0.0, %v1658
      %1660 = vdwg.mxu0
      %v1661 = vadd.f32 %v1563, %v1643
      %v1662 = vadd.f32 %v1564, %v1645
      %v1663 = vadd.f32 %v1565, %v1647
      %v1664 = vadd.f32 %v1566, %v1649
      %v1665 = vadd.f32 %v1567, %v1653
      %v1666 = vadd.f32 %v1568, %v1655
      %v1667 = vadd.f32 %v1569, %v1657
      %v1668 = vadd.f32 %v1570, %v1659
      %s1669 = scalar_lea.vmem %s2, 112
      %v1670 = vld [vmem:[%s1669] sm:$0xf]
      %v1671 = vld [vmem:[%s1669 + $0x4] sm:$0xf]
      %v1672 = vld [vmem:[%s1669 + $0x8] sm:$0xf]
      %v1673 = vld [vmem:[%s1669 + $0xc] sm:$0xf]
      %v1678 = vunpack.c.l.b16 %v1670
      %v1679 = vunpack.c.l.b16 %v1671
      %v1680 = vunpack.c.l.b16 %v1672
      %v1681 = vunpack.c.l.b16 %v1673
      %v1682 = vpack.c.b16 %v1679, %v1678
      %v1683 = vpack.c.b16 %v1681, %v1680
      %1684 = vrot.lane.b32.xlu0 %v1018, 95
      %v1685 = vpop.permute.xlu0 %1684
      %1686 = vrot.lane.b32.xlu0 %v1015, 95
      %v1687 = vpop.permute.xlu0 %1686
      %1688 = vrot.lane.b32.xlu0 %v1021, 95
      %v1689 = vpop.permute.xlu0 %1688
      %v1690 = vsel %vm860, %v1685, %v1687
      %v1691 = vsel %vm860, %v1687, %v1689
      %v1695 = vsel %vm1056, %v1682, 0
      %v1698 = vsel %vm1056, %v1683, 0
      %1700 = vmatprep.subr.bf16.mxu0 %v1691
      %1701 = vmatpush1.bf16.msra.mxu0 %v1690
      %1702 = vmatprep.subr.bf16.mxu0 0
      %1703 = vmatpush1.bf16.msra.mxu0 0
      %1704 = vmatprep.subr.bf16.mxu0 0
      %1705 = vmatpush1.bf16.msra.mxu0 0
      %1706 = vmatprep.subr.bf16.mxu0 0
      %1707 = vmatpush1.bf16.msra.mxu0 0
      %1708 = vmatprep.subr.bf16.mxu0 0
      %1709 = vmatpush1.bf16.msra.mxu0 0
      %1710 = vmatprep.subr.bf16.mxu0 0
      %1711 = vmatpush1.bf16.msra.mxu0 0
      %1712 = vmatprep.subr.bf16.mxu0 0
      %1713 = vmatpush1.bf16.msra.mxu0 0
      %1714 = vmatprep.subr.bf16.mxu0 0
      %1715 = vmatpush1.bf16.msra.mxu0 0
      %1716 = vmatprep.subr.bf16.mxu0 0
      %1717 = vmatpush1.bf16.msra.mxu0 0
      %1718 = vmatprep.subr.bf16.mxu0 0
      %1719 = vmatpush1.bf16.msra.mxu0 0
      %1720 = vmatprep.subr.bf16.mxu0 0
      %1721 = vmatpush1.bf16.msra.mxu0 0
      %1722 = vmatprep.subr.bf16.mxu0 0
      %1723 = vmatpush1.bf16.msra.mxu0 0
      %1724 = vmatprep.subr.bf16.mxu0 0
      %1725 = vmatpush1.bf16.msra.mxu0 0
      %1726 = vmatprep.subr.bf16.mxu0 0
      %1727 = vmatpush1.bf16.msra.mxu0 0
      %1728 = vmatprep.subr.bf16.mxu0 0
      %1729 = vmatpush1.bf16.msra.mxu0 0
      %1730 = vmatprep.subr.bf16.mxu0 0
      %1731 = vmatpush1.bf16.msra.mxu0 0
      %1732 = vmatprep.mubr.bf16.mxu0 0
      %1733 = vmatmul.mubr.bf16.gmra.mrb[0].mxu0 %v1695
      %v1734 = vpop.f32.mrb[0].mxu0
      %v1735 = vadd.f32 0.0, %v1734
      %v1736 = vpop.f32.mrb[0].mxu0
      %v1737 = vadd.f32 0.0, %v1736
      %v1738 = vpop.f32.mrb[0].mxu0
      %v1739 = vadd.f32 0.0, %v1738
      %v1740 = vpop.f32.mrb[0].mxu0
      %v1741 = vadd.f32 0.0, %v1740
      %1742 = vmatprep.mubr.bf16.mxu0 0
      %1743 = vmatmul.mubr.bf16.gmra.mrb[0].mxu0 %v1698
      %v1744 = vpop.f32.mrb[0].mxu0
      %v1745 = vadd.f32 0.0, %v1744
      %v1746 = vpop.f32.mrb[0].mxu0
      %v1747 = vadd.f32 0.0, %v1746
      %v1748 = vpop.f32.mrb[0].mxu0
      %v1749 = vadd.f32 0.0, %v1748
      %v1750 = vpop.f32.mrb[0].mxu0
      %v1751 = vadd.f32 0.0, %v1750
      %1752 = vdwg.mxu0
      %v1753 = vadd.f32 %v1661, %v1735
      %v1754 = vadd.f32 %v1662, %v1737
      %v1755 = vadd.f32 %v1663, %v1739
      %v1756 = vadd.f32 %v1664, %v1741
      %v1757 = vadd.f32 %v1665, %v1745
      %v1758 = vadd.f32 %v1666, %v1747
      %v1759 = vadd.f32 %v1667, %v1749
      %v1760 = vadd.f32 %v1668, %v1751
      %v1761 = vsel %vm925, %v1018, 0
      %v1762 = vsel %vm926, %v1015, 0
      %v1763 = vsel %vm927, %v1021, 0
      %s1764 = scalar_lea.vmem %s2, 128
      %v1765 = vld [vmem:[%s1764] sm:$0xf]
      %v1766 = vld [vmem:[%s1764 + $0x4] sm:$0xf]
      %v1767 = vld [vmem:[%s1764 + $0x8] sm:$0xf]
      %v1768 = vld [vmem:[%s1764 + $0xc] sm:$0xf]
      %v1773 = vunpack.c.l.b16 %v1765
      %v1774 = vunpack.c.l.b16 %v1766
      %v1775 = vunpack.c.l.b16 %v1767
      %v1776 = vunpack.c.l.b16 %v1768
      %v1777 = vpack.c.b16 %v1774, %v1773
      %v1778 = vpack.c.b16 %v1776, %v1775
      %1782 = vrot.lane.b32.xlu0 %v1761, 94
      %v1783 = vpop.permute.xlu0 %1782
      %1784 = vrot.lane.b32.xlu0 %v1762, 94
      %v1785 = vpop.permute.xlu0 %1784
      %1786 = vrot.lane.b32.xlu0 %v1763, 94
      %v1787 = vpop.permute.xlu0 %1786
      %v1788 = vsel %vm948, %v1783, %v1785
      %v1789 = vsel %vm948, %v1785, %v1787
      %v1793 = vsel %vm1056, %v1777, 0
      %v1796 = vsel %vm1056, %v1778, 0
      %1798 = vmatprep.subr.bf16.mxu0 %v1789
      %1799 = vmatpush1.bf16.msra.mxu0 %v1788
      %1800 = vmatprep.subr.bf16.mxu0 0
      %1801 = vmatpush1.bf16.msra.mxu0 0
      %1802 = vmatprep.subr.bf16.mxu0 0
      %1803 = vmatpush1.bf16.msra.mxu0 0
      %1804 = vmatprep.subr.bf16.mxu0 0
      %1805 = vmatpush1.bf16.msra.mxu0 0
      %1806 = vmatprep.subr.bf16.mxu0 0
      %1807 = vmatpush1.bf16.msra.mxu0 0
      %1808 = vmatprep.subr.bf16.mxu0 0
      %1809 = vmatpush1.bf16.msra.mxu0 0
      %1810 = vmatprep.subr.bf16.mxu0 0
      %1811 = vmatpush1.bf16.msra.mxu0 0
      %1812 = vmatprep.subr.bf16.mxu0 0
      %1813 = vmatpush1.bf16.msra.mxu0 0
      %1814 = vmatprep.subr.bf16.mxu0 0
      %1815 = vmatpush1.bf16.msra.mxu0 0
      %1816 = vmatprep.subr.bf16.mxu0 0
      %1817 = vmatpush1.bf16.msra.mxu0 0
      %1818 = vmatprep.subr.bf16.mxu0 0
      %1819 = vmatpush1.bf16.msra.mxu0 0
      %1820 = vmatprep.subr.bf16.mxu0 0
      %1821 = vmatpush1.bf16.msra.mxu0 0
      %1822 = vmatprep.subr.bf16.mxu0 0
      %1823 = vmatpush1.bf16.msra.mxu0 0
      %1824 = vmatprep.subr.bf16.mxu0 0
      %1825 = vmatpush1.bf16.msra.mxu0 0
      %1826 = vmatprep.subr.bf16.mxu0 0
      %1827 = vmatpush1.bf16.msra.mxu0 0
      %1828 = vmatprep.subr.bf16.mxu0 0
      %1829 = vmatpush1.bf16.msra.mxu0 0
      %1830 = vmatprep.mubr.bf16.mxu0 0
      %1831 = vmatmul.mubr.bf16.gmra.mrb[0].mxu0 %v1793
      %v1832 = vpop.f32.mrb[0].mxu0
      %v1833 = vadd.f32 0.0, %v1832
      %v1834 = vpop.f32.mrb[0].mxu0
      %v1835 = vadd.f32 0.0, %v1834
      %v1836 = vpop.f32.mrb[0].mxu0
      %v1837 = vadd.f32 0.0, %v1836
      %v1838 = vpop.f32.mrb[0].mxu0
      %v1839 = vadd.f32 0.0, %v1838
      %1840 = vmatprep.mubr.bf16.mxu0 0
      %1841 = vmatmul.mubr.bf16.gmra.mrb[0].mxu0 %v1796
      %v1842 = vpop.f32.mrb[0].mxu0
      %v1843 = vadd.f32 0.0, %v1842
      %v1844 = vpop.f32.mrb[0].mxu0
      %v1845 = vadd.f32 0.0, %v1844
      %v1846 = vpop.f32.mrb[0].mxu0
      %v1847 = vadd.f32 0.0, %v1846
      %v1848 = vpop.f32.mrb[0].mxu0
      %v1849 = vadd.f32 0.0, %v1848
      %1850 = vdwg.mxu0
      %v1851 = vadd.f32 %v1753, %v1833
      %v1852 = vadd.f32 %v1754, %v1835
      %v1853 = vadd.f32 %v1755, %v1837
      %v1854 = vadd.f32 %v1756, %v1839
      %v1855 = vadd.f32 %v1757, %v1843
      %v1856 = vadd.f32 %v1758, %v1845
      %v1857 = vadd.f32 %v1759, %v1847
      %v1858 = vadd.f32 %v1760, %v1849
      %v1859 = vpack.c.bf16 %v1853, %v1851
      %v1860 = vpack.c.bf16 %v1854, %v1852
      %v1861 = vpack.c.bf16 %v1857, %v1855
      %v1862 = vpack.c.bf16 %v1858, %v1856
      %1867 = vrot.lane.b32.xlu0 %v1859, 17
      %v1868 = vpop.permute.xlu0 %1867
      %1869 = vrot.lane.b32.xlu0 %v1860, 17
      %v1870 = vpop.permute.xlu0 %1869
      %1871 = vrot.lane.b32.xlu0 %v1861, 17
      %v1872 = vpop.permute.xlu0 %1871
      %1873 = vrot.lane.b32.xlu0 %v1862, 17
      %v1874 = vpop.permute.xlu0 %1873
      %v1875 = vsel %vm246, %v1868, %v1870
      %v1876 = vsel %vm246, %v1872, %v1874
      %v1880 = vsel %vm249, 0, %v1868
      %v1883 = vsel %vm249, 0, %v1872
      %v1886 = vsel %vm249, %v1870, 0
      %v1889 = vsel %vm249, %v1874, 0
      %v1891 = vsel %vm271, %v1880, 0
      %v1892 = vsel %vm272, %v1875, 0
      %v1893 = vsel %vm271, %v1883, 0
      %v1894 = vsel %vm272, %v1876, 0
      %v1895 = vld [vmem:[%s3] sm:$0xf]
      %v1896 = vld [vmem:[%s3 + $0x4] sm:$0xf]
      %v1897 = vld [vmem:[%s3 + $0x8] sm:$0xf]
      %v1898 = vld [vmem:[%s3 + $0xc] sm:$0xf]
      %v1899 = vld [vmem:[%s3 + $0x10] sm:$0xf]
      %v1900 = vld [vmem:[%s3 + $0x14] sm:$0xf]
      %v1901 = vld [vmem:[%s3 + $0x18] sm:$0xf]
      %v1902 = vld [vmem:[%s3 + $0x1c] sm:$0xf]
      %s1903 = scalar_lea.vmem %s3, 32
      %v1904 = vld [vmem:[%s1903] sm:$0xf]
      %v1905 = vld [vmem:[%s1903 + $0x4] sm:$0xf]
      %v1906 = vld [vmem:[%s1903 + $0x8] sm:$0xf]
      %v1907 = vld [vmem:[%s1903 + $0xc] sm:$0xf]
      %v1908 = vld [vmem:[%s1903 + $0x10] sm:$0xf]
      %v1909 = vld [vmem:[%s1903 + $0x14] sm:$0xf]
      %v1910 = vld [vmem:[%s1903 + $0x18] sm:$0xf]
      %v1911 = vld [vmem:[%s1903 + $0x1c] sm:$0xf]
      %v1920 = vunpack.c.l.b16 %v1904
      %v1921 = vunpack.c.l.b16 %v1905
      %v1922 = vunpack.c.l.b16 %v1906
      %v1923 = vunpack.c.l.b16 %v1907
      %v1924 = vunpack.c.l.b16 %v1908
      %v1925 = vunpack.c.l.b16 %v1909
      %v1926 = vunpack.c.l.b16 %v1910
      %v1927 = vunpack.c.l.b16 %v1911
      %v1928 = vpack.c.b16 %v1921, %v1920
      %v1929 = vpack.c.b16 %v1923, %v1922
      %v1930 = vpack.c.b16 %v1925, %v1924
      %v1931 = vpack.c.b16 %v1927, %v1926
      %1936 = vrot.lane.b32.xlu0 %v1880, 127
      %v1937 = vpop.permute.xlu0 %1936
      %1938 = vrot.lane.b32.xlu0 %v1875, 127
      %v1939 = vpop.permute.xlu0 %1938
      %1940 = vrot.lane.b32.xlu0 %v1886, 127
      %v1941 = vpop.permute.xlu0 %1940
      %1942 = vrot.lane.b32.xlu0 %v1883, 127
      %v1943 = vpop.permute.xlu0 %1942
      %1944 = vrot.lane.b32.xlu0 %v1876, 127
      %v1945 = vpop.permute.xlu0 %1944
      %1946 = vrot.lane.b32.xlu0 %v1889, 127
      %v1947 = vpop.permute.xlu0 %1946
      %v1948 = vsel %vm293, %v1937, %v1939
      %v1949 = vsel %vm293, %v1939, %v1941
      %v1950 = vsel %vm293, %v1943, %v1945
      %v1951 = vsel %vm293, %v1945, %v1947
      %vm1956 = vcmask 261120
      %v1958 = vsel %vm1956, %v1928, 0
      %v1961 = vsel %vm1956, %v1929, 0
      %v1964 = vsel %vm1956, %v1930, 0
      %v1967 = vsel %vm1956, %v1931, 0
      %1969 = vmatprep.subr.bf16.mxu0 %v1949
      %1970 = vmatpush1.bf16.msra.mxu0 %v1948
      %1971 = vmatprep.subr.bf16.mxu0 %v1951
      %1972 = vmatpush1.bf16.msra.mxu0 %v1950
      %1973 = vmatprep.subr.bf16.mxu0 0
      %1974 = vmatpush1.bf16.msra.mxu0 0
      %1975 = vmatprep.subr.bf16.mxu0 0
      %1976 = vmatpush1.bf16.msra.mxu0 0
      %1977 = vmatprep.subr.bf16.mxu0 0
      %1978 = vmatpush1.bf16.msra.mxu0 0
      %1979 = vmatprep.subr.bf16.mxu0 0
      %1980 = vmatpush1.bf16.msra.mxu0 0
      %1981 = vmatprep.subr.bf16.mxu0 0
      %1982 = vmatpush1.bf16.msra.mxu0 0
      %1983 = vmatprep.subr.bf16.mxu0 0
      %1984 = vmatpush1.bf16.msra.mxu0 0
      %1985 = vmatprep.subr.bf16.mxu0 0
      %1986 = vmatpush1.bf16.msra.mxu0 0
      %1987 = vmatprep.subr.bf16.mxu0 0
      %1988 = vmatpush1.bf16.msra.mxu0 0
      %1989 = vmatprep.subr.bf16.mxu0 0
      %1990 = vmatpush1.bf16.msra.mxu0 0
      %1991 = vmatprep.subr.bf16.mxu0 0
      %1992 = vmatpush1.bf16.msra.mxu0 0
      %1993 = vmatprep.subr.bf16.mxu0 0
      %1994 = vmatpush1.bf16.msra.mxu0 0
      %1995 = vmatprep.subr.bf16.mxu0 0
      %1996 = vmatpush1.bf16.msra.mxu0 0
      %1997 = vmatprep.subr.bf16.mxu0 0
      %1998 = vmatpush1.bf16.msra.mxu0 0
      %1999 = vmatprep.subr.bf16.mxu0 0
      %2000 = vmatpush1.bf16.msra.mxu0 0
      %2001 = vmatprep.mubr.bf16.mxu0 0
      %2002 = vmatmul.mubr.bf16.gmra.mrb[0].mxu0 %v1958
      %v2003 = vpop.f32.mrb[0].mxu0
      %v2004 = vadd.f32 0.0, %v2003
      %v2005 = vpop.f32.mrb[0].mxu0
      %v2006 = vadd.f32 0.0, %v2005
      %v2007 = vpop.f32.mrb[0].mxu0
      %v2008 = vadd.f32 0.0, %v2007
      %v2009 = vpop.f32.mrb[0].mxu0
      %v2010 = vadd.f32 0.0, %v2009
      %2011 = vmatprep.mubr.bf16.mxu0 0
      %2012 = vmatmul.mubr.bf16.gmra.mrb[0].mxu0 %v1961
      %v2013 = vpop.f32.mrb[0].mxu0
      %v2014 = vadd.f32 0.0, %v2013
      %v2015 = vpop.f32.mrb[0].mxu0
      %v2016 = vadd.f32 0.0, %v2015
      %v2017 = vpop.f32.mrb[0].mxu0
      %v2018 = vadd.f32 0.0, %v2017
      %v2019 = vpop.f32.mrb[0].mxu0
      %v2020 = vadd.f32 0.0, %v2019
      %2021 = vmatprep.mubr.bf16.mxu0 0
      %2022 = vmatmul.mubr.bf16.gmra.mrb[0].mxu0 %v1964
      %v2023 = vpop.f32.mrb[0].mxu0
      %v2024 = vadd.f32 0.0, %v2023
      %v2025 = vpop.f32.mrb[0].mxu0
      %v2026 = vadd.f32 0.0, %v2025
      %v2027 = vpop.f32.mrb[0].mxu0
      %v2028 = vadd.f32 0.0, %v2027
      %v2029 = vpop.f32.mrb[0].mxu0
      %v2030 = vadd.f32 0.0, %v2029
      %2031 = vmatprep.mubr.bf16.mxu0 0
      %2032 = vmatmul.mubr.bf16.gmra.mrb[0].mxu0 %v1967
      %v2033 = vpop.f32.mrb[0].mxu0
      %v2034 = vadd.f32 0.0, %v2033
      %v2035 = vpop.f32.mrb[0].mxu0
      %v2036 = vadd.f32 0.0, %v2035
      %v2037 = vpop.f32.mrb[0].mxu0
      %v2038 = vadd.f32 0.0, %v2037
      %v2039 = vpop.f32.mrb[0].mxu0
      %v2040 = vadd.f32 0.0, %v2039
      %2041 = vdwg.mxu0
      %v2050 = vunpack.c.l.b16 %v1895
      %v2051 = vunpack.c.l.b16 %v1896
      %v2052 = vunpack.c.l.b16 %v1897
      %v2053 = vunpack.c.l.b16 %v1898
      %v2054 = vunpack.c.l.b16 %v1899
      %v2055 = vunpack.c.l.b16 %v1900
      %v2056 = vunpack.c.l.b16 %v1901
      %v2057 = vunpack.c.l.b16 %v1902
      %v2058 = vpack.c.b16 %v2051, %v2050
      %v2059 = vpack.c.b16 %v2053, %v2052
      %v2060 = vpack.c.b16 %v2055, %v2054
      %v2061 = vpack.c.b16 %v2057, %v2056
      %v2063 = vsel %vm1956, %v2058, 0
      %v2066 = vsel %vm1956, %v2059, 0
      %v2069 = vsel %vm1956, %v2060, 0
      %v2072 = vsel %vm1956, %v2061, 0
      %2074 = vmatprep.subr.bf16.mxu0 %v1892
      %2075 = vmatpush1.bf16.msra.mxu0 %v1891
      %2076 = vmatprep.subr.bf16.mxu0 %v1894
      %2077 = vmatpush1.bf16.msra.mxu0 %v1893
      %2078 = vmatprep.subr.bf16.mxu0 0
      %2079 = vmatpush1.bf16.msra.mxu0 0
      %2080 = vmatprep.subr.bf16.mxu0 0
      %2081 = vmatpush1.bf16.msra.mxu0 0
      %2082 = vmatprep.subr.bf16.mxu0 0
      %2083 = vmatpush1.bf16.msra.mxu0 0
      %2084 = vmatprep.subr.bf16.mxu0 0
      %2085 = vmatpush1.bf16.msra.mxu0 0
      %2086 = vmatprep.subr.bf16.mxu0 0
      %2087 = vmatpush1.bf16.msra.mxu0 0
      %2088 = vmatprep.subr.bf16.mxu0 0
      %2089 = vmatpush1.bf16.msra.mxu0 0
      %2090 = vmatprep.subr.bf16.mxu0 0
      %2091 = vmatpush1.bf16.msra.mxu0 0
      %2092 = vmatprep.subr.bf16.mxu0 0
      %2093 = vmatpush1.bf16.msra.mxu0 0
      %2094 = vmatprep.subr.bf16.mxu0 0
      %2095 = vmatpush1.bf16.msra.mxu0 0
      %2096 = vmatprep.subr.bf16.mxu0 0
      %2097 = vmatpush1.bf16.msra.mxu0 0
      %2098 = vmatprep.subr.bf16.mxu0 0
      %2099 = vmatpush1.bf16.msra.mxu0 0
      %2100 = vmatprep.subr.bf16.mxu0 0
      %2101 = vmatpush1.bf16.msra.mxu0 0
      %2102 = vmatprep.subr.bf16.mxu0 0
      %2103 = vmatpush1.bf16.msra.mxu0 0
      %2104 = vmatprep.subr.bf16.mxu0 0
      %2105 = vmatpush1.bf16.msra.mxu0 0
      %2106 = vmatprep.mubr.bf16.mxu0 0
      %2107 = vmatmul.mubr.bf16.gmra.mrb[0].mxu0 %v2063
      %v2108 = vpop.f32.mrb[0].mxu0
      %v2109 = vadd.f32 %v2004, %v2108
      %v2110 = vpop.f32.mrb[0].mxu0
      %v2111 = vadd.f32 %v2006, %v2110
      %v2112 = vpop.f32.mrb[0].mxu0
      %v2113 = vadd.f32 %v2008, %v2112
      %v2114 = vpop.f32.mrb[0].mxu0
      %v2115 = vadd.f32 %v2010, %v2114
      %2116 = vmatprep.mubr.bf16.mxu0 0
      %2117 = vmatmul.mubr.bf16.gmra.mrb[0].mxu0 %v2066
      %v2118 = vpop.f32.mrb[0].mxu0
      %v2119 = vadd.f32 %v2014, %v2118
      %v2120 = vpop.f32.mrb[0].mxu0
      %v2121 = vadd.f32 %v2016, %v2120
      %v2122 = vpop.f32.mrb[0].mxu0
      %v2123 = vadd.f32 %v2018, %v2122
      %v2124 = vpop.f32.mrb[0].mxu0
      %v2125 = vadd.f32 %v2020, %v2124
      %2126 = vmatprep.mubr.bf16.mxu0 0
      %2127 = vmatmul.mubr.bf16.gmra.mrb[0].mxu0 %v2069
      %v2128 = vpop.f32.mrb[0].mxu0
      %v2129 = vadd.f32 %v2024, %v2128
      %v2130 = vpop.f32.mrb[0].mxu0
      %v2131 = vadd.f32 %v2026, %v2130
      %v2132 = vpop.f32.mrb[0].mxu0
      %v2133 = vadd.f32 %v2028, %v2132
      %v2134 = vpop.f32.mrb[0].mxu0
      %v2135 = vadd.f32 %v2030, %v2134
      %2136 = vmatprep.mubr.bf16.mxu0 0
      %2137 = vmatmul.mubr.bf16.gmra.mrb[0].mxu0 %v2072
      %v2138 = vpop.f32.mrb[0].mxu0
      %v2139 = vadd.f32 %v2034, %v2138
      %v2140 = vpop.f32.mrb[0].mxu0
      %v2141 = vadd.f32 %v2036, %v2140
      %v2142 = vpop.f32.mrb[0].mxu0
      %v2143 = vadd.f32 %v2038, %v2142
      %v2144 = vpop.f32.mrb[0].mxu0
      %v2145 = vadd.f32 %v2040, %v2144
      %2146 = vdwg.mxu0
      %v2147 = vsel %vm427, %v1880, 0
      %v2148 = vsel %vm428, %v1875, 0
      %v2149 = vsel %vm429, %v1886, 0
      %v2150 = vsel %vm427, %v1883, 0
      %v2151 = vsel %vm428, %v1876, 0
      %v2152 = vsel %vm429, %v1889, 0
      %s2153 = scalar_lea.vmem %s3, 64
      %v2154 = vld [vmem:[%s2153] sm:$0xf]
      %v2155 = vld [vmem:[%s2153 + $0x4] sm:$0xf]
      %v2156 = vld [vmem:[%s2153 + $0x8] sm:$0xf]
      %v2157 = vld [vmem:[%s2153 + $0xc] sm:$0xf]
      %v2158 = vld [vmem:[%s2153 + $0x10] sm:$0xf]
      %v2159 = vld [vmem:[%s2153 + $0x14] sm:$0xf]
      %v2160 = vld [vmem:[%s2153 + $0x18] sm:$0xf]
      %v2161 = vld [vmem:[%s2153 + $0x1c] sm:$0xf]
      %v2170 = vunpack.c.l.b16 %v2154
      %v2171 = vunpack.c.l.b16 %v2155
      %v2172 = vunpack.c.l.b16 %v2156
      %v2173 = vunpack.c.l.b16 %v2157
      %v2174 = vunpack.c.l.b16 %v2158
      %v2175 = vunpack.c.l.b16 %v2159
      %v2176 = vunpack.c.l.b16 %v2160
      %v2177 = vunpack.c.l.b16 %v2161
      %v2178 = vpack.c.b16 %v2171, %v2170
      %v2179 = vpack.c.b16 %v2173, %v2172
      %v2180 = vpack.c.b16 %v2175, %v2174
      %v2181 = vpack.c.b16 %v2177, %v2176
      %2188 = vrot.lane.b32.xlu0 %v2147, 126
      %v2189 = vpop.permute.xlu0 %2188
      %2190 = vrot.lane.b32.xlu0 %v2148, 126
      %v2191 = vpop.permute.xlu0 %2190
      %2192 = vrot.lane.b32.xlu0 %v2149, 126
      %v2193 = vpop.permute.xlu0 %2192
      %2194 = vrot.lane.b32.xlu0 %v2150, 126
      %v2195 = vpop.permute.xlu0 %2194
      %2196 = vrot.lane.b32.xlu0 %v2151, 126
      %v2197 = vpop.permute.xlu0 %2196
      %2198 = vrot.lane.b32.xlu0 %v2152, 126
      %v2199 = vpop.permute.xlu0 %2198
      %v2200 = vsel %vm450, %v2189, %v2191
      %v2201 = vsel %vm450, %v2191, %v2193
      %v2202 = vsel %vm450, %v2195, %v2197
      %v2203 = vsel %vm450, %v2197, %v2199
      %v2209 = vsel %vm1956, %v2178, 0
      %v2212 = vsel %vm1956, %v2179, 0
      %v2215 = vsel %vm1956, %v2180, 0
      %v2218 = vsel %vm1956, %v2181, 0
      %2220 = vmatprep.subr.bf16.mxu0 %v2201
      %2221 = vmatpush1.bf16.msra.mxu0 %v2200
      %2222 = vmatprep.subr.bf16.mxu0 %v2203
      %2223 = vmatpush1.bf16.msra.mxu0 %v2202
      %2224 = vmatprep.subr.bf16.mxu0 0
      %2225 = vmatpush1.bf16.msra.mxu0 0
      %2226 = vmatprep.subr.bf16.mxu0 0
      %2227 = vmatpush1.bf16.msra.mxu0 0
      %2228 = vmatprep.subr.bf16.mxu0 0
      %2229 = vmatpush1.bf16.msra.mxu0 0
      %2230 = vmatprep.subr.bf16.mxu0 0
      %2231 = vmatpush1.bf16.msra.mxu0 0
      %2232 = vmatprep.subr.bf16.mxu0 0
      %2233 = vmatpush1.bf16.msra.mxu0 0
      %2234 = vmatprep.subr.bf16.mxu0 0
      %2235 = vmatpush1.bf16.msra.mxu0 0
      %2236 = vmatprep.subr.bf16.mxu0 0
      %2237 = vmatpush1.bf16.msra.mxu0 0
      %2238 = vmatprep.subr.bf16.mxu0 0
      %2239 = vmatpush1.bf16.msra.mxu0 0
      %2240 = vmatprep.subr.bf16.mxu0 0
      %2241 = vmatpush1.bf16.msra.mxu0 0
      %2242 = vmatprep.subr.bf16.mxu0 0
      %2243 = vmatpush1.bf16.msra.mxu0 0
      %2244 = vmatprep.subr.bf16.mxu0 0
      %2245 = vmatpush1.bf16.msra.mxu0 0
      %2246 = vmatprep.subr.bf16.mxu0 0
      %2247 = vmatpush1.bf16.msra.mxu0 0
      %2248 = vmatprep.subr.bf16.mxu0 0
      %2249 = vmatpush1.bf16.msra.mxu0 0
      %2250 = vmatprep.subr.bf16.mxu0 0
      %2251 = vmatpush1.bf16.msra.mxu0 0
      %2252 = vmatprep.mubr.bf16.mxu0 0
      %2253 = vmatmul.mubr.bf16.gmra.mrb[0].mxu0 %v2209
      %v2254 = vpop.f32.mrb[0].mxu0
      %v2255 = vadd.f32 0.0, %v2254
      %v2256 = vpop.f32.mrb[0].mxu0
      %v2257 = vadd.f32 0.0, %v2256
      %v2258 = vpop.f32.mrb[0].mxu0
      %v2259 = vadd.f32 0.0, %v2258
      %v2260 = vpop.f32.mrb[0].mxu0
      %v2261 = vadd.f32 0.0, %v2260
      %2262 = vmatprep.mubr.bf16.mxu0 0
      %2263 = vmatmul.mubr.bf16.gmra.mrb[0].mxu0 %v2212
      %v2264 = vpop.f32.mrb[0].mxu0
      %v2265 = vadd.f32 0.0, %v2264
      %v2266 = vpop.f32.mrb[0].mxu0
      %v2267 = vadd.f32 0.0, %v2266
      %v2268 = vpop.f32.mrb[0].mxu0
      %v2269 = vadd.f32 0.0, %v2268
      %v2270 = vpop.f32.mrb[0].mxu0
      %v2271 = vadd.f32 0.0, %v2270
      %2272 = vmatprep.mubr.bf16.mxu0 0
      %2273 = vmatmul.mubr.bf16.gmra.mrb[0].mxu0 %v2215
      %v2274 = vpop.f32.mrb[0].mxu0
      %v2275 = vadd.f32 0.0, %v2274
      %v2276 = vpop.f32.mrb[0].mxu0
      %v2277 = vadd.f32 0.0, %v2276
      %v2278 = vpop.f32.mrb[0].mxu0
      %v2279 = vadd.f32 0.0, %v2278
      %v2280 = vpop.f32.mrb[0].mxu0
      %v2281 = vadd.f32 0.0, %v2280
      %2282 = vmatprep.mubr.bf16.mxu0 0
      %2283 = vmatmul.mubr.bf16.gmra.mrb[0].mxu0 %v2218
      %v2284 = vpop.f32.mrb[0].mxu0
      %v2285 = vadd.f32 0.0, %v2284
      %v2286 = vpop.f32.mrb[0].mxu0
      %v2287 = vadd.f32 0.0, %v2286
      %v2288 = vpop.f32.mrb[0].mxu0
      %v2289 = vadd.f32 0.0, %v2288
      %v2290 = vpop.f32.mrb[0].mxu0
      %v2291 = vadd.f32 0.0, %v2290
      %2292 = vdwg.mxu0
      %v2293 = vadd.f32 %v2109, %v2255
      %v2294 = vadd.f32 %v2111, %v2257
      %v2295 = vadd.f32 %v2113, %v2259
      %v2296 = vadd.f32 %v2115, %v2261
      %v2297 = vadd.f32 %v2119, %v2265
      %v2298 = vadd.f32 %v2121, %v2267
      %v2299 = vadd.f32 %v2123, %v2269
      %v2300 = vadd.f32 %v2125, %v2271
      %v2301 = vadd.f32 %v2129, %v2275
      %v2302 = vadd.f32 %v2131, %v2277
      %v2303 = vadd.f32 %v2133, %v2279
      %v2304 = vadd.f32 %v2135, %v2281
      %v2305 = vadd.f32 %v2139, %v2285
      %v2306 = vadd.f32 %v2141, %v2287
      %v2307 = vadd.f32 %v2143, %v2289
      %v2308 = vadd.f32 %v2145, %v2291
      %v2309 = vsel %vm515, %v1880, 0
      %v2310 = vsel %vm516, %v1875, 0
      %v2311 = vsel %vm517, %v1886, 0
      %v2312 = vsel %vm515, %v1883, 0
      %v2313 = vsel %vm516, %v1876, 0
      %v2314 = vsel %vm517, %v1889, 0
      %s2315 = scalar_lea.vmem %s3, 96
      %v2316 = vld [vmem:[%s2315] sm:$0xf]
      %v2317 = vld [vmem:[%s2315 + $0x4] sm:$0xf]
      %v2318 = vld [vmem:[%s2315 + $0x8] sm:$0xf]
      %v2319 = vld [vmem:[%s2315 + $0xc] sm:$0xf]
      %v2320 = vld [vmem:[%s2315 + $0x10] sm:$0xf]
      %v2321 = vld [vmem:[%s2315 + $0x14] sm:$0xf]
      %v2322 = vld [vmem:[%s2315 + $0x18] sm:$0xf]
      %v2323 = vld [vmem:[%s2315 + $0x1c] sm:$0xf]
      %v2332 = vunpack.c.l.b16 %v2316
      %v2333 = vunpack.c.l.b16 %v2317
      %v2334 = vunpack.c.l.b16 %v2318
      %v2335 = vunpack.c.l.b16 %v2319
      %v2336 = vunpack.c.l.b16 %v2320
      %v2337 = vunpack.c.l.b16 %v2321
      %v2338 = vunpack.c.l.b16 %v2322
      %v2339 = vunpack.c.l.b16 %v2323
      %v2340 = vpack.c.b16 %v2333, %v2332
      %v2341 = vpack.c.b16 %v2335, %v2334
      %v2342 = vpack.c.b16 %v2337, %v2336
      %v2343 = vpack.c.b16 %v2339, %v2338
      %2350 = vrot.lane.b32.xlu0 %v2309, 112
      %v2351 = vpop.permute.xlu0 %2350
      %2352 = vrot.lane.b32.xlu0 %v2310, 112
      %v2353 = vpop.permute.xlu0 %2352
      %2354 = vrot.lane.b32.xlu0 %v2311, 112
      %v2355 = vpop.permute.xlu0 %2354
      %2356 = vrot.lane.b32.xlu0 %v2312, 112
      %v2357 = vpop.permute.xlu0 %2356
      %2358 = vrot.lane.b32.xlu0 %v2313, 112
      %v2359 = vpop.permute.xlu0 %2358
      %2360 = vrot.lane.b32.xlu0 %v2314, 112
      %v2361 = vpop.permute.xlu0 %2360
      %v2362 = vsel %vm538, %v2351, %v2353
      %v2363 = vsel %vm538, %v2353, %v2355
      %v2364 = vsel %vm538, %v2357, %v2359
      %v2365 = vsel %vm538, %v2359, %v2361
      %v2371 = vsel %vm1956, %v2340, 0
      %v2374 = vsel %vm1956, %v2341, 0
      %v2377 = vsel %vm1956, %v2342, 0
      %v2380 = vsel %vm1956, %v2343, 0
      %2382 = vmatprep.subr.bf16.mxu0 %v2363
      %2383 = vmatpush1.bf16.msra.mxu0 %v2362
      %2384 = vmatprep.subr.bf16.mxu0 %v2365
      %2385 = vmatpush1.bf16.msra.mxu0 %v2364
      %2386 = vmatprep.subr.bf16.mxu0 0
      %2387 = vmatpush1.bf16.msra.mxu0 0
      %2388 = vmatprep.subr.bf16.mxu0 0
      %2389 = vmatpush1.bf16.msra.mxu0 0
      %2390 = vmatprep.subr.bf16.mxu0 0
      %2391 = vmatpush1.bf16.msra.mxu0 0
      %2392 = vmatprep.subr.bf16.mxu0 0
      %2393 = vmatpush1.bf16.msra.mxu0 0
      %2394 = vmatprep.subr.bf16.mxu0 0
      %2395 = vmatpush1.bf16.msra.mxu0 0
      %2396 = vmatprep.subr.bf16.mxu0 0
      %2397 = vmatpush1.bf16.msra.mxu0 0
      %2398 = vmatprep.subr.bf16.mxu0 0
      %2399 = vmatpush1.bf16.msra.mxu0 0
      %2400 = vmatprep.subr.bf16.mxu0 0
      %2401 = vmatpush1.bf16.msra.mxu0 0
      %2402 = vmatprep.subr.bf16.mxu0 0
      %2403 = vmatpush1.bf16.msra.mxu0 0
      %2404 = vmatprep.subr.bf16.mxu0 0
      %2405 = vmatpush1.bf16.msra.mxu0 0
      %2406 = vmatprep.subr.bf16.mxu0 0
      %2407 = vmatpush1.bf16.msra.mxu0 0
      %2408 = vmatprep.subr.bf16.mxu0 0
      %2409 = vmatpush1.bf16.msra.mxu0 0
      %2410 = vmatprep.subr.bf16.mxu0 0
      %2411 = vmatpush1.bf16.msra.mxu0 0
      %2412 = vmatprep.subr.bf16.mxu0 0
      %2413 = vmatpush1.bf16.msra.mxu0 0
      %2414 = vmatprep.mubr.bf16.mxu0 0
      %2415 = vmatmul.mubr.bf16.gmra.mrb[0].mxu0 %v2371
      %v2416 = vpop.f32.mrb[0].mxu0
      %v2417 = vadd.f32 0.0, %v2416
      %v2418 = vpop.f32.mrb[0].mxu0
      %v2419 = vadd.f32 0.0, %v2418
      %v2420 = vpop.f32.mrb[0].mxu0
      %v2421 = vadd.f32 0.0, %v2420
      %v2422 = vpop.f32.mrb[0].mxu0
      %v2423 = vadd.f32 0.0, %v2422
      %2424 = vmatprep.mubr.bf16.mxu0 0
      %2425 = vmatmul.mubr.bf16.gmra.mrb[0].mxu0 %v2374
      %v2426 = vpop.f32.mrb[0].mxu0
      %v2427 = vadd.f32 0.0, %v2426
      %v2428 = vpop.f32.mrb[0].mxu0
      %v2429 = vadd.f32 0.0, %v2428
      %v2430 = vpop.f32.mrb[0].mxu0
      %v2431 = vadd.f32 0.0, %v2430
      %v2432 = vpop.f32.mrb[0].mxu0
      %v2433 = vadd.f32 0.0, %v2432
      %2434 = vmatprep.mubr.bf16.mxu0 0
      %2435 = vmatmul.mubr.bf16.gmra.mrb[0].mxu0 %v2377
      %v2436 = vpop.f32.mrb[0].mxu0
      %v2437 = vadd.f32 0.0, %v2436
      %v2438 = vpop.f32.mrb[0].mxu0
      %v2439 = vadd.f32 0.0, %v2438
      %v2440 = vpop.f32.mrb[0].mxu0
      %v2441 = vadd.f32 0.0, %v2440
      %v2442 = vpop.f32.mrb[0].mxu0
      %v2443 = vadd.f32 0.0, %v2442
      %2444 = vmatprep.mubr.bf16.mxu0 0
      %2445 = vmatmul.mubr.bf16.gmra.mrb[0].mxu0 %v2380
      %v2446 = vpop.f32.mrb[0].mxu0
      %v2447 = vadd.f32 0.0, %v2446
      %v2448 = vpop.f32.mrb[0].mxu0
      %v2449 = vadd.f32 0.0, %v2448
      %v2450 = vpop.f32.mrb[0].mxu0
      %v2451 = vadd.f32 0.0, %v2450
      %v2452 = vpop.f32.mrb[0].mxu0
      %v2453 = vadd.f32 0.0, %v2452
      %2454 = vdwg.mxu0
      %v2455 = vadd.f32 %v2293, %v2417
      %v2456 = vadd.f32 %v2294, %v2419
      %v2457 = vadd.f32 %v2295, %v2421
      %v2458 = vadd.f32 %v2296, %v2423
      %v2459 = vadd.f32 %v2297, %v2427
      %v2460 = vadd.f32 %v2298, %v2429
      %v2461 = vadd.f32 %v2299, %v2431
      %v2462 = vadd.f32 %v2300, %v2433
      %v2463 = vadd.f32 %v2301, %v2437
      %v2464 = vadd.f32 %v2302, %v2439
      %v2465 = vadd.f32 %v2303, %v2441
      %v2466 = vadd.f32 %v2304, %v2443
      %v2467 = vadd.f32 %v2305, %v2447
      %v2468 = vadd.f32 %v2306, %v2449
      %v2469 = vadd.f32 %v2307, %v2451
      %v2470 = vadd.f32 %v2308, %v2453
      %s2471 = scalar_lea.vmem %s3, 128
      %v2472 = vld [vmem:[%s2471] sm:$0xf]
      %v2473 = vld [vmem:[%s2471 + $0x4] sm:$0xf]
      %v2474 = vld [vmem:[%s2471 + $0x8] sm:$0xf]
      %v2475 = vld [vmem:[%s2471 + $0xc] sm:$0xf]
      %v2476 = vld [vmem:[%s2471 + $0x10] sm:$0xf]
      %v2477 = vld [vmem:[%s2471 + $0x14] sm:$0xf]
      %v2478 = vld [vmem:[%s2471 + $0x18] sm:$0xf]
      %v2479 = vld [vmem:[%s2471 + $0x1c] sm:$0xf]
      %v2488 = vunpack.c.l.b16 %v2472
      %v2489 = vunpack.c.l.b16 %v2473
      %v2490 = vunpack.c.l.b16 %v2474
      %v2491 = vunpack.c.l.b16 %v2475
      %v2492 = vunpack.c.l.b16 %v2476
      %v2493 = vunpack.c.l.b16 %v2477
      %v2494 = vunpack.c.l.b16 %v2478
      %v2495 = vunpack.c.l.b16 %v2479
      %v2496 = vpack.c.b16 %v2489, %v2488
      %v2497 = vpack.c.b16 %v2491, %v2490
      %v2498 = vpack.c.b16 %v2493, %v2492
      %v2499 = vpack.c.b16 %v2495, %v2494
      %2500 = vrot.lane.b32.xlu0 %v1880, 111
      %v2501 = vpop.permute.xlu0 %2500
      %2502 = vrot.lane.b32.xlu0 %v1875, 111
      %v2503 = vpop.permute.xlu0 %2502
      %2504 = vrot.lane.b32.xlu0 %v1886, 111
      %v2505 = vpop.permute.xlu0 %2504
      %2506 = vrot.lane.b32.xlu0 %v1883, 111
      %v2507 = vpop.permute.xlu0 %2506
      %2508 = vrot.lane.b32.xlu0 %v1876, 111
      %v2509 = vpop.permute.xlu0 %2508
      %2510 = vrot.lane.b32.xlu0 %v1889, 111
      %v2511 = vpop.permute.xlu0 %2510
      %v2512 = vsel %vm611, %v2501, %v2503
      %v2513 = vsel %vm611, %v2503, %v2505
      %v2514 = vsel %vm611, %v2507, %v2509
      %v2515 = vsel %vm611, %v2509, %v2511
      %v2521 = vsel %vm1956, %v2496, 0
      %v2524 = vsel %vm1956, %v2497, 0
      %v2527 = vsel %vm1956, %v2498, 0
      %v2530 = vsel %vm1956, %v2499, 0
      %2532 = vmatprep.subr.bf16.mxu0 %v2513
      %2533 = vmatpush1.bf16.msra.mxu0 %v2512
      %2534 = vmatprep.subr.bf16.mxu0 %v2515
      %2535 = vmatpush1.bf16.msra.mxu0 %v2514
      %2536 = vmatprep.subr.bf16.mxu0 0
      %2537 = vmatpush1.bf16.msra.mxu0 0
      %2538 = vmatprep.subr.bf16.mxu0 0
      %2539 = vmatpush1.bf16.msra.mxu0 0
      %2540 = vmatprep.subr.bf16.mxu0 0
      %2541 = vmatpush1.bf16.msra.mxu0 0
      %2542 = vmatprep.subr.bf16.mxu0 0
      %2543 = vmatpush1.bf16.msra.mxu0 0
      %2544 = vmatprep.subr.bf16.mxu0 0
      %2545 = vmatpush1.bf16.msra.mxu0 0
      %2546 = vmatprep.subr.bf16.mxu0 0
      %2547 = vmatpush1.bf16.msra.mxu0 0
      %2548 = vmatprep.subr.bf16.mxu0 0
      %2549 = vmatpush1.bf16.msra.mxu0 0
      %2550 = vmatprep.subr.bf16.mxu0 0
      %2551 = vmatpush1.bf16.msra.mxu0 0
      %2552 = vmatprep.subr.bf16.mxu0 0
      %2553 = vmatpush1.bf16.msra.mxu0 0
      %2554 = vmatprep.subr.bf16.mxu0 0
      %2555 = vmatpush1.bf16.msra.mxu0 0
      %2556 = vmatprep.subr.bf16.mxu0 0
      %2557 = vmatpush1.bf16.msra.mxu0 0
      %2558 = vmatprep.subr.bf16.mxu0 0
      %2559 = vmatpush1.bf16.msra.mxu0 0
      %2560 = vmatprep.subr.bf16.mxu0 0
      %2561 = vmatpush1.bf16.msra.mxu0 0
      %2562 = vmatprep.subr.bf16.mxu0 0
      %2563 = vmatpush1.bf16.msra.mxu0 0
      %2564 = vmatprep.mubr.bf16.mxu0 0
      %2565 = vmatmul.mubr.bf16.gmra.mrb[0].mxu0 %v2521
      %v2566 = vpop.f32.mrb[0].mxu0
      %v2567 = vadd.f32 0.0, %v2566
      %v2568 = vpop.f32.mrb[0].mxu0
      %v2569 = vadd.f32 0.0, %v2568
      %v2570 = vpop.f32.mrb[0].mxu0
      %v2571 = vadd.f32 0.0, %v2570
      %v2572 = vpop.f32.mrb[0].mxu0
      %v2573 = vadd.f32 0.0, %v2572
      %2574 = vmatprep.mubr.bf16.mxu0 0
      %2575 = vmatmul.mubr.bf16.gmra.mrb[0].mxu0 %v2524
      %v2576 = vpop.f32.mrb[0].mxu0
      %v2577 = vadd.f32 0.0, %v2576
      %v2578 = vpop.f32.mrb[0].mxu0
      %v2579 = vadd.f32 0.0, %v2578
      %v2580 = vpop.f32.mrb[0].mxu0
      %v2581 = vadd.f32 0.0, %v2580
      %v2582 = vpop.f32.mrb[0].mxu0
      %v2583 = vadd.f32 0.0, %v2582
      %2584 = vmatprep.mubr.bf16.mxu0 0
      %2585 = vmatmul.mubr.bf16.gmra.mrb[0].mxu0 %v2527
      %v2586 = vpop.f32.mrb[0].mxu0
      %v2587 = vadd.f32 0.0, %v2586
      %v2588 = vpop.f32.mrb[0].mxu0
      %v2589 = vadd.f32 0.0, %v2588
      %v2590 = vpop.f32.mrb[0].mxu0
      %v2591 = vadd.f32 0.0, %v2590
      %v2592 = vpop.f32.mrb[0].mxu0
      %v2593 = vadd.f32 0.0, %v2592
      %2594 = vmatprep.mubr.bf16.mxu0 0
      %2595 = vmatmul.mubr.bf16.gmra.mrb[0].mxu0 %v2530
      %v2596 = vpop.f32.mrb[0].mxu0
      %v2597 = vadd.f32 0.0, %v2596
      %v2598 = vpop.f32.mrb[0].mxu0
      %v2599 = vadd.f32 0.0, %v2598
      %v2600 = vpop.f32.mrb[0].mxu0
      %v2601 = vadd.f32 0.0, %v2600
      %v2602 = vpop.f32.mrb[0].mxu0
      %v2603 = vadd.f32 0.0, %v2602
      %2604 = vdwg.mxu0
      %v2605 = vadd.f32 %v2455, %v2567
      %v2606 = vadd.f32 %v2456, %v2569
      %v2607 = vadd.f32 %v2457, %v2571
      %v2608 = vadd.f32 %v2458, %v2573
      %v2609 = vadd.f32 %v2459, %v2577
      %v2610 = vadd.f32 %v2460, %v2579
      %v2611 = vadd.f32 %v2461, %v2581
      %v2612 = vadd.f32 %v2462, %v2583
      %v2613 = vadd.f32 %v2463, %v2587
      %v2614 = vadd.f32 %v2464, %v2589
      %v2615 = vadd.f32 %v2465, %v2591
      %v2616 = vadd.f32 %v2466, %v2593
      %v2617 = vadd.f32 %v2467, %v2597
      %v2618 = vadd.f32 %v2468, %v2599
      %v2619 = vadd.f32 %v2469, %v2601
      %v2620 = vadd.f32 %v2470, %v2603
      %v2621 = vsel %vm676, %v1880, 0
      %v2622 = vsel %vm677, %v1875, 0
      %v2623 = vsel %vm678, %v1886, 0
      %v2624 = vsel %vm676, %v1883, 0
      %v2625 = vsel %vm677, %v1876, 0
      %v2626 = vsel %vm678, %v1889, 0
      %s2627 = scalar_lea.vmem %s3, 160
      %v2628 = vld [vmem:[%s2627] sm:$0xf]
      %v2629 = vld [vmem:[%s2627 + $0x4] sm:$0xf]
      %v2630 = vld [vmem:[%s2627 + $0x8] sm:$0xf]
      %v2631 = vld [vmem:[%s2627 + $0xc] sm:$0xf]
      %v2632 = vld [vmem:[%s2627 + $0x10] sm:$0xf]
      %v2633 = vld [vmem:[%s2627 + $0x14] sm:$0xf]
      %v2634 = vld [vmem:[%s2627 + $0x18] sm:$0xf]
      %v2635 = vld [vmem:[%s2627 + $0x1c] sm:$0xf]
      %v2644 = vunpack.c.l.b16 %v2628
      %v2645 = vunpack.c.l.b16 %v2629
      %v2646 = vunpack.c.l.b16 %v2630
      %v2647 = vunpack.c.l.b16 %v2631
      %v2648 = vunpack.c.l.b16 %v2632
      %v2649 = vunpack.c.l.b16 %v2633
      %v2650 = vunpack.c.l.b16 %v2634
      %v2651 = vunpack.c.l.b16 %v2635
      %v2652 = vpack.c.b16 %v2645, %v2644
      %v2653 = vpack.c.b16 %v2647, %v2646
      %v2654 = vpack.c.b16 %v2649, %v2648
      %v2655 = vpack.c.b16 %v2651, %v2650
      %2662 = vrot.lane.b32.xlu0 %v2621, 110
      %v2663 = vpop.permute.xlu0 %2662
      %2664 = vrot.lane.b32.xlu0 %v2622, 110
      %v2665 = vpop.permute.xlu0 %2664
      %2666 = vrot.lane.b32.xlu0 %v2623, 110
      %v2667 = vpop.permute.xlu0 %2666
      %2668 = vrot.lane.b32.xlu0 %v2624, 110
      %v2669 = vpop.permute.xlu0 %2668
      %2670 = vrot.lane.b32.xlu0 %v2625, 110
      %v2671 = vpop.permute.xlu0 %2670
      %2672 = vrot.lane.b32.xlu0 %v2626, 110
      %v2673 = vpop.permute.xlu0 %2672
      %v2674 = vsel %vm699, %v2663, %v2665
      %v2675 = vsel %vm699, %v2665, %v2667
      %v2676 = vsel %vm699, %v2669, %v2671
      %v2677 = vsel %vm699, %v2671, %v2673
      %v2683 = vsel %vm1956, %v2652, 0
      %v2686 = vsel %vm1956, %v2653, 0
      %v2689 = vsel %vm1956, %v2654, 0
      %v2692 = vsel %vm1956, %v2655, 0
      %2694 = vmatprep.subr.bf16.mxu0 %v2675
      %2695 = vmatpush1.bf16.msra.mxu0 %v2674
      %2696 = vmatprep.subr.bf16.mxu0 %v2677
      %2697 = vmatpush1.bf16.msra.mxu0 %v2676
      %2698 = vmatprep.subr.bf16.mxu0 0
      %2699 = vmatpush1.bf16.msra.mxu0 0
      %2700 = vmatprep.subr.bf16.mxu0 0
      %2701 = vmatpush1.bf16.msra.mxu0 0
      %2702 = vmatprep.subr.bf16.mxu0 0
      %2703 = vmatpush1.bf16.msra.mxu0 0
      %2704 = vmatprep.subr.bf16.mxu0 0
      %2705 = vmatpush1.bf16.msra.mxu0 0
      %2706 = vmatprep.subr.bf16.mxu0 0
      %2707 = vmatpush1.bf16.msra.mxu0 0
      %2708 = vmatprep.subr.bf16.mxu0 0
      %2709 = vmatpush1.bf16.msra.mxu0 0
      %2710 = vmatprep.subr.bf16.mxu0 0
      %2711 = vmatpush1.bf16.msra.mxu0 0
      %2712 = vmatprep.subr.bf16.mxu0 0
      %2713 = vmatpush1.bf16.msra.mxu0 0
      %2714 = vmatprep.subr.bf16.mxu0 0
      %2715 = vmatpush1.bf16.msra.mxu0 0
      %2716 = vmatprep.subr.bf16.mxu0 0
      %2717 = vmatpush1.bf16.msra.mxu0 0
      %2718 = vmatprep.subr.bf16.mxu0 0
      %2719 = vmatpush1.bf16.msra.mxu0 0
      %2720 = vmatprep.subr.bf16.mxu0 0
      %2721 = vmatpush1.bf16.msra.mxu0 0
      %2722 = vmatprep.subr.bf16.mxu0 0
      %2723 = vmatpush1.bf16.msra.mxu0 0
      %2724 = vmatprep.subr.bf16.mxu0 0
      %2725 = vmatpush1.bf16.msra.mxu0 0
      %2726 = vmatprep.mubr.bf16.mxu0 0
      %2727 = vmatmul.mubr.bf16.gmra.mrb[0].mxu0 %v2683
      %v2728 = vpop.f32.mrb[0].mxu0
      %v2729 = vadd.f32 0.0, %v2728
      %v2730 = vpop.f32.mrb[0].mxu0
      %v2731 = vadd.f32 0.0, %v2730
      %v2732 = vpop.f32.mrb[0].mxu0
      %v2733 = vadd.f32 0.0, %v2732
      %v2734 = vpop.f32.mrb[0].mxu0
      %v2735 = vadd.f32 0.0, %v2734
      %2736 = vmatprep.mubr.bf16.mxu0 0
      %2737 = vmatmul.mubr.bf16.gmra.mrb[0].mxu0 %v2686
      %v2738 = vpop.f32.mrb[0].mxu0
      %v2739 = vadd.f32 0.0, %v2738
      %v2740 = vpop.f32.mrb[0].mxu0
      %v2741 = vadd.f32 0.0, %v2740
      %v2742 = vpop.f32.mrb[0].mxu0
      %v2743 = vadd.f32 0.0, %v2742
      %v2744 = vpop.f32.mrb[0].mxu0
      %v2745 = vadd.f32 0.0, %v2744
      %2746 = vmatprep.mubr.bf16.mxu0 0
      %2747 = vmatmul.mubr.bf16.gmra.mrb[0].mxu0 %v2689
      %v2748 = vpop.f32.mrb[0].mxu0
      %v2749 = vadd.f32 0.0, %v2748
      %v2750 = vpop.f32.mrb[0].mxu0
      %v2751 = vadd.f32 0.0, %v2750
      %v2752 = vpop.f32.mrb[0].mxu0
      %v2753 = vadd.f32 0.0, %v2752
      %v2754 = vpop.f32.mrb[0].mxu0
      %v2755 = vadd.f32 0.0, %v2754
      %2756 = vmatprep.mubr.bf16.mxu0 0
      %2757 = vmatmul.mubr.bf16.gmra.mrb[0].mxu0 %v2692
      %v2758 = vpop.f32.mrb[0].mxu0
      %v2759 = vadd.f32 0.0, %v2758
      %v2760 = vpop.f32.mrb[0].mxu0
      %v2761 = vadd.f32 0.0, %v2760
      %v2762 = vpop.f32.mrb[0].mxu0
      %v2763 = vadd.f32 0.0, %v2762
      %v2764 = vpop.f32.mrb[0].mxu0
      %v2765 = vadd.f32 0.0, %v2764
      %2766 = vdwg.mxu0
      %v2767 = vadd.f32 %v2605, %v2729
      %v2768 = vadd.f32 %v2606, %v2731
      %v2769 = vadd.f32 %v2607, %v2733
      %v2770 = vadd.f32 %v2608, %v2735
      %v2771 = vadd.f32 %v2609, %v2739
      %v2772 = vadd.f32 %v2610, %v2741
      %v2773 = vadd.f32 %v2611, %v2743
      %v2774 = vadd.f32 %v2612, %v2745
      %v2775 = vadd.f32 %v2613, %v2749
      %v2776 = vadd.f32 %v2614, %v2751
      %v2777 = vadd.f32 %v2615, %v2753
      %v2778 = vadd.f32 %v2616, %v2755
      %v2779 = vadd.f32 %v2617, %v2759
      %v2780 = vadd.f32 %v2618, %v2761
      %v2781 = vadd.f32 %v2619, %v2763
      %v2782 = vadd.f32 %v2620, %v2765
      %v2783 = vsel %vm764, %v1880, 0
      %v2784 = vsel %vm765, %v1875, 0
      %v2785 = vsel %vm766, %v1886, 0
      %v2786 = vsel %vm764, %v1883, 0
      %v2787 = vsel %vm765, %v1876, 0
      %v2788 = vsel %vm766, %v1889, 0
      %s2789 = scalar_lea.vmem %s3, 192
      %v2790 = vld [vmem:[%s2789] sm:$0xf]
      %v2791 = vld [vmem:[%s2789 + $0x4] sm:$0xf]
      %v2792 = vld [vmem:[%s2789 + $0x8] sm:$0xf]
      %v2793 = vld [vmem:[%s2789 + $0xc] sm:$0xf]
      %v2794 = vld [vmem:[%s2789 + $0x10] sm:$0xf]
      %v2795 = vld [vmem:[%s2789 + $0x14] sm:$0xf]
      %v2796 = vld [vmem:[%s2789 + $0x18] sm:$0xf]
      %v2797 = vld [vmem:[%s2789 + $0x1c] sm:$0xf]
      %v2806 = vunpack.c.l.b16 %v2790
      %v2807 = vunpack.c.l.b16 %v2791
      %v2808 = vunpack.c.l.b16 %v2792
      %v2809 = vunpack.c.l.b16 %v2793
      %v2810 = vunpack.c.l.b16 %v2794
      %v2811 = vunpack.c.l.b16 %v2795
      %v2812 = vunpack.c.l.b16 %v2796
      %v2813 = vunpack.c.l.b16 %v2797
      %v2814 = vpack.c.b16 %v2807, %v2806
      %v2815 = vpack.c.b16 %v2809, %v2808
      %v2816 = vpack.c.b16 %v2811, %v2810
      %v2817 = vpack.c.b16 %v2813, %v2812
      %2824 = vrot.lane.b32.xlu0 %v2783, 96
      %v2825 = vpop.permute.xlu0 %2824
      %2826 = vrot.lane.b32.xlu0 %v2784, 96
      %v2827 = vpop.permute.xlu0 %2826
      %2828 = vrot.lane.b32.xlu0 %v2785, 96
      %v2829 = vpop.permute.xlu0 %2828
      %2830 = vrot.lane.b32.xlu0 %v2786, 96
      %v2831 = vpop.permute.xlu0 %2830
      %2832 = vrot.lane.b32.xlu0 %v2787, 96
      %v2833 = vpop.permute.xlu0 %2832
      %2834 = vrot.lane.b32.xlu0 %v2788, 96
      %v2835 = vpop.permute.xlu0 %2834
      %v2836 = vsel %vm787, %v2825, %v2827
      %v2837 = vsel %vm787, %v2827, %v2829
      %v2838 = vsel %vm787, %v2831, %v2833
      %v2839 = vsel %vm787, %v2833, %v2835
      %v2845 = vsel %vm1956, %v2814, 0
      %v2848 = vsel %vm1956, %v2815, 0
      %v2851 = vsel %vm1956, %v2816, 0
      %v2854 = vsel %vm1956, %v2817, 0
      %2856 = vmatprep.subr.bf16.mxu0 %v2837
      %2857 = vmatpush1.bf16.msra.mxu0 %v2836
      %2858 = vmatprep.subr.bf16.mxu0 %v2839
      %2859 = vmatpush1.bf16.msra.mxu0 %v2838
      %2860 = vmatprep.subr.bf16.mxu0 0
      %2861 = vmatpush1.bf16.msra.mxu0 0
      %2862 = vmatprep.subr.bf16.mxu0 0
      %2863 = vmatpush1.bf16.msra.mxu0 0
      %2864 = vmatprep.subr.bf16.mxu0 0
      %2865 = vmatpush1.bf16.msra.mxu0 0
      %2866 = vmatprep.subr.bf16.mxu0 0
      %2867 = vmatpush1.bf16.msra.mxu0 0
      %2868 = vmatprep.subr.bf16.mxu0 0
      %2869 = vmatpush1.bf16.msra.mxu0 0
      %2870 = vmatprep.subr.bf16.mxu0 0
      %2871 = vmatpush1.bf16.msra.mxu0 0
      %2872 = vmatprep.subr.bf16.mxu0 0
      %2873 = vmatpush1.bf16.msra.mxu0 0
      %2874 = vmatprep.subr.bf16.mxu0 0
      %2875 = vmatpush1.bf16.msra.mxu0 0
      %2876 = vmatprep.subr.bf16.mxu0 0
      %2877 = vmatpush1.bf16.msra.mxu0 0
      %2878 = vmatprep.subr.bf16.mxu0 0
      %2879 = vmatpush1.bf16.msra.mxu0 0
      %2880 = vmatprep.subr.bf16.mxu0 0
      %2881 = vmatpush1.bf16.msra.mxu0 0
      %2882 = vmatprep.subr.bf16.mxu0 0
      %2883 = vmatpush1.bf16.msra.mxu0 0
      %2884 = vmatprep.subr.bf16.mxu0 0
      %2885 = vmatpush1.bf16.msra.mxu0 0
      %2886 = vmatprep.subr.bf16.mxu0 0
      %2887 = vmatpush1.bf16.msra.mxu0 0
      %2888 = vmatprep.mubr.bf16.mxu0 0
      %2889 = vmatmul.mubr.bf16.gmra.mrb[0].mxu0 %v2845
      %v2890 = vpop.f32.mrb[0].mxu0
      %v2891 = vadd.f32 0.0, %v2890
      %v2892 = vpop.f32.mrb[0].mxu0
      %v2893 = vadd.f32 0.0, %v2892
      %v2894 = vpop.f32.mrb[0].mxu0
      %v2895 = vadd.f32 0.0, %v2894
      %v2896 = vpop.f32.mrb[0].mxu0
      %v2897 = vadd.f32 0.0, %v2896
      %2898 = vmatprep.mubr.bf16.mxu0 0
      %2899 = vmatmul.mubr.bf16.gmra.mrb[0].mxu0 %v2848
      %v2900 = vpop.f32.mrb[0].mxu0
      %v2901 = vadd.f32 0.0, %v2900
      %v2902 = vpop.f32.mrb[0].mxu0
      %v2903 = vadd.f32 0.0, %v2902
      %v2904 = vpop.f32.mrb[0].mxu0
      %v2905 = vadd.f32 0.0, %v2904
      %v2906 = vpop.f32.mrb[0].mxu0
      %v2907 = vadd.f32 0.0, %v2906
      %2908 = vmatprep.mubr.bf16.mxu0 0
      %2909 = vmatmul.mubr.bf16.gmra.mrb[0].mxu0 %v2851
      %v2910 = vpop.f32.mrb[0].mxu0
      %v2911 = vadd.f32 0.0, %v2910
      %v2912 = vpop.f32.mrb[0].mxu0
      %v2913 = vadd.f32 0.0, %v2912
      %v2914 = vpop.f32.mrb[0].mxu0
      %v2915 = vadd.f32 0.0, %v2914
      %v2916 = vpop.f32.mrb[0].mxu0
      %v2917 = vadd.f32 0.0, %v2916
      %2918 = vmatprep.mubr.bf16.mxu0 0
      %2919 = vmatmul.mubr.bf16.gmra.mrb[0].mxu0 %v2854
      %v2920 = vpop.f32.mrb[0].mxu0
      %v2921 = vadd.f32 0.0, %v2920
      %v2922 = vpop.f32.mrb[0].mxu0
      %v2923 = vadd.f32 0.0, %v2922
      %v2924 = vpop.f32.mrb[0].mxu0
      %v2925 = vadd.f32 0.0, %v2924
      %v2926 = vpop.f32.mrb[0].mxu0
      %v2927 = vadd.f32 0.0, %v2926
      %2928 = vdwg.mxu0
      %v2929 = vadd.f32 %v2767, %v2891
      %v2930 = vadd.f32 %v2768, %v2893
      %v2931 = vadd.f32 %v2769, %v2895
      %v2932 = vadd.f32 %v2770, %v2897
      %v2933 = vadd.f32 %v2771, %v2901
      %v2934 = vadd.f32 %v2772, %v2903
      %v2935 = vadd.f32 %v2773, %v2905
      %v2936 = vadd.f32 %v2774, %v2907
      %v2937 = vadd.f32 %v2775, %v2911
      %v2938 = vadd.f32 %v2776, %v2913
      %v2939 = vadd.f32 %v2777, %v2915
      %v2940 = vadd.f32 %v2778, %v2917
      %v2941 = vadd.f32 %v2779, %v2921
      %v2942 = vadd.f32 %v2780, %v2923
      %v2943 = vadd.f32 %v2781, %v2925
      %v2944 = vadd.f32 %v2782, %v2927
      %s2945 = scalar_lea.vmem %s3, 224
      %v2946 = vld [vmem:[%s2945] sm:$0xf]
      %v2947 = vld [vmem:[%s2945 + $0x4] sm:$0xf]
      %v2948 = vld [vmem:[%s2945 + $0x8] sm:$0xf]
      %v2949 = vld [vmem:[%s2945 + $0xc] sm:$0xf]
      %v2950 = vld [vmem:[%s2945 + $0x10] sm:$0xf]
      %v2951 = vld [vmem:[%s2945 + $0x14] sm:$0xf]
      %v2952 = vld [vmem:[%s2945 + $0x18] sm:$0xf]
      %v2953 = vld [vmem:[%s2945 + $0x1c] sm:$0xf]
      %v2962 = vunpack.c.l.b16 %v2946
      %v2963 = vunpack.c.l.b16 %v2947
      %v2964 = vunpack.c.l.b16 %v2948
      %v2965 = vunpack.c.l.b16 %v2949
      %v2966 = vunpack.c.l.b16 %v2950
      %v2967 = vunpack.c.l.b16 %v2951
      %v2968 = vunpack.c.l.b16 %v2952
      %v2969 = vunpack.c.l.b16 %v2953
      %v2970 = vpack.c.b16 %v2963, %v2962
      %v2971 = vpack.c.b16 %v2965, %v2964
      %v2972 = vpack.c.b16 %v2967, %v2966
      %v2973 = vpack.c.b16 %v2969, %v2968
      %2974 = vrot.lane.b32.xlu0 %v1880, 95
      %v2975 = vpop.permute.xlu0 %2974
      %2976 = vrot.lane.b32.xlu0 %v1875, 95
      %v2977 = vpop.permute.xlu0 %2976
      %2978 = vrot.lane.b32.xlu0 %v1886, 95
      %v2979 = vpop.permute.xlu0 %2978
      %2980 = vrot.lane.b32.xlu0 %v1883, 95
      %v2981 = vpop.permute.xlu0 %2980
      %2982 = vrot.lane.b32.xlu0 %v1876, 95
      %v2983 = vpop.permute.xlu0 %2982
      %2984 = vrot.lane.b32.xlu0 %v1889, 95
      %v2985 = vpop.permute.xlu0 %2984
      %v2986 = vsel %vm860, %v2975, %v2977
      %v2987 = vsel %vm860, %v2977, %v2979
      %v2988 = vsel %vm860, %v2981, %v2983
      %v2989 = vsel %vm860, %v2983, %v2985
      %v2995 = vsel %vm1956, %v2970, 0
      %v2998 = vsel %vm1956, %v2971, 0
      %v3001 = vsel %vm1956, %v2972, 0
      %v3004 = vsel %vm1956, %v2973, 0
      %3006 = vmatprep.subr.bf16.mxu0 %v2987
      %3007 = vmatpush1.bf16.msra.mxu0 %v2986
      %3008 = vmatprep.subr.bf16.mxu0 %v2989
      %3009 = vmatpush1.bf16.msra.mxu0 %v2988
      %3010 = vmatprep.subr.bf16.mxu0 0
      %3011 = vmatpush1.bf16.msra.mxu0 0
      %3012 = vmatprep.subr.bf16.mxu0 0
      %3013 = vmatpush1.bf16.msra.mxu0 0
      %3014 = vmatprep.subr.bf16.mxu0 0
      %3015 = vmatpush1.bf16.msra.mxu0 0
      %3016 = vmatprep.subr.bf16.mxu0 0
      %3017 = vmatpush1.bf16.msra.mxu0 0
      %3018 = vmatprep.subr.bf16.mxu0 0
      %3019 = vmatpush1.bf16.msra.mxu0 0
      %3020 = vmatprep.subr.bf16.mxu0 0
      %3021 = vmatpush1.bf16.msra.mxu0 0
      %3022 = vmatprep.subr.bf16.mxu0 0
      %3023 = vmatpush1.bf16.msra.mxu0 0
      %3024 = vmatprep.subr.bf16.mxu0 0
      %3025 = vmatpush1.bf16.msra.mxu0 0
      %3026 = vmatprep.subr.bf16.mxu0 0
      %3027 = vmatpush1.bf16.msra.mxu0 0
      %3028 = vmatprep.subr.bf16.mxu0 0
      %3029 = vmatpush1.bf16.msra.mxu0 0
      %3030 = vmatprep.subr.bf16.mxu0 0
      %3031 = vmatpush1.bf16.msra.mxu0 0
      %3032 = vmatprep.subr.bf16.mxu0 0
      %3033 = vmatpush1.bf16.msra.mxu0 0
      %3034 = vmatprep.subr.bf16.mxu0 0
      %3035 = vmatpush1.bf16.msra.mxu0 0
      %3036 = vmatprep.subr.bf16.mxu0 0
      %3037 = vmatpush1.bf16.msra.mxu0 0
      %3038 = vmatprep.mubr.bf16.mxu0 0
      %3039 = vmatmul.mubr.bf16.gmra.mrb[0].mxu0 %v2995
      %v3040 = vpop.f32.mrb[0].mxu0
      %v3041 = vadd.f32 0.0, %v3040
      %v3042 = vpop.f32.mrb[0].mxu0
      %v3043 = vadd.f32 0.0, %v3042
      %v3044 = vpop.f32.mrb[0].mxu0
      %v3045 = vadd.f32 0.0, %v3044
      %v3046 = vpop.f32.mrb[0].mxu0
      %v3047 = vadd.f32 0.0, %v3046
      %3048 = vmatprep.mubr.bf16.mxu0 0
      %3049 = vmatmul.mubr.bf16.gmra.mrb[0].mxu0 %v2998
      %v3050 = vpop.f32.mrb[0].mxu0
      %v3051 = vadd.f32 0.0, %v3050
      %v3052 = vpop.f32.mrb[0].mxu0
      %v3053 = vadd.f32 0.0, %v3052
      %v3054 = vpop.f32.mrb[0].mxu0
      %v3055 = vadd.f32 0.0, %v3054
      %v3056 = vpop.f32.mrb[0].mxu0
      %v3057 = vadd.f32 0.0, %v3056
      %3058 = vmatprep.mubr.bf16.mxu0 0
      %3059 = vmatmul.mubr.bf16.gmra.mrb[0].mxu0 %v3001
      %v3060 = vpop.f32.mrb[0].mxu0
      %v3061 = vadd.f32 0.0, %v3060
      %v3062 = vpop.f32.mrb[0].mxu0
      %v3063 = vadd.f32 0.0, %v3062
      %v3064 = vpop.f32.mrb[0].mxu0
      %v3065 = vadd.f32 0.0, %v3064
      %v3066 = vpop.f32.mrb[0].mxu0
      %v3067 = vadd.f32 0.0, %v3066
      %3068 = vmatprep.mubr.bf16.mxu0 0
      %3069 = vmatmul.mubr.bf16.gmra.mrb[0].mxu0 %v3004
      %v3070 = vpop.f32.mrb[0].mxu0
      %v3071 = vadd.f32 0.0, %v3070
      %v3072 = vpop.f32.mrb[0].mxu0
      %v3073 = vadd.f32 0.0, %v3072
      %v3074 = vpop.f32.mrb[0].mxu0
      %v3075 = vadd.f32 0.0, %v3074
      %v3076 = vpop.f32.mrb[0].mxu0
      %v3077 = vadd.f32 0.0, %v3076
      %3078 = vdwg.mxu0
      %v3079 = vadd.f32 %v2929, %v3041
      %v3080 = vadd.f32 %v2930, %v3043
      %v3081 = vadd.f32 %v2931, %v3045
      %v3082 = vadd.f32 %v2932, %v3047
      %v3083 = vadd.f32 %v2933, %v3051
      %v3084 = vadd.f32 %v2934, %v3053
      %v3085 = vadd.f32 %v2935, %v3055
      %v3086 = vadd.f32 %v2936, %v3057
      %v3087 = vadd.f32 %v2937, %v3061
      %v3088 = vadd.f32 %v2938, %v3063
      %v3089 = vadd.f32 %v2939, %v3065
      %v3090 = vadd.f32 %v2940, %v3067
      %v3091 = vadd.f32 %v2941, %v3071
      %v3092 = vadd.f32 %v2942, %v3073
      %v3093 = vadd.f32 %v2943, %v3075
      %v3094 = vadd.f32 %v2944, %v3077
      %v3095 = vsel %vm925, %v1880, 0
      %v3096 = vsel %vm926, %v1875, 0
      %v3097 = vsel %vm927, %v1886, 0
      %v3098 = vsel %vm925, %v1883, 0
      %v3099 = vsel %vm926, %v1876, 0
      %v3100 = vsel %vm927, %v1889, 0
      %s3101 = scalar_lea.vmem %s3, 256
      %v3102 = vld [vmem:[%s3101] sm:$0xf]
      %v3103 = vld [vmem:[%s3101 + $0x4] sm:$0xf]
      %v3104 = vld [vmem:[%s3101 + $0x8] sm:$0xf]
      %v3105 = vld [vmem:[%s3101 + $0xc] sm:$0xf]
      %v3106 = vld [vmem:[%s3101 + $0x10] sm:$0xf]
      %v3107 = vld [vmem:[%s3101 + $0x14] sm:$0xf]
      %v3108 = vld [vmem:[%s3101 + $0x18] sm:$0xf]
      %v3109 = vld [vmem:[%s3101 + $0x1c] sm:$0xf]
      %v3118 = vunpack.c.l.b16 %v3102
      %v3119 = vunpack.c.l.b16 %v3103
      %v3120 = vunpack.c.l.b16 %v3104
      %v3121 = vunpack.c.l.b16 %v3105
      %v3122 = vunpack.c.l.b16 %v3106
      %v3123 = vunpack.c.l.b16 %v3107
      %v3124 = vunpack.c.l.b16 %v3108
      %v3125 = vunpack.c.l.b16 %v3109
      %v3126 = vpack.c.b16 %v3119, %v3118
      %v3127 = vpack.c.b16 %v3121, %v3120
      %v3128 = vpack.c.b16 %v3123, %v3122
      %v3129 = vpack.c.b16 %v3125, %v3124
      %3136 = vrot.lane.b32.xlu0 %v3095, 94
      %v3137 = vpop.permute.xlu0 %3136
      %3138 = vrot.lane.b32.xlu0 %v3096, 94
      %v3139 = vpop.permute.xlu0 %3138
      %3140 = vrot.lane.b32.xlu0 %v3097, 94
      %v3141 = vpop.permute.xlu0 %3140
      %3142 = vrot.lane.b32.xlu0 %v3098, 94
      %v3143 = vpop.permute.xlu0 %3142
      %3144 = vrot.lane.b32.xlu0 %v3099, 94
      %v3145 = vpop.permute.xlu0 %3144
      %3146 = vrot.lane.b32.xlu0 %v3100, 94
      %v3147 = vpop.permute.xlu0 %3146
      %v3148 = vsel %vm948, %v3137, %v3139
      %v3149 = vsel %vm948, %v3139, %v3141
      %v3150 = vsel %vm948, %v3143, %v3145
      %v3151 = vsel %vm948, %v3145, %v3147
      %v3157 = vsel %vm1956, %v3126, 0
      %v3160 = vsel %vm1956, %v3127, 0
      %v3163 = vsel %vm1956, %v3128, 0
      %v3166 = vsel %vm1956, %v3129, 0
      %3168 = vmatprep.subr.bf16.mxu0 %v3149
      %3169 = vmatpush1.bf16.msra.mxu0 %v3148
      %3170 = vmatprep.subr.bf16.mxu0 %v3151
      %3171 = vmatpush1.bf16.msra.mxu0 %v3150
      %3172 = vmatprep.subr.bf16.mxu0 0
      %3173 = vmatpush1.bf16.msra.mxu0 0
      %3174 = vmatprep.subr.bf16.mxu0 0
      %3175 = vmatpush1.bf16.msra.mxu0 0
      %3176 = vmatprep.subr.bf16.mxu0 0
      %3177 = vmatpush1.bf16.msra.mxu0 0
      %3178 = vmatprep.subr.bf16.mxu0 0
      %3179 = vmatpush1.bf16.msra.mxu0 0
      %3180 = vmatprep.subr.bf16.mxu0 0
      %3181 = vmatpush1.bf16.msra.mxu0 0
      %3182 = vmatprep.subr.bf16.mxu0 0
      %3183 = vmatpush1.bf16.msra.mxu0 0
      %3184 = vmatprep.subr.bf16.mxu0 0
      %3185 = vmatpush1.bf16.msra.mxu0 0
      %3186 = vmatprep.subr.bf16.mxu0 0
      %3187 = vmatpush1.bf16.msra.mxu0 0
      %3188 = vmatprep.subr.bf16.mxu0 0
      %3189 = vmatpush1.bf16.msra.mxu0 0
      %3190 = vmatprep.subr.bf16.mxu0 0
      %3191 = vmatpush1.bf16.msra.mxu0 0
      %3192 = vmatprep.subr.bf16.mxu0 0
      %3193 = vmatpush1.bf16.msra.mxu0 0
      %3194 = vmatprep.subr.bf16.mxu0 0
      %3195 = vmatpush1.bf16.msra.mxu0 0
      %3196 = vmatprep.subr.bf16.mxu0 0
      %3197 = vmatpush1.bf16.msra.mxu0 0
      %3198 = vmatprep.subr.bf16.mxu0 0
      %3199 = vmatpush1.bf16.msra.mxu0 0
      %3200 = vmatprep.mubr.bf16.mxu0 0
      %3201 = vmatmul.mubr.bf16.gmra.mrb[0].mxu0 %v3157
      %v3202 = vpop.f32.mrb[0].mxu0
      %v3203 = vadd.f32 0.0, %v3202
      %v3204 = vpop.f32.mrb[0].mxu0
      %v3205 = vadd.f32 0.0, %v3204
      %v3206 = vpop.f32.mrb[0].mxu0
      %v3207 = vadd.f32 0.0, %v3206
      %v3208 = vpop.f32.mrb[0].mxu0
      %v3209 = vadd.f32 0.0, %v3208
      %3210 = vmatprep.mubr.bf16.mxu0 0
      %3211 = vmatmul.mubr.bf16.gmra.mrb[0].mxu0 %v3160
      %v3212 = vpop.f32.mrb[0].mxu0
      %v3213 = vadd.f32 0.0, %v3212
      %v3214 = vpop.f32.mrb[0].mxu0
      %v3215 = vadd.f32 0.0, %v3214
      %v3216 = vpop.f32.mrb[0].mxu0
      %v3217 = vadd.f32 0.0, %v3216
      %v3218 = vpop.f32.mrb[0].mxu0
      %v3219 = vadd.f32 0.0, %v3218
      %3220 = vmatprep.mubr.bf16.mxu0 0
      %3221 = vmatmul.mubr.bf16.gmra.mrb[0].mxu0 %v3163
      %v3222 = vpop.f32.mrb[0].mxu0
      %v3223 = vadd.f32 0.0, %v3222
      %v3224 = vpop.f32.mrb[0].mxu0
      %v3225 = vadd.f32 0.0, %v3224
      %v3226 = vpop.f32.mrb[0].mxu0
      %v3227 = vadd.f32 0.0, %v3226
      %v3228 = vpop.f32.mrb[0].mxu0
      %v3229 = vadd.f32 0.0, %v3228
      %3230 = vmatprep.mubr.bf16.mxu0 0
      %3231 = vmatmul.mubr.bf16.gmra.mrb[0].mxu0 %v3166
      %v3232 = vpop.f32.mrb[0].mxu0
      %v3233 = vadd.f32 0.0, %v3232
      %v3234 = vpop.f32.mrb[0].mxu0
      %v3235 = vadd.f32 0.0, %v3234
      %v3236 = vpop.f32.mrb[0].mxu0
      %v3237 = vadd.f32 0.0, %v3236
      %v3238 = vpop.f32.mrb[0].mxu0
      %v3239 = vadd.f32 0.0, %v3238
      %3240 = vdwg.mxu0
      %v3241 = vadd.f32 %v3079, %v3203
      %v3242 = vadd.f32 %v3080, %v3205
      %v3243 = vadd.f32 %v3081, %v3207
      %v3244 = vadd.f32 %v3082, %v3209
      %v3245 = vadd.f32 %v3083, %v3213
      %v3246 = vadd.f32 %v3084, %v3215
      %v3247 = vadd.f32 %v3085, %v3217
      %v3248 = vadd.f32 %v3086, %v3219
      %v3249 = vadd.f32 %v3087, %v3223
      %v3250 = vadd.f32 %v3088, %v3225
      %v3251 = vadd.f32 %v3089, %v3227
      %v3252 = vadd.f32 %v3090, %v3229
      %v3253 = vadd.f32 %v3091, %v3233
      %v3254 = vadd.f32 %v3092, %v3235
      %v3255 = vadd.f32 %v3093, %v3237
      %v3256 = vadd.f32 %v3094, %v3239
      %3257 = vst [vmem:[%s197] sm:$0xff] %v3241
      %3258 = vst [vmem:[%s197 + $0x8] sm:$0xff] %v3242
      %3259 = vst [vmem:[%s197 + $0x10] sm:$0xff] %v3243
      %3260 = vst [vmem:[%s197 + $0x18] sm:$0xff] %v3244
      %3261 = vst [vmem:[%s197 + $0x20] sm:$0xff] %v3245
      %3262 = vst [vmem:[%s197 + $0x28] sm:$0xff] %v3246
      %3263 = vst [vmem:[%s197 + $0x30] sm:$0xff] %v3247
      %3264 = vst [vmem:[%s197 + $0x38] sm:$0xff] %v3248
      %3265 = vst [vmem:[%s197 + $0x40] sm:$0xff] %v3249
      %3266 = vst [vmem:[%s197 + $0x48] sm:$0xff] %v3250
      %3267 = vst [vmem:[%s197 + $0x50] sm:$0xff] %v3251
      %3268 = vst [vmem:[%s197 + $0x58] sm:$0xff] %v3252
      %3269 = vst [vmem:[%s197 + $0x60] sm:$0xff] %v3253
      %3270 = vst [vmem:[%s197 + $0x68] sm:$0xff] %v3254
      %3271 = vst [vmem:[%s197 + $0x70] sm:$0xff] %v3255
      %3272 = vst [vmem:[%s197 + $0x78] sm:$0xff] %v3256
      %p3273 = scmp.lt.s32.totalorder %s15, 1
      %s3274 = scalar_select %p3273, %s15, 1
      %s3275 = smul.addr %s3274, 16
      %s3276 = smul.addr %s3275, 8
      %s3277 = scalar_lea.vmem %s4, %s3276
      // Predicated region
      $region37: #{feature_hsi_forward.1} parent=35 // pred_check
        %p3278 = pneg %p122
      $region38: #{feature_hsi_forward.1} parent=35 // pred_check_branch
        %3280 = sbr.rel (%p3278) target = $region40
      $region39: #{feature_hsi_forward.1} parent=35 // pred_region
        _
      $region40: #{feature_hsi_forward.1} parent=35 // pred_fallthru
        _
    $region36: #{feature_hsi_forward.1} parent=5 // pred_fallthru
      _
    %p3281 = scmp.le.s32.totalorder 2, %s10
    // Predicated region
    $region41: #{feature_hsi_forward.1} parent=5 // pred_check
      %p3282 = pneg %p3281
    $region42: #{feature_hsi_forward.1} parent=5 // pred_check_branch
      %3284 = sbr.rel (%p3282) target = $region44
    $region43: #{feature_hsi_forward.1} parent=5 // pred_region
      %s3285 = ssub.s32 %s10, 2
      // Predicated region
      $region45: #{feature_hsi_forward.1} parent=43 // pred_check
        %p3286 = pneg %p128
      $region46: #{feature_hsi_forward.1} parent=43 // pred_check_branch
        %3288 = sbr.rel (%p3286) target = $region48
      $region47: #{feature_hsi_forward.1} parent=43 // pred_region
        %p3289 = scmp.lt.s32.totalorder %s16, 1
        %s3290 = scalar_select %p3289, %s16, 1
        %s3291 = smul.addr %s3290, 16
        %s3292 = smul.addr %s3291, 8
        %s3293 = scalar_lea.vmem %s4, %s3292
      $region48: #{feature_hsi_forward.1} parent=43 // pred_fallthru
        _
    $region44: #{feature_hsi_forward.1} parent=5 // pred_fallthru
      _
  $region6: #{feature_hsi_forward.1} parent=0 // loop_footer
    %s14 = sadd.s32 1, %s10
  $region7: #{feature_hsi_forward.1} parent=0 // loop_footer_branch
    %9 = sbr.rel target = $region3
  $region8: #{feature_hsi_forward.1} parent=0 // loop_exit
    _

</llo_original>
